<compile_context>
chip_gen: v7x
topology: tpu7x:2x2x1
jax: 0.10.0
libtpu: 0.0.40
codegen_flags: <defaults>
</compile_context>

<pallas_src>
import functools

import jax
import jax.numpy as jnp
from jax.experimental import pallas as pl
from jax.experimental.pallas import tpu as pltpu


# ---------------------------------------------------------------------------
# Device-derived knobs.
# ---------------------------------------------------------------------------
def _device_kind():
    try:
        return jax.devices()[0].device_kind.lower()
    except Exception:
        return ""


def _vmem_capacity_bytes():
    try:
        return int(pltpu.get_tpu_info().vmem_capacity_bytes)
    except Exception:
        kind = _device_kind()
        if "v7" in kind or "7x" in kind:
            return 64 * 1024 * 1024
        return 128 * 1024 * 1024


def _exp_dtype():
    # bf16 EUP exists on v6e / v7x; keep f32 exp on v5e and older generations.
    kind = _device_kind()
    for old in ("v2", "v3", "v4", "v5"):
        if old in kind:
            return jnp.float32
    return jnp.bfloat16


def _pick_tile(n, cap, min_tiles=2):
    """Largest multiple of 8 that divides n, <= cap, leaving >= min_tiles tiles."""
    t = min(n, max(int(cap), 8))
    if n >= 8 * min_tiles:
        t = min(t, n // min_tiles)          # keep >=2 tiles for megacore/v7x
    t -= t % 8
    t = max(t, 8)
    while t > 8 and n % t != 0:
        t -= 8
    return t


def _block_diag_cols(a):
    """(H, Fo) -> (H*Fo, H): column h has a[h, :] in rows [h*Fo, (h+1)*Fo)."""
    h, fo = a.shape
    eye = jnp.eye(h, dtype=a.dtype)
    return (a[:, :, None] * eye[:, None, :]).reshape(h * fo, h)


# ---------------------------------------------------------------------------
# Projection kernel: feat = x @ W (bf16 out), scores = feat @ a_blockdiag.
# Computed once per layer (shared across all destination tiles).
# ---------------------------------------------------------------------------
def _proj_kernel(x_ref, w_ref, a_ref, feat_ref, sc_ref):
    xb = x_ref[...].astype(jnp.bfloat16)
    feat = jnp.dot(xb, w_ref[...], preferred_element_type=jnp.float32)
    fb = feat.astype(jnp.bfloat16)
    feat_ref[...] = fb
    sc_ref[...] = jnp.dot(fb, a_ref[...], preferred_element_type=jnp.float32)


def _project(x, w_b, a_mat_b, tile):
    n, f_in = x.shape
    hf = w_b.shape[1]
    two_h = a_mat_b.shape[1]
    grid = (n // tile,)
    return pl.pallas_call(
        _proj_kernel,
        out_shape=(jax.ShapeDtypeStruct((n, hf), jnp.bfloat16),
                   jax.ShapeDtypeStruct((n, two_h), jnp.float32)),
        grid=grid,
        in_specs=[pl.BlockSpec((tile, f_in), lambda i: (i, 0)),
                  pl.BlockSpec((f_in, hf), lambda i: (0, 0)),
                  pl.BlockSpec((hf, two_h), lambda i: (0, 0))],
        out_specs=(pl.BlockSpec((tile, hf), lambda i: (i, 0)),
                   pl.BlockSpec((tile, two_h), lambda i: (i, 0))),
        compiler_params=pltpu.CompilerParams(
            dimension_semantics=("parallel",)),
    )(x, w_b, a_mat_b)


# ---------------------------------------------------------------------------
# Attention + aggregation kernel (one GATConv layer), tiled over dst rows.
# ---------------------------------------------------------------------------
def _make_attn_kernel(num_heads, out_feats, combine, use_elu, exp_dtype):
    """combine in {"concat", "mean"}; use_elu applies ELU on the full tile."""
    H, Fo = num_heads, out_feats

    def kernel(el_t_ref, er_ref, adjb_ref, r_ref, b_ref, out_ref):
        el_t = el_t_ref[...]                 # (H, N)  f32  a_l . Wh_u (all srcs)
        er = er_ref[...]                     # (Tv, H) f32  a_r . Wh_v (dst tile)
        adj_bias = adjb_ref[...]             # (Tv, N) bf16: 0 on edge, -1e30 off

        # Per-head masked edge scores -> exp.  Normalization is folded into the
        # aggregation matmul below (ones columns of r_ref emit the denominators
        # next to the weighted sums), so numerator and denominator use the SAME
        # bf16-rounded p.  NOTE: a dst node with zero in-edges gets a uniform
        # row here (the reference NaNs); the demo graph has self-loops.
        p_blocks = []
        for h in range(H):
            e = er[:, h:h + 1] + el_t[h:h + 1, :]            # (Tv, N) f32
            e = jnp.where(e > 0, e, 0.2 * e)                 # LeakyReLU(0.2)
            e = e + adj_bias                                 # mask off-graph
            m = jnp.max(e, axis=-1, keepdims=True)
            p = jnp.exp((e - m).astype(exp_dtype))           # bf16 EUP on v6e/v7x
            p_blocks.append(p.astype(jnp.bfloat16))

        p_all = jnp.concatenate(p_blocks, axis=1)            # (Tv, H*N) bf16

        # One lane-dense MXU matmul for all heads + denominators.
        agg = jnp.dot(p_all, r_ref[...],
                      preferred_element_type=jnp.float32)     # (Tv, H*Fo + H)
        num = agg[:, :H * Fo]
        inv = pl.reciprocal(agg[:, H * Fo:H * Fo + H], approx=True)  # (Tv, H)

        pieces = [num[:, h * Fo:(h + 1) * Fo] * inv[:, h:h + 1] for h in range(H)]
        full = jnp.concatenate(pieces, axis=1) + b_ref[...]   # (Tv, H*Fo)

        if use_elu:
            full = jnp.where(full > 0, full, jnp.exp(full) - 1.0)

        if combine == "concat":
            out_ref[...] = full.astype(out_ref.dtype)
        else:
            acc = full[:, :Fo]
            for h in range(1, H):
                acc = acc + full[:, h * Fo:(h + 1) * Fo]
            out_ref[...] = (acc * jnp.float32(1.0 / H)).astype(out_ref.dtype)

    return kernel


def gat_layer(x, w, al, ar, b, adj_bias_ds, *, num_heads, out_feats, combine,
              use_elu, out_dtype=jnp.float32):
    """One GATConv layer.  adj_bias_ds: (dst, src) bf16 additive mask (0/-1e30)."""
    n, f_in = x.shape
    assert n % 8 == 0, "number of nodes must be a multiple of 8"
    H, Fo = num_heads, out_feats
    hf = H * Fo
    out_dim = hf if combine == "concat" else Fo

    # ---- shared projections: once per layer, NOT per destination tile ------
    a_mat = jnp.concatenate(
        [_block_diag_cols(al), _block_diag_cols(ar)], axis=1
    ).astype(jnp.bfloat16)                                   # (H*Fo, 2H)
    tile_p = _pick_tile(n, 1024)
    feat_b, scores = _project(x, w.astype(jnp.bfloat16), a_mat, tile_p)
    el_t = jnp.transpose(scores[:, :H])                      # (H, N): one transpose/layer
    er_all = scores[:, H:2 * H]                              # (N, H)

    # Head-block-diagonal aggregation RHS with per-head ones columns:
    #   R[h*N:(h+1)*N, h*Fo:(h+1)*Fo] = feat[:, h*Fo:(h+1)*Fo]
    #   R[h*N:(h+1)*N, H*Fo + h]      = 1        (softmax denominator column)
    col_mask = jnp.repeat(jnp.eye(H, dtype=jnp.bfloat16), Fo, axis=1)   # (H, H*Fo)
    r_feat = (feat_b[None, :, :] * col_mask[:, None, :]).reshape(H * n, hf)
    r_den = jnp.broadcast_to(jnp.eye(H, dtype=jnp.bfloat16)[:, None, :],
                             (H, n, H)).reshape(H * n, H)
    r_mat = jnp.concatenate([r_feat, r_den], axis=1)          # (H*N, H*Fo+H) bf16

    # ---- VMEM-aware destination-row tiling ----------------------------------
    out_bytes = jnp.dtype(out_dtype).itemsize
    per_row = (2 * n * 2                 # adjacency-bias tile (bf16, double-buffered)
               + H * n * 2               # p_all row (bf16)
               + 3 * n * 4               # live f32 softmax temporaries
               + 2 * H * 4               # er row (double-buffered)
               + 2 * out_dim * out_bytes)
    resident = (H * n * 4                # el_t
                + H * n * (hf + H) * 2   # aggregation RHS
                + hf * 4)                # bias
    vmem_cap = _vmem_capacity_bytes()
    budget = max(vmem_cap // 4 - resident, 8 * per_row)
    tile_v = _pick_tile(n, budget // per_row)
    vmem_limit = int(min(vmem_cap - (16 << 20),
                         max(32 << 20, 2 * (resident + tile_v * per_row))))

    kernel = _make_attn_kernel(H, Fo, combine, use_elu, _exp_dtype())
    grid = (n // tile_v,)

    in_specs = [
        pl.BlockSpec((H, n), lambda i: (0, 0)),               # el_t (all sources)
        pl.BlockSpec((tile_v, H), lambda i: (i, 0)),          # er (dst tile)
        pl.BlockSpec((tile_v, n), lambda i: (i, 0)),          # adjacency-bias tile
        pl.BlockSpec((H * n, hf + H), lambda i: (0, 0)),      # aggregation RHS
        pl.BlockSpec((1, hf), lambda i: (0, 0)),              # bias
    ]
    out_spec = pl.BlockSpec((tile_v, out_dim), lambda i: (i, 0))

    cost = pl.CostEstimate(
        flops=int(2 * n * (H * n) * (hf + H)      # batched aggregation MXU
                  + 6 * H * n * n                 # score/mask/softmax VPU
                  + 4 * n * hf),                  # scale/bias/ELU
        transcendentals=int(H * n * n + (n * hf if use_elu else 0)),
        bytes_accessed=int(n * n * 2 + H * n * 4 + n * H * 4
                           + H * n * (hf + H) * 2 + hf * 4
                           + n * out_dim * out_bytes),
    )

    return pl.pallas_call(
        kernel,
        out_shape=jax.ShapeDtypeStruct((n, out_dim), out_dtype),
        grid=grid,
        in_specs=in_specs,
        out_specs=out_spec,
        compiler_params=pltpu.CompilerParams(
            dimension_semantics=("parallel",),
            vmem_limit_bytes=vmem_limit),
        cost_estimate=cost,
    )(el_t, er_all, adj_bias_ds, r_mat, b)


# ---------------------------------------------------------------------------
# Full GAT model (2 layers): layer0 concat+ELU (bf16 out), layer1 mean (f32).
# ---------------------------------------------------------------------------
@functools.partial(jax.jit, static_argnames=("heads", "hid_size", "out_size"))
def gat_forward(params, x, adj_bias_ds, *, heads, hid_size, out_size):
    # adj_bias_ds: (dst, src) bf16 additive mask (0 on edge, -1e30 otherwise),
    # built once by the caller and reused by both layers.
    h = gat_layer(x, params["w0"], params["al0"], params["ar0"], params["b0"],
                  adj_bias_ds, num_heads=heads[0], out_feats=hid_size,
                  combine="concat", use_elu=True, out_dtype=jnp.bfloat16)
    h = gat_layer(h, params["w1"], params["al1"], params["ar1"], params["b1"],
                  adj_bias_ds, num_heads=heads[1], out_feats=out_size,
                  combine="mean", use_elu=False, out_dtype=jnp.float32)
    return h


# ---------------------------------------------------------------------------
# Pure-JAX reference (DGL GATConv semantics, eval mode) for verification.
# ---------------------------------------------------------------------------
def gat_layer_ref(x, w, al, ar, b, adj_uv, num_heads, out_feats, combine, use_elu):
    n = x.shape[0]
    feat = (x @ w).reshape(n, num_heads, out_feats)
    el = jnp.einsum("nhf,hf->nh", feat, al)
    er = jnp.einsum("nhf,hf->nh", feat, ar)
    e = el[:, None, :] + er[None, :, :]                 # (u, v, h)
    e = jnp.where(e > 0, e, 0.2 * e)
    mask = adj_uv[:, :, None] > 0
    e = jnp.where(mask, e, -1e30)
    e = e - jnp.max(e, axis=0, keepdims=True)
    p = jnp.exp(e) * adj_uv[:, :, None]
    alpha = p / jnp.sum(p, axis=0, keepdims=True)
    out = jnp.einsum("uvh,uhf->vhf", alpha, feat)       # (v, h, f)
    out = out + b.reshape(1, num_heads, out_feats)
    if use_elu:
        out = jnp.where(out > 0, out, jnp.exp(out) - 1.0)
    if combine == "concat":
        return out.reshape(n, num_heads * out_feats)
    return out.mean(axis=1)


def gat_forward_ref(params, x, adj_uv, heads, hid_size, out_size):
    h = gat_layer_ref(x, params["w0"], params["al0"], params["ar0"], params["b0"],
                      adj_uv, heads[0], hid_size, "concat", True)
    h = gat_layer_ref(h, params["w1"], params["al1"], params["ar1"], params["b1"],
                      adj_uv, heads[1], out_size, "mean", False)
    return h


if __name__ == "__main__":
    N = 128           # number of nodes
    IN_SIZE = 32
    HID_SIZE = 16
    OUT_SIZE = 8
    HEADS = (4, 2)

    key = jax.random.PRNGKey(0)
    keys = jax.random.split(key, 12)

    # deterministic synthetic parameters (DGL GATConv shapes)
    params = {
        "w0":  0.1 * jax.random.normal(keys[0], (IN_SIZE, HEADS[0] * HID_SIZE), jnp.float32),
        "al0": 0.1 * jax.random.normal(keys[1], (HEADS[0], HID_SIZE), jnp.float32),
        "ar0": 0.1 * jax.random.normal(keys[2], (HEADS[0], HID_SIZE), jnp.float32),
        "b0":  0.1 * jax.random.normal(keys[3], (1, HEADS[0] * HID_SIZE), jnp.float32),
        "w1":  0.1 * jax.random.normal(keys[4], (HEADS[0] * HID_SIZE, HEADS[1] * OUT_SIZE), jnp.float32),
        "al1": 0.1 * jax.random.normal(keys[5], (HEADS[1], OUT_SIZE), jnp.float32),
        "ar1": 0.1 * jax.random.normal(keys[6], (HEADS[1], OUT_SIZE), jnp.float32),
        "b1":  0.1 * jax.random.normal(keys[7], (1, HEADS[1] * OUT_SIZE), jnp.float32),
    }

    # node features and a random graph (with self loops); adj_uv[u, v]=1 => edge u->v
    x = jax.random.normal(keys[8], (N, IN_SIZE), jnp.float32)
    adj_uv = (jax.random.uniform(keys[9], (N, N)) < 0.1).astype(jnp.float32)
    adj_uv = jnp.maximum(adj_uv, jnp.eye(N, dtype=jnp.float32))

    # (dst, src) additive mask bias (bf16) built ONCE and reused by both layers.
    adj_bias_ds = jnp.where(adj_uv.T > 0, jnp.float32(0.0),
                            jnp.float32(-1e30)).astype(jnp.bfloat16)

    out = gat_forward(params, x, adj_bias_ds, heads=HEADS,
                      hid_size=HID_SIZE, out_size=OUT_SIZE)
    out = jax.block_until_ready(out)

    ref = gat_forward_ref(params, x, adj_uv, HEADS, HID_SIZE, OUT_SIZE)
    assert out.shape == (N, OUT_SIZE), out.shape
    max_err = float(jnp.max(jnp.abs(out - ref)))
    # bf16 MXU operands everywhere (f32 accumulate), bf16 exp on v6e/v7x,
    # bf16 layer-0 intermediate, approx reciprocal -> loosened tolerance.
    assert jnp.allclose(out, ref, rtol=5e-2, atol=5e-2), max_err

    print("KERNEL_OK")
</pallas_src>

<mosaic_0001>
module attributes {stable_mosaic.version = 11 : i64} {
  func.func @_proj_kernel(%arg0: i32, %arg1: memref<64x32xf32, #tpu.memory_space<vmem>>, %arg2: memref<32x64xbf16, #tpu.memory_space<vmem>>, %arg3: memref<64x8xbf16, #tpu.memory_space<vmem>>, %arg4: memref<64x64xbf16, #tpu.memory_space<vmem>>, %arg5: memref<64x8xf32, #tpu.memory_space<vmem>>) attributes {dimension_semantics = [#tpu.dimension_semantics<parallel>], iteration_bounds = array<i64: 2>, scalar_prefetch = 0 : i64, scratch_operands = 0 : i64, tpu.core_type = #tpu.core_type<tc>, window_params = [{transform_indices = @transform_0, window_bounds = array<i64: 64, 32>}, {pipeline_mode = #tpu.pipeline_mode<synchronous>, transform_indices = @transform_1, window_bounds = array<i64: 32, 64>}, {pipeline_mode = #tpu.pipeline_mode<synchronous>, transform_indices = @transform_2, window_bounds = array<i64: 64, 8>}, {transform_indices = @transform_3, window_bounds = array<i64: 64, 64>}, {transform_indices = @transform_4, window_bounds = array<i64: 64, 8>}]} {
    %c0 = arith.constant 0 : index
    %c0_0 = arith.constant 0 : index
    %0 = vector.load %arg1[%c0, %c0_0] : memref<64x32xf32, #tpu.memory_space<vmem>>, vector<64x32xf32>
    %1 = arith.truncf %0 : vector<64x32xf32> to vector<64x32xbf16>
    %c0_1 = arith.constant 0 : index
    %c0_2 = arith.constant 0 : index
    %2 = vector.load %arg2[%c0_1, %c0_2] : memref<32x64xbf16, #tpu.memory_space<vmem>>, vector<32x64xbf16>
    %cst = arith.constant dense<0.000000e+00> : vector<64x64xf32>
    %3 = tpu.matmul %1, %2, %cst {dimension_numbers = #tpu.dot_dimension_numbers<[1], [0], [0], [1], [0, 0, 1, 1], [], []>} : vector<64x32xbf16>, vector<32x64xbf16>, vector<64x64xf32> -> vector<64x64xf32>
    %4 = arith.truncf %3 : vector<64x64xf32> to vector<64x64xbf16>
    %c0_3 = arith.constant 0 : index
    %c0_4 = arith.constant 0 : index
    %5 = vector.load %arg4[%c0_3, %c0_4] : memref<64x64xbf16, #tpu.memory_space<vmem>>, vector<64x64xbf16>
    tpu.vector_store %arg4[%c0_3, %c0_4], %4 {strides = array<i32>} : memref<64x64xbf16, #tpu.memory_space<vmem>>, vector<64x64xbf16>,
    %c0_5 = arith.constant 0 : index
    %c0_6 = arith.constant 0 : index
    %6 = vector.load %arg3[%c0_5, %c0_6] : memref<64x8xbf16, #tpu.memory_space<vmem>>, vector<64x8xbf16>
    %cst_7 = arith.constant dense<0.000000e+00> : vector<64x8xf32>
    %7 = tpu.matmul %4, %6, %cst_7 {dimension_numbers = #tpu.dot_dimension_numbers<[1], [0], [0], [1], [0, 0, 1, 1], [], []>} : vector<64x64xbf16>, vector<64x8xbf16>, vector<64x8xf32> -> vector<64x8xf32>
    %c0_8 = arith.constant 0 : index
    %c0_9 = arith.constant 0 : index
    %8 = vector.load %arg5[%c0_8, %c0_9] : memref<64x8xf32, #tpu.memory_space<vmem>>, vector<64x8xf32>
    tpu.vector_store %arg5[%c0_8, %c0_9], %7 {strides = array<i32>} : memref<64x8xf32, #tpu.memory_space<vmem>>, vector<64x8xf32>,
    return
  }
  func.func @transform_0(%arg0: i32) -> (i32, i32) {
    %c0_i32 = arith.constant 0 : i32
    %c0_i32_0 = arith.constant 0 : i32
    return %arg0, %c0_i32 : i32, i32
  }
  func.func @transform_1(%arg0: i32) -> (i32, i32) {
    %c0_i32 = arith.constant 0 : i32
    %c0_i32_0 = arith.constant 0 : i32
    %c0_i32_1 = arith.constant 0 : i32
    return %c0_i32, %c0_i32_0 : i32, i32
  }
  func.func @transform_2(%arg0: i32) -> (i32, i32) {
    %c0_i32 = arith.constant 0 : i32
    %c0_i32_0 = arith.constant 0 : i32
    %c0_i32_1 = arith.constant 0 : i32
    return %c0_i32, %c0_i32_0 : i32, i32
  }
  func.func @transform_3(%arg0: i32) -> (i32, i32) {
    %c0_i32 = arith.constant 0 : i32
    %c0_i32_0 = arith.constant 0 : i32
    return %arg0, %c0_i32 : i32, i32
  }
  func.func @transform_4(%arg0: i32) -> (i32, i32) {
    %c0_i32 = arith.constant 0 : i32
    %c0_i32_0 = arith.constant 0 : i32
    return %arg0, %c0_i32 : i32, i32
  }
}

module attributes {stable_mosaic.version = 11 : i64} {
  func.func @kernel(%arg0: i32, %arg1: memref<4x128xf32, #tpu.memory_space<vmem>>, %arg2: memref<64x4xf32, #tpu.memory_space<vmem>>, %arg3: memref<64x128xbf16, #tpu.memory_space<vmem>>, %arg4: memref<512x68xbf16, #tpu.memory_space<vmem>>, %arg5: memref<1x64xf32, #tpu.memory_space<vmem>>, %arg6: memref<64x64xbf16, #tpu.memory_space<vmem>>) attributes {dimension_semantics = [#tpu.dimension_semantics<parallel>], iteration_bounds = array<i64: 2>, scalar_prefetch = 0 : i64, scratch_operands = 0 : i64, tpu.core_type = #tpu.core_type<tc>, window_params = [{pipeline_mode = #tpu.pipeline_mode<synchronous>, transform_indices = @transform_0, window_bounds = array<i64: 4, 128>}, {transform_indices = @transform_1, window_bounds = array<i64: 64, 4>}, {transform_indices = @transform_2, window_bounds = array<i64: 64, 128>}, {pipeline_mode = #tpu.pipeline_mode<synchronous>, transform_indices = @transform_3, window_bounds = array<i64: 512, 68>}, {pipeline_mode = #tpu.pipeline_mode<synchronous>, transform_indices = @transform_4, window_bounds = array<i64: 1, 64>}, {transform_indices = @transform_5, window_bounds = array<i64: 64, 64>}]} {
    %c0 = arith.constant 0 : index
    %c0_0 = arith.constant 0 : index
    %0 = vector.load %arg1[%c0, %c0_0] : memref<4x128xf32, #tpu.memory_space<vmem>>, vector<4x128xf32>
    %c0_1 = arith.constant 0 : index
    %c0_2 = arith.constant 0 : index
    %1 = vector.load %arg2[%c0_1, %c0_2] : memref<64x4xf32, #tpu.memory_space<vmem>>, vector<64x4xf32>
    %c0_3 = arith.constant 0 : index
    %c0_4 = arith.constant 0 : index
    %2 = vector.load %arg3[%c0_3, %c0_4] : memref<64x128xbf16, #tpu.memory_space<vmem>>, vector<64x128xbf16>
    %3 = vector.extract_strided_slice %1 {offsets = [0, 0], sizes = [64, 1], strides = [1, 1]} : vector<64x4xf32> to vector<64x1xf32>
    %4 = vector.extract_strided_slice %0 {offsets = [0, 0], sizes = [1, 128], strides = [1, 1]} : vector<4x128xf32> to vector<1x128xf32>
    %5 = vector.broadcast %3 : vector<64x1xf32> to vector<64x128xf32>
    %6 = vector.broadcast %4 : vector<1x128xf32> to vector<64x128xf32>
    %7 = arith.addf %5, %6 : vector<64x128xf32>
    %cst = arith.constant 0.000000e+00 : f32
    %8 = vector.broadcast %cst : f32 to vector<64x128xf32>
    %9 = arith.cmpf ogt, %7, %8 : vector<64x128xf32>
    %cst_5 = arith.constant 2.000000e-01 : f32
    %10 = vector.broadcast %cst_5 : f32 to vector<64x128xf32>
    %11 = arith.mulf %10, %7 : vector<64x128xf32>
    %12 = arith.select %9, %7, %11 : vector<64x128xi1>, vector<64x128xf32>
    %13 = arith.extf %2 : vector<64x128xbf16> to vector<64x128xf32>
    %14 = arith.addf %12, %13 : vector<64x128xf32>
    %cst_6 = arith.constant dense<0xFF800000> : vector<64xf32>
    %15 = vector.multi_reduction <maximumf>, %14, %cst_6 [1] : vector<64x128xf32> to vector<64xf32>
    %16 = vector.shape_cast %15 : vector<64xf32> to vector<64x1xf32>
    %17 = vector.broadcast %16 : vector<64x1xf32> to vector<64x128xf32>
    %18 = arith.subf %14, %17 : vector<64x128xf32>
    %19 = arith.truncf %18 : vector<64x128xf32> to vector<64x128xbf16>
    %20 = math.exp %19 : vector<64x128xbf16>
    %21 = vector.extract_strided_slice %1 {offsets = [0, 1], sizes = [64, 1], strides = [1, 1]} : vector<64x4xf32> to vector<64x1xf32>
    %22 = vector.extract_strided_slice %0 {offsets = [1, 0], sizes = [1, 128], strides = [1, 1]} : vector<4x128xf32> to vector<1x128xf32>
    %23 = vector.broadcast %21 : vector<64x1xf32> to vector<64x128xf32>
    %24 = vector.broadcast %22 : vector<1x128xf32> to vector<64x128xf32>
    %25 = arith.addf %23, %24 : vector<64x128xf32>
    %cst_7 = arith.constant 0.000000e+00 : f32
    %26 = vector.broadcast %cst_7 : f32 to vector<64x128xf32>
    %27 = arith.cmpf ogt, %25, %26 : vector<64x128xf32>
    %cst_8 = arith.constant 2.000000e-01 : f32
    %28 = vector.broadcast %cst_8 : f32 to vector<64x128xf32>
    %29 = arith.mulf %28, %25 : vector<64x128xf32>
    %30 = arith.select %27, %25, %29 : vector<64x128xi1>, vector<64x128xf32>
    %31 = arith.extf %2 : vector<64x128xbf16> to vector<64x128xf32>
    %32 = arith.addf %30, %31 : vector<64x128xf32>
    %cst_9 = arith.constant dense<0xFF800000> : vector<64xf32>
    %33 = vector.multi_reduction <maximumf>, %32, %cst_9 [1] : vector<64x128xf32> to vector<64xf32>
    %34 = vector.shape_cast %33 : vector<64xf32> to vector<64x1xf32>
    %35 = vector.broadcast %34 : vector<64x1xf32> to vector<64x128xf32>
    %36 = arith.subf %32, %35 : vector<64x128xf32>
    %37 = arith.truncf %36 : vector<64x128xf32> to vector<64x128xbf16>
    %38 = math.exp %37 : vector<64x128xbf16>
    %39 = vector.extract_strided_slice %1 {offsets = [0, 2], sizes = [64, 1], strides = [1, 1]} : vector<64x4xf32> to vector<64x1xf32>
    %40 = vector.extract_strided_slice %0 {offsets = [2, 0], sizes = [1, 128], strides = [1, 1]} : vector<4x128xf32> to vector<1x128xf32>
    %41 = vector.broadcast %39 : vector<64x1xf32> to vector<64x128xf32>
    %42 = vector.broadcast %40 : vector<1x128xf32> to vector<64x128xf32>
    %43 = arith.addf %41, %42 : vector<64x128xf32>
    %cst_10 = arith.constant 0.000000e+00 : f32
    %44 = vector.broadcast %cst_10 : f32 to vector<64x128xf32>
    %45 = arith.cmpf ogt, %43, %44 : vector<64x128xf32>
    %cst_11 = arith.constant 2.000000e-01 : f32
    %46 = vector.broadcast %cst_11 : f32 to vector<64x128xf32>
    %47 = arith.mulf %46, %43 : vector<64x128xf32>
    %48 = arith.select %45, %43, %47 : vector<64x128xi1>, vector<64x128xf32>
    %49 = arith.extf %2 : vector<64x128xbf16> to vector<64x128xf32>
    %50 = arith.addf %48, %49 : vector<64x128xf32>
    %cst_12 = arith.constant dense<0xFF800000> : vector<64xf32>
    %51 = vector.multi_reduction <maximumf>, %50, %cst_12 [1] : vector<64x128xf32> to vector<64xf32>
    %52 = vector.shape_cast %51 : vector<64xf32> to vector<64x1xf32>
    %53 = vector.broadcast %52 : vector<64x1xf32> to vector<64x128xf32>
    %54 = arith.subf %50, %53 : vector<64x128xf32>
    %55 = arith.truncf %54 : vector<64x128xf32> to vector<64x128xbf16>
    %56 = math.exp %55 : vector<64x128xbf16>
    %57 = vector.extract_strided_slice %1 {offsets = [0, 3], sizes = [64, 1], strides = [1, 1]} : vector<64x4xf32> to vector<64x1xf32>
    %58 = vector.extract_strided_slice %0 {offsets = [3, 0], sizes = [1, 128], strides = [1, 1]} : vector<4x128xf32> to vector<1x128xf32>
    %59 = vector.broadcast %57 : vector<64x1xf32> to vector<64x128xf32>
    %60 = vector.broadcast %58 : vector<1x128xf32> to vector<64x128xf32>
    %61 = arith.addf %59, %60 : vector<64x128xf32>
    %cst_13 = arith.constant 0.000000e+00 : f32
    %62 = vector.broadcast %cst_13 : f32 to vector<64x128xf32>
    %63 = arith.cmpf ogt, %61, %62 : vector<64x128xf32>
    %cst_14 = arith.constant 2.000000e-01 : f32
    %64 = vector.broadcast %cst_14 : f32 to vector<64x128xf32>
    %65 = arith.mulf %64, %61 : vector<64x128xf32>
    %66 = arith.select %63, %61, %65 : vector<64x128xi1>, vector<64x128xf32>
    %67 = arith.extf %2 : vector<64x128xbf16> to vector<64x128xf32>
    %68 = arith.addf %66, %67 : vector<64x128xf32>
    %cst_15 = arith.constant dense<0xFF800000> : vector<64xf32>
    %69 = vector.multi_reduction <maximumf>, %68, %cst_15 [1] : vector<64x128xf32> to vector<64xf32>
    %70 = vector.shape_cast %69 : vector<64xf32> to vector<64x1xf32>
    %71 = vector.broadcast %70 : vector<64x1xf32> to vector<64x128xf32>
    %72 = arith.subf %68, %71 : vector<64x128xf32>
    %73 = arith.truncf %72 : vector<64x128xf32> to vector<64x128xbf16>
    %74 = math.exp %73 : vector<64x128xbf16>
    %75 = tpu.concatenate %20, %38, %56, %74 in 1 : vector<64x128xbf16>, vector<64x128xbf16>, vector<64x128xbf16>, vector<64x128xbf16> -> vector<64x512xbf16>
    %c0_16 = arith.constant 0 : index
    %c0_17 = arith.constant 0 : index
    %76 = vector.load %arg4[%c0_16, %c0_17] : memref<512x68xbf16, #tpu.memory_space<vmem>>, vector<512x68xbf16>
    %cst_18 = arith.constant dense<0.000000e+00> : vector<64x68xf32>
    %77 = tpu.matmul %75, %76, %cst_18 {dimension_numbers = #tpu.dot_dimension_numbers<[1], [0], [0], [1], [0, 0, 1, 1], [], []>} : vector<64x512xbf16>, vector<512x68xbf16>, vector<64x68xf32> -> vector<64x68xf32>
    %78 = vector.extract_strided_slice %77 {offsets = [0, 0], sizes = [64, 64], strides = [1, 1]} : vector<64x68xf32> to vector<64x64xf32>
    %79 = vector.extract_strided_slice %77 {offsets = [0, 64], sizes = [64, 4], strides = [1, 1]} : vector<64x68xf32> to vector<64x4xf32>
    %80 = tpu.reciprocal %79 {approx = true} : vector<64x4xf32> -> vector<64x4xf32>
    %81 = vector.extract_strided_slice %78 {offsets = [0, 0], sizes = [64, 16], strides = [1, 1]} : vector<64x64xf32> to vector<64x16xf32>
    %82 = vector.extract_strided_slice %80 {offsets = [0, 0], sizes = [64, 1], strides = [1, 1]} : vector<64x4xf32> to vector<64x1xf32>
    %83 = vector.broadcast %82 : vector<64x1xf32> to vector<64x16xf32>
    %84 = arith.mulf %81, %83 : vector<64x16xf32>
    %85 = vector.extract_strided_slice %78 {offsets = [0, 16], sizes = [64, 16], strides = [1, 1]} : vector<64x64xf32> to vector<64x16xf32>
    %86 = vector.extract_strided_slice %80 {offsets = [0, 1], sizes = [64, 1], strides = [1, 1]} : vector<64x4xf32> to vector<64x1xf32>
    %87 = vector.broadcast %86 : vector<64x1xf32> to vector<64x16xf32>
    %88 = arith.mulf %85, %87 : vector<64x16xf32>
    %89 = vector.extract_strided_slice %78 {offsets = [0, 32], sizes = [64, 16], strides = [1, 1]} : vector<64x64xf32> to vector<64x16xf32>
    %90 = vector.extract_strided_slice %80 {offsets = [0, 2], sizes = [64, 1], strides = [1, 1]} : vector<64x4xf32> to vector<64x1xf32>
    %91 = vector.broadcast %90 : vector<64x1xf32> to vector<64x16xf32>
    %92 = arith.mulf %89, %91 : vector<64x16xf32>
    %93 = vector.extract_strided_slice %78 {offsets = [0, 48], sizes = [64, 16], strides = [1, 1]} : vector<64x64xf32> to vector<64x16xf32>
    %94 = vector.extract_strided_slice %80 {offsets = [0, 3], sizes = [64, 1], strides = [1, 1]} : vector<64x4xf32> to vector<64x1xf32>
    %95 = vector.broadcast %94 : vector<64x1xf32> to vector<64x16xf32>
    %96 = arith.mulf %93, %95 : vector<64x16xf32>
    %97 = tpu.concatenate %84, %88, %92, %96 in 1 : vector<64x16xf32>, vector<64x16xf32>, vector<64x16xf32>, vector<64x16xf32> -> vector<64x64xf32>
    %c0_19 = arith.constant 0 : index
    %c0_20 = arith.constant 0 : index
    %98 = vector.load %arg5[%c0_19, %c0_20] : memref<1x64xf32, #tpu.memory_space<vmem>>, vector<1x64xf32>
    %99 = vector.broadcast %98 : vector<1x64xf32> to vector<64x64xf32>
    %100 = arith.addf %97, %99 : vector<64x64xf32>
    %cst_21 = arith.constant 0.000000e+00 : f32
    %101 = vector.broadcast %cst_21 : f32 to vector<64x64xf32>
    %102 = arith.cmpf ogt, %100, %101 : vector<64x64xf32>
    %103 = math.exp %100 : vector<64x64xf32>
    %cst_22 = arith.constant 1.000000e+00 : f32
    %104 = vector.broadcast %cst_22 : f32 to vector<64x64xf32>
    %105 = arith.subf %103, %104 : vector<64x64xf32>
    %106 = arith.select %102, %100, %105 : vector<64x64xi1>, vector<64x64xf32>
    %107 = arith.truncf %106 : vector<64x64xf32> to vector<64x64xbf16>
    %c0_23 = arith.constant 0 : index
    %c0_24 = arith.constant 0 : index
    %108 = vector.load %arg6[%c0_23, %c0_24] : memref<64x64xbf16, #tpu.memory_space<vmem>>, vector<64x64xbf16>
    tpu.vector_store %arg6[%c0_23, %c0_24], %107 {strides = array<i32>} : memref<64x64xbf16, #tpu.memory_space<vmem>>, vector<64x64xbf16>,
    return
  }
  func.func @transform_0(%arg0: i32) -> (i32, i32) {
    %c0_i32 = arith.constant 0 : i32
    %c0_i32_0 = arith.constant 0 : i32
    %c0_i32_1 = arith.constant 0 : i32
    return %c0_i32, %c0_i32_0 : i32, i32
  }
  func.func @transform_1(%arg0: i32) -> (i32, i32) {
    %c0_i32 = arith.constant 0 : i32
    %c0_i32_0 = arith.constant 0 : i32
    return %arg0, %c0_i32 : i32, i32
  }
  func.func @transform_2(%arg0: i32) -> (i32, i32) {
    %c0_i32 = arith.constant 0 : i32
    %c0_i32_0 = arith.constant 0 : i32
    return %arg0, %c0_i32 : i32, i32
  }
  func.func @transform_3(%arg0: i32) -> (i32, i32) {
    %c0_i32 = arith.constant 0 : i32
    %c0_i32_0 = arith.constant 0 : i32
    %c0_i32_1 = arith.constant 0 : i32
    return %c0_i32, %c0_i32_0 : i32, i32
  }
  func.func @transform_4(%arg0: i32) -> (i32, i32) {
    %c0_i32 = arith.constant 0 : i32
    %c0_i32_0 = arith.constant 0 : i32
    %c0_i32_1 = arith.constant 0 : i32
    return %c0_i32, %c0_i32_0 : i32, i32
  }
  func.func @transform_5(%arg0: i32) -> (i32, i32) {
    %c0_i32 = arith.constant 0 : i32
    %c0_i32_0 = arith.constant 0 : i32
    return %arg0, %c0_i32 : i32, i32
  }
}

module attributes {stable_mosaic.version = 11 : i64} {
  func.func @_proj_kernel(%arg0: i32, %arg1: memref<64x64xbf16, #tpu.memory_space<vmem>>, %arg2: memref<64x16xbf16, #tpu.memory_space<vmem>>, %arg3: memref<16x4xbf16, #tpu.memory_space<vmem>>, %arg4: memref<64x16xbf16, #tpu.memory_space<vmem>>, %arg5: memref<64x4xf32, #tpu.memory_space<vmem>>) attributes {dimension_semantics = [#tpu.dimension_semantics<parallel>], iteration_bounds = array<i64: 2>, scalar_prefetch = 0 : i64, scratch_operands = 0 : i64, tpu.core_type = #tpu.core_type<tc>, window_params = [{transform_indices = @transform_0, window_bounds = array<i64: 64, 64>}, {pipeline_mode = #tpu.pipeline_mode<synchronous>, transform_indices = @transform_1, window_bounds = array<i64: 64, 16>}, {pipeline_mode = #tpu.pipeline_mode<synchronous>, transform_indices = @transform_2, window_bounds = array<i64: 16, 4>}, {transform_indices = @transform_3, window_bounds = array<i64: 64, 16>}, {transform_indices = @transform_4, window_bounds = array<i64: 64, 4>}]} {
    %c0 = arith.constant 0 : index
    %c0_0 = arith.constant 0 : index
    %0 = vector.load %arg1[%c0, %c0_0] : memref<64x64xbf16, #tpu.memory_space<vmem>>, vector<64x64xbf16>
    %c0_1 = arith.constant 0 : index
    %c0_2 = arith.constant 0 : index
    %1 = vector.load %arg2[%c0_1, %c0_2] : memref<64x16xbf16, #tpu.memory_space<vmem>>, vector<64x16xbf16>
    %cst = arith.constant dense<0.000000e+00> : vector<64x16xf32>
    %2 = tpu.matmul %0, %1, %cst {dimension_numbers = #tpu.dot_dimension_numbers<[1], [0], [0], [1], [0, 0, 1, 1], [], []>} : vector<64x64xbf16>, vector<64x16xbf16>, vector<64x16xf32> -> vector<64x16xf32>
    %3 = arith.truncf %2 : vector<64x16xf32> to vector<64x16xbf16>
    %c0_3 = arith.constant 0 : index
    %c0_4 = arith.constant 0 : index
    %4 = vector.load %arg4[%c0_3, %c0_4] : memref<64x16xbf16, #tpu.memory_space<vmem>>, vector<64x16xbf16>
    tpu.vector_store %arg4[%c0_3, %c0_4], %3 {strides = array<i32>} : memref<64x16xbf16, #tpu.memory_space<vmem>>, vector<64x16xbf16>,
    %c0_5 = arith.constant 0 : index
    %c0_6 = arith.constant 0 : index
    %5 = vector.load %arg3[%c0_5, %c0_6] : memref<16x4xbf16, #tpu.memory_space<vmem>>, vector<16x4xbf16>
    %cst_7 = arith.constant dense<0.000000e+00> : vector<64x4xf32>
    %6 = tpu.matmul %3, %5, %cst_7 {dimension_numbers = #tpu.dot_dimension_numbers<[1], [0], [0], [1], [0, 0, 1, 1], [], []>} : vector<64x16xbf16>, vector<16x4xbf16>, vector<64x4xf32> -> vector<64x4xf32>
    %c0_8 = arith.constant 0 : index
    %c0_9 = arith.constant 0 : index
    %7 = vector.load %arg5[%c0_8, %c0_9] : memref<64x4xf32, #tpu.memory_space<vmem>>, vector<64x4xf32>
    tpu.vector_store %arg5[%c0_8, %c0_9], %6 {strides = array<i32>} : memref<64x4xf32, #tpu.memory_space<vmem>>, vector<64x4xf32>,
    return
  }
  func.func @transform_0(%arg0: i32) -> (i32, i32) {
    %c0_i32 = arith.constant 0 : i32
    %c0_i32_0 = arith.constant 0 : i32
    return %arg0, %c0_i32 : i32, i32
  }
  func.func @transform_1(%arg0: i32) -> (i32, i32) {
    %c0_i32 = arith.constant 0 : i32
    %c0_i32_0 = arith.constant 0 : i32
    %c0_i32_1 = arith.constant 0 : i32
    return %c0_i32, %c0_i32_0 : i32, i32
  }
  func.func @transform_2(%arg0: i32) -> (i32, i32) {
    %c0_i32 = arith.constant 0 : i32
    %c0_i32_0 = arith.constant 0 : i32
    %c0_i32_1 = arith.constant 0 : i32
    return %c0_i32, %c0_i32_0 : i32, i32
  }
  func.func @transform_3(%arg0: i32) -> (i32, i32) {
    %c0_i32 = arith.constant 0 : i32
    %c0_i32_0 = arith.constant 0 : i32
    return %arg0, %c0_i32 : i32, i32
  }
  func.func @transform_4(%arg0: i32) -> (i32, i32) {
    %c0_i32 = arith.constant 0 : i32
    %c0_i32_0 = arith.constant 0 : i32
    return %arg0, %c0_i32 : i32, i32
  }
}

module attributes {stable_mosaic.version = 11 : i64} {
  func.func @kernel(%arg0: i32, %arg1: memref<2x128xf32, #tpu.memory_space<vmem>>, %arg2: memref<64x2xf32, #tpu.memory_space<vmem>>, %arg3: memref<64x128xbf16, #tpu.memory_space<vmem>>, %arg4: memref<256x18xbf16, #tpu.memory_space<vmem>>, %arg5: memref<1x16xf32, #tpu.memory_space<vmem>>, %arg6: memref<64x8xf32, #tpu.memory_space<vmem>>) attributes {dimension_semantics = [#tpu.dimension_semantics<parallel>], iteration_bounds = array<i64: 2>, scalar_prefetch = 0 : i64, scratch_operands = 0 : i64, tpu.core_type = #tpu.core_type<tc>, window_params = [{pipeline_mode = #tpu.pipeline_mode<synchronous>, transform_indices = @transform_0, window_bounds = array<i64: 2, 128>}, {transform_indices = @transform_1, window_bounds = array<i64: 64, 2>}, {transform_indices = @transform_2, window_bounds = array<i64: 64, 128>}, {pipeline_mode = #tpu.pipeline_mode<synchronous>, transform_indices = @transform_3, window_bounds = array<i64: 256, 18>}, {pipeline_mode = #tpu.pipeline_mode<synchronous>, transform_indices = @transform_4, window_bounds = array<i64: 1, 16>}, {transform_indices = @transform_5, window_bounds = array<i64: 64, 8>}]} {
    %c0 = arith.constant 0 : index
    %c0_0 = arith.constant 0 : index
    %0 = vector.load %arg1[%c0, %c0_0] : memref<2x128xf32, #tpu.memory_space<vmem>>, vector<2x128xf32>
    %c0_1 = arith.constant 0 : index
    %c0_2 = arith.constant 0 : index
    %1 = vector.load %arg2[%c0_1, %c0_2] : memref<64x2xf32, #tpu.memory_space<vmem>>, vector<64x2xf32>
    %c0_3 = arith.constant 0 : index
    %c0_4 = arith.constant 0 : index
    %2 = vector.load %arg3[%c0_3, %c0_4] : memref<64x128xbf16, #tpu.memory_space<vmem>>, vector<64x128xbf16>
    %3 = vector.extract_strided_slice %1 {offsets = [0, 0], sizes = [64, 1], strides = [1, 1]} : vector<64x2xf32> to vector<64x1xf32>
    %4 = vector.extract_strided_slice %0 {offsets = [0, 0], sizes = [1, 128], strides = [1, 1]} : vector<2x128xf32> to vector<1x128xf32>
    %5 = vector.broadcast %3 : vector<64x1xf32> to vector<64x128xf32>
    %6 = vector.broadcast %4 : vector<1x128xf32> to vector<64x128xf32>
    %7 = arith.addf %5, %6 : vector<64x128xf32>
    %cst = arith.constant 0.000000e+00 : f32
    %8 = vector.broadcast %cst : f32 to vector<64x128xf32>
    %9 = arith.cmpf ogt, %7, %8 : vector<64x128xf32>
    %cst_5 = arith.constant 2.000000e-01 : f32
    %10 = vector.broadcast %cst_5 : f32 to vector<64x128xf32>
    %11 = arith.mulf %10, %7 : vector<64x128xf32>
    %12 = arith.select %9, %7, %11 : vector<64x128xi1>, vector<64x128xf32>
    %13 = arith.extf %2 : vector<64x128xbf16> to vector<64x128xf32>
    %14 = arith.addf %12, %13 : vector<64x128xf32>
    %cst_6 = arith.constant dense<0xFF800000> : vector<64xf32>
    %15 = vector.multi_reduction <maximumf>, %14, %cst_6 [1] : vector<64x128xf32> to vector<64xf32>
    %16 = vector.shape_cast %15 : vector<64xf32> to vector<64x1xf32>
    %17 = vector.broadcast %16 : vector<64x1xf32> to vector<64x128xf32>
    %18 = arith.subf %14, %17 : vector<64x128xf32>
    %19 = arith.truncf %18 : vector<64x128xf32> to vector<64x128xbf16>
    %20 = math.exp %19 : vector<64x128xbf16>
    %21 = vector.extract_strided_slice %1 {offsets = [0, 1], sizes = [64, 1], strides = [1, 1]} : vector<64x2xf32> to vector<64x1xf32>
    %22 = vector.extract_strided_slice %0 {offsets = [1, 0], sizes = [1, 128], strides = [1, 1]} : vector<2x128xf32> to vector<1x128xf32>
    %23 = vector.broadcast %21 : vector<64x1xf32> to vector<64x128xf32>
    %24 = vector.broadcast %22 : vector<1x128xf32> to vector<64x128xf32>
    %25 = arith.addf %23, %24 : vector<64x128xf32>
    %cst_7 = arith.constant 0.000000e+00 : f32
    %26 = vector.broadcast %cst_7 : f32 to vector<64x128xf32>
    %27 = arith.cmpf ogt, %25, %26 : vector<64x128xf32>
    %cst_8 = arith.constant 2.000000e-01 : f32
    %28 = vector.broadcast %cst_8 : f32 to vector<64x128xf32>
    %29 = arith.mulf %28, %25 : vector<64x128xf32>
    %30 = arith.select %27, %25, %29 : vector<64x128xi1>, vector<64x128xf32>
    %31 = arith.extf %2 : vector<64x128xbf16> to vector<64x128xf32>
    %32 = arith.addf %30, %31 : vector<64x128xf32>
    %cst_9 = arith.constant dense<0xFF800000> : vector<64xf32>
    %33 = vector.multi_reduction <maximumf>, %32, %cst_9 [1] : vector<64x128xf32> to vector<64xf32>
    %34 = vector.shape_cast %33 : vector<64xf32> to vector<64x1xf32>
    %35 = vector.broadcast %34 : vector<64x1xf32> to vector<64x128xf32>
    %36 = arith.subf %32, %35 : vector<64x128xf32>
    %37 = arith.truncf %36 : vector<64x128xf32> to vector<64x128xbf16>
    %38 = math.exp %37 : vector<64x128xbf16>
    %39 = tpu.concatenate %20, %38 in 1 : vector<64x128xbf16>, vector<64x128xbf16> -> vector<64x256xbf16>
    %c0_10 = arith.constant 0 : index
    %c0_11 = arith.constant 0 : index
    %40 = vector.load %arg4[%c0_10, %c0_11] : memref<256x18xbf16, #tpu.memory_space<vmem>>, vector<256x18xbf16>
    %cst_12 = arith.constant dense<0.000000e+00> : vector<64x18xf32>
    %41 = tpu.matmul %39, %40, %cst_12 {dimension_numbers = #tpu.dot_dimension_numbers<[1], [0], [0], [1], [0, 0, 1, 1], [], []>} : vector<64x256xbf16>, vector<256x18xbf16>, vector<64x18xf32> -> vector<64x18xf32>
    %42 = vector.extract_strided_slice %41 {offsets = [0, 0], sizes = [64, 16], strides = [1, 1]} : vector<64x18xf32> to vector<64x16xf32>
    %43 = vector.extract_strided_slice %41 {offsets = [0, 16], sizes = [64, 2], strides = [1, 1]} : vector<64x18xf32> to vector<64x2xf32>
    %44 = tpu.reciprocal %43 {approx = true} : vector<64x2xf32> -> vector<64x2xf32>
    %45 = vector.extract_strided_slice %42 {offsets = [0, 0], sizes = [64, 8], strides = [1, 1]} : vector<64x16xf32> to vector<64x8xf32>
    %46 = vector.extract_strided_slice %44 {offsets = [0, 0], sizes = [64, 1], strides = [1, 1]} : vector<64x2xf32> to vector<64x1xf32>
    %47 = vector.broadcast %46 : vector<64x1xf32> to vector<64x8xf32>
    %48 = arith.mulf %45, %47 : vector<64x8xf32>
    %49 = vector.extract_strided_slice %42 {offsets = [0, 8], sizes = [64, 8], strides = [1, 1]} : vector<64x16xf32> to vector<64x8xf32>
    %50 = vector.extract_strided_slice %44 {offsets = [0, 1], sizes = [64, 1], strides = [1, 1]} : vector<64x2xf32> to vector<64x1xf32>
    %51 = vector.broadcast %50 : vector<64x1xf32> to vector<64x8xf32>
    %52 = arith.mulf %49, %51 : vector<64x8xf32>
    %53 = tpu.concatenate %48, %52 in 1 : vector<64x8xf32>, vector<64x8xf32> -> vector<64x16xf32>
    %c0_13 = arith.constant 0 : index
    %c0_14 = arith.constant 0 : index
    %54 = vector.load %arg5[%c0_13, %c0_14] : memref<1x16xf32, #tpu.memory_space<vmem>>, vector<1x16xf32>
    %55 = vector.broadcast %54 : vector<1x16xf32> to vector<64x16xf32>
    %56 = arith.addf %53, %55 : vector<64x16xf32>
    %57 = vector.extract_strided_slice %56 {offsets = [0, 0], sizes = [64, 8], strides = [1, 1]} : vector<64x16xf32> to vector<64x8xf32>
    %58 = vector.extract_strided_slice %56 {offsets = [0, 8], sizes = [64, 8], strides = [1, 1]} : vector<64x16xf32> to vector<64x8xf32>
    %59 = arith.addf %57, %58 : vector<64x8xf32>
    %cst_15 = arith.constant 5.000000e-01 : f32
    %60 = vector.broadcast %cst_15 : f32 to vector<64x8xf32>
    %61 = arith.mulf %59, %60 : vector<64x8xf32>
    %c0_16 = arith.constant 0 : index
    %c0_17 = arith.constant 0 : index
    %62 = vector.load %arg6[%c0_16, %c0_17] : memref<64x8xf32, #tpu.memory_space<vmem>>, vector<64x8xf32>
    tpu.vector_store %arg6[%c0_16, %c0_17], %61 {strides = array<i32>} : memref<64x8xf32, #tpu.memory_space<vmem>>, vector<64x8xf32>,
    return
  }
  func.func @transform_0(%arg0: i32) -> (i32, i32) {
    %c0_i32 = arith.constant 0 : i32
    %c0_i32_0 = arith.constant 0 : i32
    %c0_i32_1 = arith.constant 0 : i32
    return %c0_i32, %c0_i32_0 : i32, i32
  }
  func.func @transform_1(%arg0: i32) -> (i32, i32) {
    %c0_i32 = arith.constant 0 : i32
    %c0_i32_0 = arith.constant 0 : i32
    return %arg0, %c0_i32 : i32, i32
  }
  func.func @transform_2(%arg0: i32) -> (i32, i32) {
    %c0_i32 = arith.constant 0 : i32
    %c0_i32_0 = arith.constant 0 : i32
    return %arg0, %c0_i32 : i32, i32
  }
  func.func @transform_3(%arg0: i32) -> (i32, i32) {
    %c0_i32 = arith.constant 0 : i32
    %c0_i32_0 = arith.constant 0 : i32
    %c0_i32_1 = arith.constant 0 : i32
    return %c0_i32, %c0_i32_0 : i32, i32
  }
  func.func @transform_4(%arg0: i32) -> (i32, i32) {
    %c0_i32 = arith.constant 0 : i32
    %c0_i32_0 = arith.constant 0 : i32
    %c0_i32_1 = arith.constant 0 : i32
    return %c0_i32, %c0_i32_0 : i32, i32
  }
  func.func @transform_5(%arg0: i32) -> (i32, i32) {
    %c0_i32 = arith.constant 0 : i32
    %c0_i32_0 = arith.constant 0 : i32
    return %arg0, %c0_i32 : i32, i32
  }
}

</mosaic_0001>

<llo_original>
// kernel: mul.60
$region0: #{mul.60}
  %s0 = inlined_call_operand.vmem [shape: bf16[4,4,16], index: 0, kind: input, shape index: {}]
  %s1 = inlined_call_operand.vmem [shape: bf16[4,64], index: 1, kind: output, shape index: {}]
  $region1: #{mul.60} parent=0
    #allocation0 [shape = 'u8[4096]{0}', space=vmem, size = 0x1000, scoped, tag = 'scoped mem for output reshape']
    #allocation1 [shape = 'u8[16384]{0}', space=vmem, size = 0x4000, scoped, tag = 'scoped mem for input reshape']
    %s3 = smul.u32 2, 2
    %s4 = sshllo.u32 0, %s3
    %s5 = smul.addr 2, 3
    %s6 = scalar_lea.vmem %s0, %s5
    %s7 = sshrl.u32 %s4, 1
    %s8 = sor.u32 %s4, %s7
    %s9 = sand.u32 %s8, 85
    %s10 = sshrl.u32 %s9, 1
    %s11 = sor.u32 %s9, %s10
    %s12 = sand.u32 51, %s11
    %s13 = sshrl.u32 %s12, 2
    %s14 = sor.u32 %s12, %s13
    %s15 = sand.u32 15, %s14
    %v16 = vld [vmem:[%s6] sm:%s15]
    %v17 = vunpack.c.l.bf16 %v16
    %v18 = vunpack.c.h.bf16 %v16
    %s19 = scalar_lea.vmem [#allocation1], 24
    %20 = vst [vmem:[%s19] sm:%s4] %v17
    %s21 = smul.addr 2, 2
    %s22 = scalar_lea.vmem %s0, %s21
    %s23 = sshrl.u32 %s4, 1
    %s24 = sor.u32 %s4, %s23
    %s25 = sand.u32 %s24, 85
    %s26 = sshrl.u32 %s25, 1
    %s27 = sor.u32 %s25, %s26
    %s28 = sand.u32 51, %s27
    %s29 = sshrl.u32 %s28, 2
    %s30 = sor.u32 %s28, %s29
    %s31 = sand.u32 15, %s30
    %v32 = vld [vmem:[%s22] sm:%s31]
    %v33 = vunpack.c.l.bf16 %v32
    %v34 = vunpack.c.h.bf16 %v32
    %s35 = scalar_lea.vmem [#allocation1], 16
    %36 = vst [vmem:[%s35] sm:%s4] %v33
    %s37 = scalar_lea.vmem %s0, 2
    %s38 = sshrl.u32 %s4, 1
    %s39 = sor.u32 %s4, %s38
    %s40 = sand.u32 %s39, 85
    %s41 = sshrl.u32 %s40, 1
    %s42 = sor.u32 %s40, %s41
    %s43 = sand.u32 51, %s42
    %s44 = sshrl.u32 %s43, 2
    %s45 = sor.u32 %s43, %s44
    %s46 = sand.u32 15, %s45
    %v47 = vld [vmem:[%s37] sm:%s46]
    %v48 = vunpack.c.l.bf16 %v47
    %v49 = vunpack.c.h.bf16 %v47
    %s50 = scalar_lea.vmem [#allocation1], 8
    %51 = vst [vmem:[%s50] sm:%s4] %v48
    %s52 = sshrl.u32 %s4, 1
    %s53 = sor.u32 %s4, %s52
    %s54 = sand.u32 %s53, 85
    %s55 = sshrl.u32 %s54, 1
    %s56 = sor.u32 %s54, %s55
    %s57 = sand.u32 51, %s56
    %s58 = sshrl.u32 %s57, 2
    %s59 = sor.u32 %s57, %s58
    %s60 = sand.u32 15, %s59
    %v61 = vld [vmem:[%s0] sm:%s60]
    %v62 = vunpack.c.l.bf16 %v61
    %v63 = vunpack.c.h.bf16 %v61
    %64 = vst [vmem:[#allocation1] sm:%s4] %v62
    %v65 = vld [vmem:[#allocation1] ss:$8 sm:$0xf]
    %vm66 = vcmask 130048
    %67 = vst.msk [vmem:[#allocation0] sm:$0xf] %vm66, %v65
    %s68 = scalar_lea.vmem [#allocation1], 3
    %v69 = vld [vmem:[%s68] ss:$8 sm:$0xf]
    %70 = vrot.lane.b32.xlu0 %v69, 48
    %v71 = vpop.permute.xlu0 %70
    %vm72 = vcmask 523648
    %73 = vst.msk [vmem:[#allocation0] sm:$0xf] %vm72, %v71
    %s74 = scalar_lea.vmem [#allocation1], 2
    %v75 = vld [vmem:[%s74] ss:$8 sm:$0xf]
    %76 = vrot.lane.b32.xlu0 %v75, 32
    %v77 = vpop.permute.xlu0 %76
    %vm78 = vcmask 392448
    %79 = vst.msk [vmem:[#allocation0] sm:$0xf] %vm78, %v77
    %s80 = scalar_lea.vmem [#allocation1], 1
    %v81 = vld [vmem:[%s80] ss:$8 sm:$0xf]
    %82 = vrot.lane.b32.xlu0 %v81, 16
    %v83 = vpop.permute.xlu0 %82
    %vm84 = vcmask 261248
    %85 = vst.msk [vmem:[#allocation0] sm:$0xf] %vm84, %v83
    %s87 = smul.u32 2, 2
    %s88 = sshllo.u32 0, %s87
    %s89 = sshrl.u32 %s87, 1
    %v90 = vld [vmem:[#allocation0] sm:%s88]
    %v91 = vpack.c.bf16 0.0, %v90
    %s92 = sshllo.u32 0, %s89
    %93 = vst [vmem:[%s1] sm:%s92] %v91

// kernel: gat_forward.4
$region0: #{gat_forward.4}
  #allocation0 [shape = 'u32[]', space=smem, size = 0x4, offset = 0x4, fixed_abs, tag = 'smem constant byte address 0x4 - core index']
  #allocation1 [shape = 'u32[144,128]{1,0:T(1,128)}', space=vmem, size = 0x12000, scoped, tag = 'internal scratch']
  %s0 = inlined_call_operand.vmem [shape: f32[128,32], index: 0, kind: input, shape index: {}]
  %s1 = inlined_call_operand.vmem [shape: bf16[32,64], index: 1, kind: input, shape index: {}]
  %s2 = inlined_call_operand.vmem [shape: bf16[64,8], index: 2, kind: input, shape index: {}]
  %s3 = inlined_call_operand.vmem [shape: bf16[128,64], index: 3, kind: output, shape index: {0}]
  %s4 = inlined_call_operand.vmem [shape: f32[128,8], index: 4, kind: output, shape index: {1}]
  %5 = xla_tuple %s3, %s4
  %s6 = sld [smem:[#allocation0]]
  $region53: #{gat_forward.4} parent=0
    _
  %s8 = ssub.s32 1, %s6
  %s9 = scalar_select 0, %s8, %s6
  loop: start=0, step=1, limit=4
  $region2: #{gat_forward.4} parent=0 // loop_pre_header
    _
  $region3: #{gat_forward.4} parent=0 // loop_header
    %s11 = sphi 0, %s15
    %p12 = scmp.ge.s32.totalorder %s11, 4
    %s21 = sphi 0, %s23
    %s24 = sphi 0, %s21
    %s25 = sphi 0, %s24
    %s41 = sphi 0, %s25
    %s45 = sphi 0, %s45
    %s47 = sphi 0, %s45
    %s48 = sphi 0, %s47
    %s62 = sphi 0, %s48
    %s66 = sphi 0, %s66
    %s68 = sphi 0, %s66
    %s69 = sphi 0, %s68
    %s83 = sphi 0, %s69
    %s89 = sphi 0, %s91
    %s92 = sphi 0, %s89
    %s93 = sphi 0, %s92
    %s109 = sphi 0, %s93
    %s115 = sphi 0, %s117
    %s118 = sphi 0, %s115
    %s119 = sphi 0, %s118
    %s135 = sphi 0, %s119
  $region4: #{gat_forward.4} parent=0 // loop_header_branch
    %14 = sbr.rel (%p12) target = $region8
  $region5: #{gat_forward.4} parent=0 // loop_body
    %s16 = ssub.s32 %s11, 1
    %s17 = ssub.s32 %s11, 2
    %s18 = sadd.s32 %s11, 1
    %s19 = ssub.s32 %s11, %s18
    %p20 = scmp.eq.s32.totalorder %s19, 0
    %s22 = sadd.s32 %s21, 1
    %s23 = scalar_select %p20, %s21, %s22
    %p26 = pneg %p20
    %p27 = scmp.eq.s32.totalorder %s11, 1
    %p28 = por %p26, %p27
    %p29 = scmp.ne.s32.totalorder %s21, %s24
    %p30 = scmp.eq.s32.totalorder %s11, 0
    %p31 = por %p29, %p30
    %p32 = scmp.ne.s32.totalorder %s21, %s24
    %p33 = scmp.eq.s32.totalorder %s16, 1
    %p34 = por %p32, %p33
    %p35 = scmp.ne.s32.totalorder %s24, %s25
    %p36 = scmp.eq.s32.totalorder %s16, 0
    %p37 = por %p35, %p36
    %p38 = scmp.ne.s32.totalorder %s24, %s25
    %p39 = scmp.eq.s32.totalorder %s17, 1
    %p40 = por %p38, %p39
    %p42 = scmp.ne.s32.totalorder %s25, %s41
    %p43 = scmp.eq.s32.totalorder %s17, 0
    %p44 = por %p42, %p43
    %s46 = sadd.s32 %s45, 1
    %p49 = scmp.eq.s32.totalorder %s11, 1
    %p50 = scmp.ne.s32.totalorder %s45, %s47
    %p51 = scmp.eq.s32.totalorder %s11, 0
    %p52 = por %p50, %p51
    %p53 = scmp.ne.s32.totalorder %s45, %s47
    %p54 = scmp.eq.s32.totalorder %s16, 1
    %p55 = por %p53, %p54
    %p56 = scmp.ne.s32.totalorder %s47, %s48
    %p57 = scmp.eq.s32.totalorder %s16, 0
    %p58 = por %p56, %p57
    %p59 = scmp.ne.s32.totalorder %s47, %s48
    %p60 = scmp.eq.s32.totalorder %s17, 1
    %p61 = por %p59, %p60
    %p63 = scmp.ne.s32.totalorder %s48, %s62
    %p64 = scmp.eq.s32.totalorder %s17, 0
    %p65 = por %p63, %p64
    %s67 = sadd.s32 %s66, 1
    %p70 = scmp.eq.s32.totalorder %s11, 1
    %p71 = scmp.ne.s32.totalorder %s66, %s68
    %p72 = scmp.eq.s32.totalorder %s11, 0
    %p73 = por %p71, %p72
    %p74 = scmp.ne.s32.totalorder %s66, %s68
    %p75 = scmp.eq.s32.totalorder %s16, 1
    %p76 = por %p74, %p75
    %p77 = scmp.ne.s32.totalorder %s68, %s69
    %p78 = scmp.eq.s32.totalorder %s16, 0
    %p79 = por %p77, %p78
    %p80 = scmp.ne.s32.totalorder %s68, %s69
    %p81 = scmp.eq.s32.totalorder %s17, 1
    %p82 = por %p80, %p81
    %p84 = scmp.ne.s32.totalorder %s69, %s83
    %p85 = scmp.eq.s32.totalorder %s17, 0
    %p86 = por %p84, %p85
    %s87 = ssub.s32 %s11, %s18
    %p88 = scmp.eq.s32.totalorder %s87, 0
    %s90 = sadd.s32 %s89, 1
    %s91 = scalar_select %p88, %s89, %s90
    %p94 = pneg %p88
    %p95 = scmp.eq.s32.totalorder %s11, 1
    %p96 = por %p94, %p95
    %p97 = scmp.ne.s32.totalorder %s89, %s92
    %p98 = scmp.eq.s32.totalorder %s11, 0
    %p99 = por %p97, %p98
    %p100 = scmp.ne.s32.totalorder %s89, %s92
    %p101 = scmp.eq.s32.totalorder %s16, 1
    %p102 = por %p100, %p101
    %p103 = scmp.ne.s32.totalorder %s92, %s93
    %p104 = scmp.eq.s32.totalorder %s16, 0
    %p105 = por %p103, %p104
    %p106 = scmp.ne.s32.totalorder %s92, %s93
    %p107 = scmp.eq.s32.totalorder %s17, 1
    %p108 = por %p106, %p107
    %p110 = scmp.ne.s32.totalorder %s93, %s109
    %p111 = scmp.eq.s32.totalorder %s17, 0
    %p112 = por %p110, %p111
    %s113 = ssub.s32 %s11, %s18
    %p114 = scmp.eq.s32.totalorder %s113, 0
    %s116 = sadd.s32 %s115, 1
    %s117 = scalar_select %p114, %s115, %s116
    %p120 = pneg %p114
    %p121 = scmp.eq.s32.totalorder %s11, 1
    %p122 = por %p120, %p121
    %p123 = scmp.ne.s32.totalorder %s115, %s118
    %p124 = scmp.eq.s32.totalorder %s11, 0
    %p125 = por %p123, %p124
    %p126 = scmp.ne.s32.totalorder %s115, %s118
    %p127 = scmp.eq.s32.totalorder %s16, 1
    %p128 = por %p126, %p127
    %p129 = scmp.ne.s32.totalorder %s118, %s119
    %p130 = scmp.eq.s32.totalorder %s16, 0
    %p131 = por %p129, %p130
    %p132 = scmp.ne.s32.totalorder %s118, %s119
    %p133 = scmp.eq.s32.totalorder %s17, 1
    %p134 = por %p132, %p133
    %p136 = scmp.ne.s32.totalorder %s119, %s135
    %p137 = scmp.eq.s32.totalorder %s17, 0
    %p138 = por %p136, %p137
    %p139 = scmp.le.s32.totalorder 1, %s11
    %p140 = scmp.lt.s32.totalorder %s11, 3
    %p141 = pnand %p139, %p140
    %p142 = pneg %p141
    // Predicated region
    $region9: #{gat_forward.4} parent=5 // pred_check
      _
    $region10: #{gat_forward.4} parent=5 // pred_check_branch
      %144 = sbr.rel (%p141) target = $region12
    $region11: #{gat_forward.4} parent=5 // pred_region
      %s145 = ssub.s32 %s11, 1
      // Predicated region
      $region13: #{gat_forward.4} parent=11 // pred_check
        %p146 = pneg %p58
      $region14: #{gat_forward.4} parent=11 // pred_check_branch
        %148 = sbr.rel (%p146) target = $region16
      $region15: #{gat_forward.4} parent=11 // pred_region
        _
      $region16: #{gat_forward.4} parent=11 // pred_fallthru
        _
      // Predicated region
      $region17: #{gat_forward.4} parent=11 // pred_check
        %p149 = pneg %p79
      $region18: #{gat_forward.4} parent=11 // pred_check_branch
        %151 = sbr.rel (%p149) target = $region20
      $region19: #{gat_forward.4} parent=11 // pred_region
        _
      $region20: #{gat_forward.4} parent=11 // pred_fallthru
        _
    $region12: #{gat_forward.4} parent=5 // pred_fallthru
      _
    %p152 = scmp.lt.s32.totalorder %s11, 2
    // Predicated region
    $region21: #{gat_forward.4} parent=5 // pred_check
      %p153 = pneg %p152
    $region22: #{gat_forward.4} parent=5 // pred_check_branch
      %155 = sbr.rel (%p153) target = $region24
    $region23: #{gat_forward.4} parent=5 // pred_region
      // Predicated region
      $region25: #{gat_forward.4} parent=23 // pred_check
        %p156 = pneg %p31
      $region26: #{gat_forward.4} parent=23 // pred_check_branch
        %158 = sbr.rel (%p156) target = $region28
      $region27: #{gat_forward.4} parent=23 // pred_region
        %s159 = smul.u32 8, %s11
        %p160 = scmp.lt.s32.totalorder %s159, 15
        %s161 = scalar_select %p160, %s159, 15
        %s162 = smul.addr %s161, 8
        %s163 = scalar_lea.vmem %s0, %s162
        %s164 = smul.u32 8, %s11
      $region28: #{gat_forward.4} parent=23 // pred_fallthru
        _
    $region24: #{gat_forward.4} parent=5 // pred_fallthru
      _
    %p165 = scmp.le.s32.totalorder 1, %s11
    %p166 = scmp.lt.s32.totalorder %s11, 3
    %p167 = pnand %p165, %p166
    %p168 = pneg %p167
    // Predicated region
    $region29: #{gat_forward.4} parent=5 // pred_check
      _
    $region30: #{gat_forward.4} parent=5 // pred_check_branch
      %170 = sbr.rel (%p167) target = $region32
    $region31: #{gat_forward.4} parent=5 // pred_region
      %s171 = ssub.s32 %s11, 1
      %s172 = smul.u32 8, %s16
      %p173 = scmp.lt.s32.totalorder %s172, 15
      %s174 = scalar_select %p173, %s172, 15
      %s175 = smul.addr %s174, 8
      %s176 = scalar_lea.vmem %s0, %s175
      %p177 = pneg %p37
      %p178 = pneg %p34
      %p179 = pneg %p58
      %p180 = pneg %p55
      %p181 = pneg %p79
      %p182 = pneg %p76
      %p183 = pneg %p105
      %p184 = pneg %p102
      %s185 = smul.u32 8, %s16
      %p186 = scmp.lt.s32.totalorder %s185, 15
      %s187 = scalar_select %p186, %s185, 15
      %s188 = smul.addr %s187, 4
      %s189 = scalar_lea.vmem %s3, %s188
      %p190 = pneg %p131
      %p191 = pneg %p128
      %s192 = smul.u32 8, %s16
      %p193 = scmp.lt.s32.totalorder %s192, 15
      %s194 = scalar_select %p193, %s192, 15
      %s195 = smul.addr %s194, 8
      %s196 = scalar_lea.vmem %s4, %s195
      %s197 = smul.u32 8, %s16
      %p198 = scmp.lt.s32.totalorder %s197, 15
      %s199 = scalar_select %p198, %s197, 15
      %s200 = smul.addr %s199, 8
      %s201 = scalar_lea.vmem %s0, %s200
      %s202 = smul.u32 8, %s16
      %s203 = smul.u32 8, %s16
      %p204 = scmp.lt.s32.totalorder %s203, 15
      %s205 = scalar_select %p204, %s203, 15
      %s206 = smul.addr %s205, 4
      %s207 = scalar_lea.vmem %s3, %s206
      %s208 = smul.u32 8, %s16
      %s209 = smul.u32 8, %s16
      %p210 = scmp.lt.s32.totalorder %s209, 15
      %s211 = scalar_select %p210, %s209, 15
      %s212 = smul.addr %s211, 8
      %s213 = scalar_lea.vmem %s4, %s212
      %s214 = smul.u32 8, %s16
      %v216 = vld [vmem:[%s201] sm:$0xff]
      %v217 = vld [vmem:[%s201 + $0x8] sm:$0xff]
      %v218 = vld [vmem:[%s201 + $0x10] sm:$0xff]
      %v219 = vld [vmem:[%s201 + $0x18] sm:$0xff]
      %v220 = vld [vmem:[%s201 + $0x20] sm:$0xff]
      %v221 = vld [vmem:[%s201 + $0x28] sm:$0xff]
      %v222 = vld [vmem:[%s201 + $0x30] sm:$0xff]
      %v223 = vld [vmem:[%s201 + $0x38] sm:$0xff]
      %v224 = vpack.c.bf16 %v217, %v216
      %v225 = vpack.c.bf16 %v219, %v218
      %v226 = vpack.c.bf16 %v221, %v220
      %v227 = vpack.c.bf16 %v223, %v222
      %v228 = vld [vmem:[%s1] sm:$0xf]
      %v229 = vld [vmem:[%s1 + $0x4] sm:$0xf]
      %v230 = vld [vmem:[%s1 + $0x8] sm:$0xf]
      %v231 = vld [vmem:[%s1 + $0xc] sm:$0xf]
      %v236 = vunpack.c.l.b16 %v228
      %v237 = vunpack.c.l.b16 %v229
      %v238 = vunpack.c.l.b16 %v230
      %v239 = vunpack.c.l.b16 %v231
      %v240 = vpack.c.b16 %v237, %v236
      %v241 = vpack.c.b16 %v239, %v238
      %vm244 = vcmask 261120
      %v246 = vsel %vm244, %v224, 0
      %v249 = vsel %vm244, %v225, 0
      %v252 = vsel %vm244, %v226, 0
      %v255 = vsel %vm244, %v227, 0
      %257 = vmatprep.subr.bf16.mxu0 0
      %258 = vmatpush1.bf16.msra.mxu0 %v240
      %259 = vmatprep.subr.bf16.mxu0 0
      %260 = vmatpush1.bf16.msra.mxu0 %v241
      %261 = vmatprep.subr.bf16.mxu0 0
      %262 = vmatpush1.bf16.msra.mxu0 0
      %263 = vmatprep.subr.bf16.mxu0 0
      %264 = vmatpush1.bf16.msra.mxu0 0
      %265 = vmatprep.subr.bf16.mxu0 0
      %266 = vmatpush1.bf16.msra.mxu0 0
      %267 = vmatprep.subr.bf16.mxu0 0
      %268 = vmatpush1.bf16.msra.mxu0 0
      %269 = vmatprep.subr.bf16.mxu0 0
      %270 = vmatpush1.bf16.msra.mxu0 0
      %271 = vmatprep.subr.bf16.mxu0 0
      %272 = vmatpush1.bf16.msra.mxu0 0
      %273 = vmatprep.subr.bf16.mxu0 0
      %274 = vmatpush1.bf16.msra.mxu0 0
      %275 = vmatprep.subr.bf16.mxu0 0
      %276 = vmatpush1.bf16.msra.mxu0 0
      %277 = vmatprep.subr.bf16.mxu0 0
      %278 = vmatpush1.bf16.msra.mxu0 0
      %279 = vmatprep.subr.bf16.mxu0 0
      %280 = vmatpush1.bf16.msra.mxu0 0
      %281 = vmatprep.subr.bf16.mxu0 0
      %282 = vmatpush1.bf16.msra.mxu0 0
      %283 = vmatprep.subr.bf16.mxu0 0
      %284 = vmatpush1.bf16.msra.mxu0 0
      %285 = vmatprep.subr.bf16.mxu0 0
      %286 = vmatpush1.bf16.msra.mxu0 0
      %287 = vmatprep.subr.bf16.mxu0 0
      %288 = vmatpush1.bf16.msra.mxu0 0
      %289 = vmatprep.mubr.bf16.mxu0 0
      %290 = vmatmul.mubr.bf16.gmra.mrb[0].mxu0 %v246
      %v291 = vpop.f32.mrb[0].mxu0
      %v292 = vadd.f32 0.0, %v291
      %v293 = vpop.f32.mrb[0].mxu0
      %v294 = vpop.f32.mrb[0].mxu0
      %v295 = vadd.f32 0.0, %v294
      %v296 = vpop.f32.mrb[0].mxu0
      %297 = vmatprep.mubr.bf16.mxu0 0
      %298 = vmatmul.mubr.bf16.gmra.mrb[0].mxu0 %v249
      %v299 = vpop.f32.mrb[0].mxu0
      %v300 = vadd.f32 0.0, %v299
      %v301 = vpop.f32.mrb[0].mxu0
      %v302 = vpop.f32.mrb[0].mxu0
      %v303 = vadd.f32 0.0, %v302
      %v304 = vpop.f32.mrb[0].mxu0
      %305 = vmatprep.mubr.bf16.mxu0 0
      %306 = vmatmul.mubr.bf16.gmra.mrb[0].mxu0 %v252
      %v307 = vpop.f32.mrb[0].mxu0
      %v308 = vadd.f32 0.0, %v307
      %v309 = vpop.f32.mrb[0].mxu0
      %v310 = vpop.f32.mrb[0].mxu0
      %v311 = vadd.f32 0.0, %v310
      %v312 = vpop.f32.mrb[0].mxu0
      %313 = vmatprep.mubr.bf16.mxu0 0
      %314 = vmatmul.mubr.bf16.gmra.mrb[0].mxu0 %v255
      %v315 = vpop.f32.mrb[0].mxu0
      %v316 = vadd.f32 0.0, %v315
      %v317 = vpop.f32.mrb[0].mxu0
      %v318 = vpop.f32.mrb[0].mxu0
      %v319 = vadd.f32 0.0, %v318
      %v320 = vpop.f32.mrb[0].mxu0
      %321 = vdwg.mxu0
      %v322 = vpack.c.bf16 %v295, %v292
      %v323 = vpack.c.bf16 %v303, %v300
      %v324 = vpack.c.bf16 %v311, %v308
      %v325 = vpack.c.bf16 %v319, %v316
      %v330 = vunpack.c.l.b16 %v322
      %v331 = vunpack.c.h.b16 %v322
      %v332 = vunpack.c.l.b16 %v323
      %v333 = vunpack.c.h.b16 %v323
      %v334 = vunpack.c.l.b16 %v324
      %v335 = vunpack.c.h.b16 %v324
      %v336 = vunpack.c.l.b16 %v325
      %v337 = vunpack.c.h.b16 %v325
      %v338 = vpack.c.b16 %v330, %v330
      %v339 = vpack.c.b16 %v331, %v331
      %v340 = vpack.c.b16 %v332, %v332
      %v341 = vpack.c.b16 %v333, %v333
      %v342 = vpack.c.b16 %v334, %v334
      %v343 = vpack.c.b16 %v335, %v335
      %v344 = vpack.c.b16 %v336, %v336
      %v345 = vpack.c.b16 %v337, %v337
      %vm354 = vcmask 519168
      %355 = vst.msk [vmem:[%s207] sm:$0xf] %vm354, %v338
      %356 = vst.msk [vmem:[%s207 + $0x4] sm:$0xf] %vm354, %v339
      %357 = vst.msk [vmem:[%s207 + $0x8] sm:$0xf] %vm354, %v340
      %358 = vst.msk [vmem:[%s207 + $0xc] sm:$0xf] %vm354, %v341
      %359 = vst.msk [vmem:[%s207 + $0x10] sm:$0xf] %vm354, %v342
      %360 = vst.msk [vmem:[%s207 + $0x14] sm:$0xf] %vm354, %v343
      %361 = vst.msk [vmem:[%s207 + $0x18] sm:$0xf] %vm354, %v344
      %362 = vst.msk [vmem:[%s207 + $0x1c] sm:$0xf] %vm354, %v345
      %v363 = vld [vmem:[%s2] sm:$0xf]
      %v364 = vld [vmem:[%s2 + $0x4] sm:$0xf]
      %v365 = vld [vmem:[%s2 + $0x8] sm:$0xf]
      %v366 = vld [vmem:[%s2 + $0xc] sm:$0xf]
      %v367 = vld [vmem:[%s2 + $0x10] sm:$0xf]
      %v368 = vld [vmem:[%s2 + $0x14] sm:$0xf]
      %v369 = vld [vmem:[%s2 + $0x18] sm:$0xf]
      %v370 = vld [vmem:[%s2 + $0x1c] sm:$0xf]
      %v379 = vunpack.c.l.b16 %v363
      %v380 = vunpack.c.l.b16 %v364
      %v381 = vunpack.c.l.b16 %v365
      %v382 = vunpack.c.l.b16 %v366
      %v383 = vunpack.c.l.b16 %v367
      %v384 = vunpack.c.l.b16 %v368
      %v385 = vunpack.c.l.b16 %v369
      %v386 = vunpack.c.l.b16 %v370
      %v387 = vpack.c.b16 %v380, %v379
      %v388 = vpack.c.b16 %v382, %v381
      %v389 = vpack.c.b16 %v384, %v383
      %v390 = vpack.c.b16 %v386, %v385
      %vm395 = vcmask 523264
      %v397 = vsel %vm395, %v322, 0
      %v400 = vsel %vm395, %v323, 0
      %v403 = vsel %vm395, %v324, 0
      %v406 = vsel %vm395, %v325, 0
      %408 = vmatprep.subr.bf16.mxu0 0
      %409 = vmatpush1.bf16.msra.mxu0 %v387
      %410 = vmatprep.subr.bf16.mxu0 0
      %411 = vmatpush1.bf16.msra.mxu0 %v388
      %412 = vmatprep.subr.bf16.mxu0 0
      %413 = vmatpush1.bf16.msra.mxu0 %v389
      %414 = vmatprep.subr.bf16.mxu0 0
      %415 = vmatpush1.bf16.msra.mxu0 %v390
      %416 = vmatprep.subr.bf16.mxu0 0
      %417 = vmatpush1.bf16.msra.mxu0 0
      %418 = vmatprep.subr.bf16.mxu0 0
      %419 = vmatpush1.bf16.msra.mxu0 0
      %420 = vmatprep.subr.bf16.mxu0 0
      %421 = vmatpush1.bf16.msra.mxu0 0
      %422 = vmatprep.subr.bf16.mxu0 0
      %423 = vmatpush1.bf16.msra.mxu0 0
      %424 = vmatprep.subr.bf16.mxu0 0
      %425 = vmatpush1.bf16.msra.mxu0 0
      %426 = vmatprep.subr.bf16.mxu0 0
      %427 = vmatpush1.bf16.msra.mxu0 0
      %428 = vmatprep.subr.bf16.mxu0 0
      %429 = vmatpush1.bf16.msra.mxu0 0
      %430 = vmatprep.subr.bf16.mxu0 0
      %431 = vmatpush1.bf16.msra.mxu0 0
      %432 = vmatprep.subr.bf16.mxu0 0
      %433 = vmatpush1.bf16.msra.mxu0 0
      %434 = vmatprep.subr.bf16.mxu0 0
      %435 = vmatpush1.bf16.msra.mxu0 0
      %436 = vmatprep.subr.bf16.mxu0 0
      %437 = vmatpush1.bf16.msra.mxu0 0
      %438 = vmatprep.subr.bf16.mxu0 0
      %439 = vmatpush1.bf16.msra.mxu0 0
      %440 = vmatprep.mubr.bf16.mxu0 0
      %441 = vmatmul.mubr.bf16.gmra.mrb[0].mxu0 %v397
      %v442 = vpop.f32.mrb[0].mxu0
      %v443 = vadd.f32 0.0, %v442
      %v444 = vpop.f32.mrb[0].mxu0
      %v445 = vpop.f32.mrb[0].mxu0
      %v446 = vadd.f32 0.0, %v445
      %v447 = vpop.f32.mrb[0].mxu0
      %448 = vmatprep.mubr.bf16.mxu0 0
      %449 = vmatmul.mubr.bf16.gmra.mrb[0].mxu0 %v400
      %v450 = vpop.f32.mrb[0].mxu0
      %v451 = vadd.f32 0.0, %v450
      %v452 = vpop.f32.mrb[0].mxu0
      %v453 = vpop.f32.mrb[0].mxu0
      %v454 = vadd.f32 0.0, %v453
      %v455 = vpop.f32.mrb[0].mxu0
      %456 = vmatprep.mubr.bf16.mxu0 0
      %457 = vmatmul.mubr.bf16.gmra.mrb[0].mxu0 %v403
      %v458 = vpop.f32.mrb[0].mxu0
      %v459 = vadd.f32 0.0, %v458
      %v460 = vpop.f32.mrb[0].mxu0
      %v461 = vpop.f32.mrb[0].mxu0
      %v462 = vadd.f32 0.0, %v461
      %v463 = vpop.f32.mrb[0].mxu0
      %464 = vmatprep.mubr.bf16.mxu0 0
      %465 = vmatmul.mubr.bf16.gmra.mrb[0].mxu0 %v406
      %v466 = vpop.f32.mrb[0].mxu0
      %v467 = vadd.f32 0.0, %v466
      %v468 = vpop.f32.mrb[0].mxu0
      %v469 = vpop.f32.mrb[0].mxu0
      %v470 = vadd.f32 0.0, %v469
      %v471 = vpop.f32.mrb[0].mxu0
      %472 = vdwg.mxu0
      %vm473 = vcmask 64512
      %474 = vst.msk [vmem:[%s213] sm:$0xff] %vm473, %v443
      %475 = vst.msk [vmem:[%s213 + $0x8] sm:$0xff] %vm473, %v446
      %476 = vst.msk [vmem:[%s213 + $0x10] sm:$0xff] %vm473, %v451
      %477 = vst.msk [vmem:[%s213 + $0x18] sm:$0xff] %vm473, %v454
      %478 = vst.msk [vmem:[%s213 + $0x20] sm:$0xff] %vm473, %v459
      %479 = vst.msk [vmem:[%s213 + $0x28] sm:$0xff] %vm473, %v462
      %480 = vst.msk [vmem:[%s213 + $0x30] sm:$0xff] %vm473, %v467
      %481 = vst.msk [vmem:[%s213 + $0x38] sm:$0xff] %vm473, %v470
      %s482 = smul.u32 8, %s16
      %p483 = scmp.lt.s32.totalorder %s482, 15
      %s484 = scalar_select %p483, %s482, 15
      %s485 = smul.addr %s484, 4
      %s486 = scalar_lea.vmem %s3, %s485
      %s487 = smul.u32 8, %s16
      %p488 = scmp.lt.s32.totalorder %s487, 15
      %s489 = scalar_select %p488, %s487, 15
      %s490 = smul.addr %s489, 8
      %s491 = scalar_lea.vmem %s4, %s490
      // Predicated region
      $region33: #{gat_forward.4} parent=31 // pred_check
        %p492 = pneg %p102
      $region34: #{gat_forward.4} parent=31 // pred_check_branch
        %494 = sbr.rel (%p492) target = $region36
      $region35: #{gat_forward.4} parent=31 // pred_region
        %s495 = smul.u32 8, %s16
      $region36: #{gat_forward.4} parent=31 // pred_fallthru
        _
      // Predicated region
      $region37: #{gat_forward.4} parent=31 // pred_check
        %p496 = pneg %p128
      $region38: #{gat_forward.4} parent=31 // pred_check_branch
        %498 = sbr.rel (%p496) target = $region40
      $region39: #{gat_forward.4} parent=31 // pred_region
        %s499 = smul.u32 8, %s16
      $region40: #{gat_forward.4} parent=31 // pred_fallthru
        _
    $region32: #{gat_forward.4} parent=5 // pred_fallthru
      _
    %p500 = scmp.le.s32.totalorder 2, %s11
    // Predicated region
    $region41: #{gat_forward.4} parent=5 // pred_check
      %p501 = pneg %p500
    $region42: #{gat_forward.4} parent=5 // pred_check_branch
      %503 = sbr.rel (%p501) target = $region44
    $region43: #{gat_forward.4} parent=5 // pred_region
      %s504 = ssub.s32 %s11, 2
      // Predicated region
      $region45: #{gat_forward.4} parent=43 // pred_check
        %p505 = pneg %p108
      $region46: #{gat_forward.4} parent=43 // pred_check_branch
        %507 = sbr.rel (%p505) target = $region48
      $region47: #{gat_forward.4} parent=43 // pred_region
        %s508 = smul.u32 8, %s17
        %p509 = scmp.lt.s32.totalorder %s508, 15
        %s510 = scalar_select %p509, %s508, 15
        %s511 = smul.addr %s510, 4
        %s512 = scalar_lea.vmem %s3, %s511
      $region48: #{gat_forward.4} parent=43 // pred_fallthru
        _
      // Predicated region
      $region49: #{gat_forward.4} parent=43 // pred_check
        %p513 = pneg %p134
      $region50: #{gat_forward.4} parent=43 // pred_check_branch
        %515 = sbr.rel (%p513) target = $region52
      $region51: #{gat_forward.4} parent=43 // pred_region
        %s516 = smul.u32 8, %s17
        %p517 = scmp.lt.s32.totalorder %s516, 15
        %s518 = scalar_select %p517, %s516, 15
        %s519 = smul.addr %s518, 8
        %s520 = scalar_lea.vmem %s4, %s519
      $region52: #{gat_forward.4} parent=43 // pred_fallthru
        _
    $region44: #{gat_forward.4} parent=5 // pred_fallthru
      _
  $region6: #{gat_forward.4} parent=0 // loop_footer
    %s15 = sadd.s32 1, %s11
  $region7: #{gat_forward.4} parent=0 // loop_footer_branch
    %10 = sbr.rel target = $region3
  $region8: #{gat_forward.4} parent=0 // loop_exit
    _

// kernel: gat_forward.6
$region0: #{gat_forward.6}
  #allocation0 [shape = 'u32[]', space=smem, size = 0x4, offset = 0x4, fixed_abs, tag = 'smem constant byte address 0x4 - core index']
  #allocation1 [shape = 'u32[144,128]{1,0:T(1,128)}', space=vmem, size = 0x12000, scoped, tag = 'internal scratch']
  %s0 = inlined_call_operand.vmem [shape: bf16[128,64], index: 0, kind: input, shape index: {}]
  %s1 = inlined_call_operand.vmem [shape: bf16[64,16], index: 1, kind: input, shape index: {}]
  %s2 = inlined_call_operand.vmem [shape: bf16[16,4], index: 2, kind: input, shape index: {}]
  %s3 = inlined_call_operand.vmem [shape: bf16[128,16], index: 3, kind: output, shape index: {0}]
  %s4 = inlined_call_operand.vmem [shape: f32[128,4], index: 4, kind: output, shape index: {1}]
  %5 = xla_tuple %s3, %s4
  %s6 = sld [smem:[#allocation0]]
  $region53: #{gat_forward.6} parent=0
    _
  %s8 = ssub.s32 1, %s6
  %s9 = scalar_select 0, %s8, %s6
  loop: start=0, step=1, limit=4
  $region2: #{gat_forward.6} parent=0 // loop_pre_header
    _
  $region3: #{gat_forward.6} parent=0 // loop_header
    %s11 = sphi 0, %s15
    %p12 = scmp.ge.s32.totalorder %s11, 4
    %s21 = sphi 0, %s23
    %s24 = sphi 0, %s21
    %s25 = sphi 0, %s24
    %s41 = sphi 0, %s25
    %s45 = sphi 0, %s45
    %s47 = sphi 0, %s45
    %s48 = sphi 0, %s47
    %s62 = sphi 0, %s48
    %s66 = sphi 0, %s66
    %s68 = sphi 0, %s66
    %s69 = sphi 0, %s68
    %s83 = sphi 0, %s69
    %s89 = sphi 0, %s91
    %s92 = sphi 0, %s89
    %s93 = sphi 0, %s92
    %s109 = sphi 0, %s93
    %s115 = sphi 0, %s117
    %s118 = sphi 0, %s115
    %s119 = sphi 0, %s118
    %s135 = sphi 0, %s119
  $region4: #{gat_forward.6} parent=0 // loop_header_branch
    %14 = sbr.rel (%p12) target = $region8
  $region5: #{gat_forward.6} parent=0 // loop_body
    %s16 = ssub.s32 %s11, 1
    %s17 = ssub.s32 %s11, 2
    %s18 = sadd.s32 %s11, 1
    %s19 = ssub.s32 %s11, %s18
    %p20 = scmp.eq.s32.totalorder %s19, 0
    %s22 = sadd.s32 %s21, 1
    %s23 = scalar_select %p20, %s21, %s22
    %p26 = pneg %p20
    %p27 = scmp.eq.s32.totalorder %s11, 1
    %p28 = por %p26, %p27
    %p29 = scmp.ne.s32.totalorder %s21, %s24
    %p30 = scmp.eq.s32.totalorder %s11, 0
    %p31 = por %p29, %p30
    %p32 = scmp.ne.s32.totalorder %s21, %s24
    %p33 = scmp.eq.s32.totalorder %s16, 1
    %p34 = por %p32, %p33
    %p35 = scmp.ne.s32.totalorder %s24, %s25
    %p36 = scmp.eq.s32.totalorder %s16, 0
    %p37 = por %p35, %p36
    %p38 = scmp.ne.s32.totalorder %s24, %s25
    %p39 = scmp.eq.s32.totalorder %s17, 1
    %p40 = por %p38, %p39
    %p42 = scmp.ne.s32.totalorder %s25, %s41
    %p43 = scmp.eq.s32.totalorder %s17, 0
    %p44 = por %p42, %p43
    %s46 = sadd.s32 %s45, 1
    %p49 = scmp.eq.s32.totalorder %s11, 1
    %p50 = scmp.ne.s32.totalorder %s45, %s47
    %p51 = scmp.eq.s32.totalorder %s11, 0
    %p52 = por %p50, %p51
    %p53 = scmp.ne.s32.totalorder %s45, %s47
    %p54 = scmp.eq.s32.totalorder %s16, 1
    %p55 = por %p53, %p54
    %p56 = scmp.ne.s32.totalorder %s47, %s48
    %p57 = scmp.eq.s32.totalorder %s16, 0
    %p58 = por %p56, %p57
    %p59 = scmp.ne.s32.totalorder %s47, %s48
    %p60 = scmp.eq.s32.totalorder %s17, 1
    %p61 = por %p59, %p60
    %p63 = scmp.ne.s32.totalorder %s48, %s62
    %p64 = scmp.eq.s32.totalorder %s17, 0
    %p65 = por %p63, %p64
    %s67 = sadd.s32 %s66, 1
    %p70 = scmp.eq.s32.totalorder %s11, 1
    %p71 = scmp.ne.s32.totalorder %s66, %s68
    %p72 = scmp.eq.s32.totalorder %s11, 0
    %p73 = por %p71, %p72
    %p74 = scmp.ne.s32.totalorder %s66, %s68
    %p75 = scmp.eq.s32.totalorder %s16, 1
    %p76 = por %p74, %p75
    %p77 = scmp.ne.s32.totalorder %s68, %s69
    %p78 = scmp.eq.s32.totalorder %s16, 0
    %p79 = por %p77, %p78
    %p80 = scmp.ne.s32.totalorder %s68, %s69
    %p81 = scmp.eq.s32.totalorder %s17, 1
    %p82 = por %p80, %p81
    %p84 = scmp.ne.s32.totalorder %s69, %s83
    %p85 = scmp.eq.s32.totalorder %s17, 0
    %p86 = por %p84, %p85
    %s87 = ssub.s32 %s11, %s18
    %p88 = scmp.eq.s32.totalorder %s87, 0
    %s90 = sadd.s32 %s89, 1
    %s91 = scalar_select %p88, %s89, %s90
    %p94 = pneg %p88
    %p95 = scmp.eq.s32.totalorder %s11, 1
    %p96 = por %p94, %p95
    %p97 = scmp.ne.s32.totalorder %s89, %s92
    %p98 = scmp.eq.s32.totalorder %s11, 0
    %p99 = por %p97, %p98
    %p100 = scmp.ne.s32.totalorder %s89, %s92
    %p101 = scmp.eq.s32.totalorder %s16, 1
    %p102 = por %p100, %p101
    %p103 = scmp.ne.s32.totalorder %s92, %s93
    %p104 = scmp.eq.s32.totalorder %s16, 0
    %p105 = por %p103, %p104
    %p106 = scmp.ne.s32.totalorder %s92, %s93
    %p107 = scmp.eq.s32.totalorder %s17, 1
    %p108 = por %p106, %p107
    %p110 = scmp.ne.s32.totalorder %s93, %s109
    %p111 = scmp.eq.s32.totalorder %s17, 0
    %p112 = por %p110, %p111
    %s113 = ssub.s32 %s11, %s18
    %p114 = scmp.eq.s32.totalorder %s113, 0
    %s116 = sadd.s32 %s115, 1
    %s117 = scalar_select %p114, %s115, %s116
    %p120 = pneg %p114
    %p121 = scmp.eq.s32.totalorder %s11, 1
    %p122 = por %p120, %p121
    %p123 = scmp.ne.s32.totalorder %s115, %s118
    %p124 = scmp.eq.s32.totalorder %s11, 0
    %p125 = por %p123, %p124
    %p126 = scmp.ne.s32.totalorder %s115, %s118
    %p127 = scmp.eq.s32.totalorder %s16, 1
    %p128 = por %p126, %p127
    %p129 = scmp.ne.s32.totalorder %s118, %s119
    %p130 = scmp.eq.s32.totalorder %s16, 0
    %p131 = por %p129, %p130
    %p132 = scmp.ne.s32.totalorder %s118, %s119
    %p133 = scmp.eq.s32.totalorder %s17, 1
    %p134 = por %p132, %p133
    %p136 = scmp.ne.s32.totalorder %s119, %s135
    %p137 = scmp.eq.s32.totalorder %s17, 0
    %p138 = por %p136, %p137
    %p139 = scmp.le.s32.totalorder 1, %s11
    %p140 = scmp.lt.s32.totalorder %s11, 3
    %p141 = pnand %p139, %p140
    %p142 = pneg %p141
    // Predicated region
    $region9: #{gat_forward.6} parent=5 // pred_check
      _
    $region10: #{gat_forward.6} parent=5 // pred_check_branch
      %144 = sbr.rel (%p141) target = $region12
    $region11: #{gat_forward.6} parent=5 // pred_region
      %s145 = ssub.s32 %s11, 1
      // Predicated region
      $region13: #{gat_forward.6} parent=11 // pred_check
        %p146 = pneg %p58
      $region14: #{gat_forward.6} parent=11 // pred_check_branch
        %148 = sbr.rel (%p146) target = $region16
      $region15: #{gat_forward.6} parent=11 // pred_region
        _
      $region16: #{gat_forward.6} parent=11 // pred_fallthru
        _
      // Predicated region
      $region17: #{gat_forward.6} parent=11 // pred_check
        %p149 = pneg %p79
      $region18: #{gat_forward.6} parent=11 // pred_check_branch
        %151 = sbr.rel (%p149) target = $region20
      $region19: #{gat_forward.6} parent=11 // pred_region
        _
      $region20: #{gat_forward.6} parent=11 // pred_fallthru
        _
    $region12: #{gat_forward.6} parent=5 // pred_fallthru
      _
    %p152 = scmp.lt.s32.totalorder %s11, 2
    // Predicated region
    $region21: #{gat_forward.6} parent=5 // pred_check
      %p153 = pneg %p152
    $region22: #{gat_forward.6} parent=5 // pred_check_branch
      %155 = sbr.rel (%p153) target = $region24
    $region23: #{gat_forward.6} parent=5 // pred_region
      // Predicated region
      $region25: #{gat_forward.6} parent=23 // pred_check
        %p156 = pneg %p31
      $region26: #{gat_forward.6} parent=23 // pred_check_branch
        %158 = sbr.rel (%p156) target = $region28
      $region27: #{gat_forward.6} parent=23 // pred_region
        %s159 = smul.u32 8, %s11
        %p160 = scmp.lt.s32.totalorder %s159, 15
        %s161 = scalar_select %p160, %s159, 15
        %s162 = smul.addr %s161, 4
        %s163 = scalar_lea.vmem %s0, %s162
        %s164 = smul.u32 8, %s11
      $region28: #{gat_forward.6} parent=23 // pred_fallthru
        _
    $region24: #{gat_forward.6} parent=5 // pred_fallthru
      _
    %p165 = scmp.le.s32.totalorder 1, %s11
    %p166 = scmp.lt.s32.totalorder %s11, 3
    %p167 = pnand %p165, %p166
    %p168 = pneg %p167
    // Predicated region
    $region29: #{gat_forward.6} parent=5 // pred_check
      _
    $region30: #{gat_forward.6} parent=5 // pred_check_branch
      %170 = sbr.rel (%p167) target = $region32
    $region31: #{gat_forward.6} parent=5 // pred_region
      %s171 = ssub.s32 %s11, 1
      %s172 = smul.u32 8, %s16
      %p173 = scmp.lt.s32.totalorder %s172, 15
      %s174 = scalar_select %p173, %s172, 15
      %s175 = smul.addr %s174, 4
      %s176 = scalar_lea.vmem %s0, %s175
      %p177 = pneg %p37
      %p178 = pneg %p34
      %p179 = pneg %p58
      %p180 = pneg %p55
      %p181 = pneg %p79
      %p182 = pneg %p76
      %p183 = pneg %p105
      %p184 = pneg %p102
      %s185 = smul.u32 8, %s16
      %p186 = scmp.lt.s32.totalorder %s185, 15
      %s187 = scalar_select %p186, %s185, 15
      %s188 = smul.addr %s187, 4
      %s189 = scalar_lea.vmem %s3, %s188
      %p190 = pneg %p131
      %p191 = pneg %p128
      %s192 = smul.u32 8, %s16
      %p193 = scmp.lt.s32.totalorder %s192, 15
      %s194 = scalar_select %p193, %s192, 15
      %s195 = smul.addr %s194, 8
      %s196 = scalar_lea.vmem %s4, %s195
      %s197 = smul.u32 8, %s16
      %p198 = scmp.lt.s32.totalorder %s197, 15
      %s199 = scalar_select %p198, %s197, 15
      %s200 = smul.addr %s199, 4
      %s201 = scalar_lea.vmem %s0, %s200
      %s202 = smul.u32 8, %s16
      %s203 = smul.u32 8, %s16
      %p204 = scmp.lt.s32.totalorder %s203, 15
      %s205 = scalar_select %p204, %s203, 15
      %s206 = smul.addr %s205, 4
      %s207 = scalar_lea.vmem %s3, %s206
      %s208 = smul.u32 8, %s16
      %s209 = smul.u32 8, %s16
      %p210 = scmp.lt.s32.totalorder %s209, 15
      %s211 = scalar_select %p210, %s209, 15
      %s212 = smul.addr %s211, 8
      %s213 = scalar_lea.vmem %s4, %s212
      %s214 = smul.u32 8, %s16
      %v216 = vld [vmem:[%s201] sm:$0xf]
      %v217 = vld [vmem:[%s201 + $0x4] sm:$0xf]
      %v218 = vld [vmem:[%s201 + $0x8] sm:$0xf]
      %v219 = vld [vmem:[%s201 + $0xc] sm:$0xf]
      %v220 = vld [vmem:[%s201 + $0x10] sm:$0xf]
      %v221 = vld [vmem:[%s201 + $0x14] sm:$0xf]
      %v222 = vld [vmem:[%s201 + $0x18] sm:$0xf]
      %v223 = vld [vmem:[%s201 + $0x1c] sm:$0xf]
      %v224 = vld [vmem:[%s1] sm:$0xf]
      %v225 = vld [vmem:[%s1 + $0x4] sm:$0xf]
      %v226 = vld [vmem:[%s1 + $0x8] sm:$0xf]
      %v227 = vld [vmem:[%s1 + $0xc] sm:$0xf]
      %v228 = vld [vmem:[%s1 + $0x10] sm:$0xf]
      %v229 = vld [vmem:[%s1 + $0x14] sm:$0xf]
      %v230 = vld [vmem:[%s1 + $0x18] sm:$0xf]
      %v231 = vld [vmem:[%s1 + $0x1c] sm:$0xf]
      %v240 = vunpack.c.l.b16 %v216
      %v241 = vunpack.c.l.b16 %v217
      %v242 = vunpack.c.l.b16 %v218
      %v243 = vunpack.c.l.b16 %v219
      %v244 = vunpack.c.l.b16 %v220
      %v245 = vunpack.c.l.b16 %v221
      %v246 = vunpack.c.l.b16 %v222
      %v247 = vunpack.c.l.b16 %v223
      %v248 = vpack.c.b16 %v241, %v240
      %v249 = vpack.c.b16 %v243, %v242
      %v250 = vpack.c.b16 %v245, %v244
      %v251 = vpack.c.b16 %v247, %v246
      %v260 = vunpack.c.l.b16 %v224
      %v261 = vunpack.c.l.b16 %v225
      %v262 = vunpack.c.l.b16 %v226
      %v263 = vunpack.c.l.b16 %v227
      %v264 = vunpack.c.l.b16 %v228
      %v265 = vunpack.c.l.b16 %v229
      %v266 = vunpack.c.l.b16 %v230
      %v267 = vunpack.c.l.b16 %v231
      %v268 = vpack.c.b16 %v261, %v260
      %v269 = vpack.c.b16 %v263, %v262
      %v270 = vpack.c.b16 %v265, %v264
      %v271 = vpack.c.b16 %v267, %v266
      %vm276 = vcmask 523264
      %v278 = vsel %vm276, %v248, 0
      %v281 = vsel %vm276, %v249, 0
      %v284 = vsel %vm276, %v250, 0
      %v287 = vsel %vm276, %v251, 0
      %289 = vmatprep.subr.bf16.mxu0 0
      %290 = vmatpush1.bf16.msra.mxu0 %v268
      %291 = vmatprep.subr.bf16.mxu0 0
      %292 = vmatpush1.bf16.msra.mxu0 %v269
      %293 = vmatprep.subr.bf16.mxu0 0
      %294 = vmatpush1.bf16.msra.mxu0 %v270
      %295 = vmatprep.subr.bf16.mxu0 0
      %296 = vmatpush1.bf16.msra.mxu0 %v271
      %297 = vmatprep.subr.bf16.mxu0 0
      %298 = vmatpush1.bf16.msra.mxu0 0
      %299 = vmatprep.subr.bf16.mxu0 0
      %300 = vmatpush1.bf16.msra.mxu0 0
      %301 = vmatprep.subr.bf16.mxu0 0
      %302 = vmatpush1.bf16.msra.mxu0 0
      %303 = vmatprep.subr.bf16.mxu0 0
      %304 = vmatpush1.bf16.msra.mxu0 0
      %305 = vmatprep.subr.bf16.mxu0 0
      %306 = vmatpush1.bf16.msra.mxu0 0
      %307 = vmatprep.subr.bf16.mxu0 0
      %308 = vmatpush1.bf16.msra.mxu0 0
      %309 = vmatprep.subr.bf16.mxu0 0
      %310 = vmatpush1.bf16.msra.mxu0 0
      %311 = vmatprep.subr.bf16.mxu0 0
      %312 = vmatpush1.bf16.msra.mxu0 0
      %313 = vmatprep.subr.bf16.mxu0 0
      %314 = vmatpush1.bf16.msra.mxu0 0
      %315 = vmatprep.subr.bf16.mxu0 0
      %316 = vmatpush1.bf16.msra.mxu0 0
      %317 = vmatprep.subr.bf16.mxu0 0
      %318 = vmatpush1.bf16.msra.mxu0 0
      %319 = vmatprep.subr.bf16.mxu0 0
      %320 = vmatpush1.bf16.msra.mxu0 0
      %321 = vmatprep.mubr.bf16.mxu0 0
      %322 = vmatmul.mubr.bf16.gmra.mrb[0].mxu0 %v278
      %v323 = vpop.f32.mrb[0].mxu0
      %v324 = vadd.f32 0.0, %v323
      %v325 = vpop.f32.mrb[0].mxu0
      %v326 = vpop.f32.mrb[0].mxu0
      %v327 = vadd.f32 0.0, %v326
      %v328 = vpop.f32.mrb[0].mxu0
      %329 = vmatprep.mubr.bf16.mxu0 0
      %330 = vmatmul.mubr.bf16.gmra.mrb[0].mxu0 %v281
      %v331 = vpop.f32.mrb[0].mxu0
      %v332 = vadd.f32 0.0, %v331
      %v333 = vpop.f32.mrb[0].mxu0
      %v334 = vpop.f32.mrb[0].mxu0
      %v335 = vadd.f32 0.0, %v334
      %v336 = vpop.f32.mrb[0].mxu0
      %337 = vmatprep.mubr.bf16.mxu0 0
      %338 = vmatmul.mubr.bf16.gmra.mrb[0].mxu0 %v284
      %v339 = vpop.f32.mrb[0].mxu0
      %v340 = vadd.f32 0.0, %v339
      %v341 = vpop.f32.mrb[0].mxu0
      %v342 = vpop.f32.mrb[0].mxu0
      %v343 = vadd.f32 0.0, %v342
      %v344 = vpop.f32.mrb[0].mxu0
      %345 = vmatprep.mubr.bf16.mxu0 0
      %346 = vmatmul.mubr.bf16.gmra.mrb[0].mxu0 %v287
      %v347 = vpop.f32.mrb[0].mxu0
      %v348 = vadd.f32 0.0, %v347
      %v349 = vpop.f32.mrb[0].mxu0
      %v350 = vpop.f32.mrb[0].mxu0
      %v351 = vadd.f32 0.0, %v350
      %v352 = vpop.f32.mrb[0].mxu0
      %353 = vdwg.mxu0
      %v354 = vpack.c.bf16 %v327, %v324
      %v355 = vpack.c.bf16 %v335, %v332
      %v356 = vpack.c.bf16 %v343, %v340
      %v357 = vpack.c.bf16 %v351, %v348
      %v362 = vunpack.c.l.b16 %v354
      %v363 = vunpack.c.h.b16 %v354
      %v364 = vunpack.c.l.b16 %v355
      %v365 = vunpack.c.h.b16 %v355
      %v366 = vunpack.c.l.b16 %v356
      %v367 = vunpack.c.h.b16 %v356
      %v368 = vunpack.c.l.b16 %v357
      %v369 = vunpack.c.h.b16 %v357
      %v370 = vpack.c.b16 %v362, %v362
      %v371 = vpack.c.b16 %v363, %v363
      %v372 = vpack.c.b16 %v364, %v364
      %v373 = vpack.c.b16 %v365, %v365
      %v374 = vpack.c.b16 %v366, %v366
      %v375 = vpack.c.b16 %v367, %v367
      %v376 = vpack.c.b16 %v368, %v368
      %v377 = vpack.c.b16 %v369, %v369
      %vm386 = vcmask 125952
      %387 = vst.msk [vmem:[%s207] sm:$0xf] %vm386, %v370
      %388 = vst.msk [vmem:[%s207 + $0x4] sm:$0xf] %vm386, %v371
      %389 = vst.msk [vmem:[%s207 + $0x8] sm:$0xf] %vm386, %v372
      %390 = vst.msk [vmem:[%s207 + $0xc] sm:$0xf] %vm386, %v373
      %391 = vst.msk [vmem:[%s207 + $0x10] sm:$0xf] %vm386, %v374
      %392 = vst.msk [vmem:[%s207 + $0x14] sm:$0xf] %vm386, %v375
      %393 = vst.msk [vmem:[%s207 + $0x18] sm:$0xf] %vm386, %v376
      %394 = vst.msk [vmem:[%s207 + $0x1c] sm:$0xf] %vm386, %v377
      %v395 = vld [vmem:[%s2] sm:$0xf]
      %v396 = vld [vmem:[%s2 + $0x4] sm:$0xf]
      %v399 = vunpack.c.l.b16 %v395
      %v400 = vunpack.c.l.b16 %v396
      %v401 = vpack.c.b16 %v400, %v399
      %vm403 = vcmask 130048
      %v405 = vsel %vm403, %v354, 0
      %v408 = vsel %vm403, %v355, 0
      %v411 = vsel %vm403, %v356, 0
      %v414 = vsel %vm403, %v357, 0
      %416 = vmatprep.subr.bf16.mxu0 0
      %417 = vmatpush1.bf16.msra.mxu0 %v401
      %418 = vmatprep.subr.bf16.mxu0 0
      %419 = vmatpush1.bf16.msra.mxu0 0
      %420 = vmatprep.subr.bf16.mxu0 0
      %421 = vmatpush1.bf16.msra.mxu0 0
      %422 = vmatprep.subr.bf16.mxu0 0
      %423 = vmatpush1.bf16.msra.mxu0 0
      %424 = vmatprep.subr.bf16.mxu0 0
      %425 = vmatpush1.bf16.msra.mxu0 0
      %426 = vmatprep.subr.bf16.mxu0 0
      %427 = vmatpush1.bf16.msra.mxu0 0
      %428 = vmatprep.subr.bf16.mxu0 0
      %429 = vmatpush1.bf16.msra.mxu0 0
      %430 = vmatprep.subr.bf16.mxu0 0
      %431 = vmatpush1.bf16.msra.mxu0 0
      %432 = vmatprep.subr.bf16.mxu0 0
      %433 = vmatpush1.bf16.msra.mxu0 0
      %434 = vmatprep.subr.bf16.mxu0 0
      %435 = vmatpush1.bf16.msra.mxu0 0
      %436 = vmatprep.subr.bf16.mxu0 0
      %437 = vmatpush1.bf16.msra.mxu0 0
      %438 = vmatprep.subr.bf16.mxu0 0
      %439 = vmatpush1.bf16.msra.mxu0 0
      %440 = vmatprep.subr.bf16.mxu0 0
      %441 = vmatpush1.bf16.msra.mxu0 0
      %442 = vmatprep.subr.bf16.mxu0 0
      %443 = vmatpush1.bf16.msra.mxu0 0
      %444 = vmatprep.subr.bf16.mxu0 0
      %445 = vmatpush1.bf16.msra.mxu0 0
      %446 = vmatprep.subr.bf16.mxu0 0
      %447 = vmatpush1.bf16.msra.mxu0 0
      %448 = vmatprep.mubr.bf16.mxu0 0
      %449 = vmatmul.mubr.bf16.gmra.mrb[0].mxu0 %v405
      %v450 = vpop.f32.mrb[0].mxu0
      %v451 = vadd.f32 0.0, %v450
      %v452 = vpop.f32.mrb[0].mxu0
      %v453 = vpop.f32.mrb[0].mxu0
      %v454 = vadd.f32 0.0, %v453
      %v455 = vpop.f32.mrb[0].mxu0
      %456 = vmatprep.mubr.bf16.mxu0 0
      %457 = vmatmul.mubr.bf16.gmra.mrb[0].mxu0 %v408
      %v458 = vpop.f32.mrb[0].mxu0
      %v459 = vadd.f32 0.0, %v458
      %v460 = vpop.f32.mrb[0].mxu0
      %v461 = vpop.f32.mrb[0].mxu0
      %v462 = vadd.f32 0.0, %v461
      %v463 = vpop.f32.mrb[0].mxu0
      %464 = vmatprep.mubr.bf16.mxu0 0
      %465 = vmatmul.mubr.bf16.gmra.mrb[0].mxu0 %v411
      %v466 = vpop.f32.mrb[0].mxu0
      %v467 = vadd.f32 0.0, %v466
      %v468 = vpop.f32.mrb[0].mxu0
      %v469 = vpop.f32.mrb[0].mxu0
      %v470 = vadd.f32 0.0, %v469
      %v471 = vpop.f32.mrb[0].mxu0
      %472 = vmatprep.mubr.bf16.mxu0 0
      %473 = vmatmul.mubr.bf16.gmra.mrb[0].mxu0 %v414
      %v474 = vpop.f32.mrb[0].mxu0
      %v475 = vadd.f32 0.0, %v474
      %v476 = vpop.f32.mrb[0].mxu0
      %v477 = vpop.f32.mrb[0].mxu0
      %v478 = vadd.f32 0.0, %v477
      %v479 = vpop.f32.mrb[0].mxu0
      %480 = vdwg.mxu0
      %vm481 = vcmask 31744
      %482 = vst.msk [vmem:[%s213] sm:$0xff] %vm481, %v451
      %483 = vst.msk [vmem:[%s213 + $0x8] sm:$0xff] %vm481, %v454
      %484 = vst.msk [vmem:[%s213 + $0x10] sm:$0xff] %vm481, %v459
      %485 = vst.msk [vmem:[%s213 + $0x18] sm:$0xff] %vm481, %v462
      %486 = vst.msk [vmem:[%s213 + $0x20] sm:$0xff] %vm481, %v467
      %487 = vst.msk [vmem:[%s213 + $0x28] sm:$0xff] %vm481, %v470
      %488 = vst.msk [vmem:[%s213 + $0x30] sm:$0xff] %vm481, %v475
      %489 = vst.msk [vmem:[%s213 + $0x38] sm:$0xff] %vm481, %v478
      %s490 = smul.u32 8, %s16
      %p491 = scmp.lt.s32.totalorder %s490, 15
      %s492 = scalar_select %p491, %s490, 15
      %s493 = smul.addr %s492, 4
      %s494 = scalar_lea.vmem %s3, %s493
      %s495 = smul.u32 8, %s16
      %p496 = scmp.lt.s32.totalorder %s495, 15
      %s497 = scalar_select %p496, %s495, 15
      %s498 = smul.addr %s497, 8
      %s499 = scalar_lea.vmem %s4, %s498
      // Predicated region
      $region33: #{gat_forward.6} parent=31 // pred_check
        %p500 = pneg %p102
      $region34: #{gat_forward.6} parent=31 // pred_check_branch
        %502 = sbr.rel (%p500) target = $region36
      $region35: #{gat_forward.6} parent=31 // pred_region
        %s503 = smul.u32 8, %s16
      $region36: #{gat_forward.6} parent=31 // pred_fallthru
        _
      // Predicated region
      $region37: #{gat_forward.6} parent=31 // pred_check
        %p504 = pneg %p128
      $region38: #{gat_forward.6} parent=31 // pred_check_branch
        %506 = sbr.rel (%p504) target = $region40
      $region39: #{gat_forward.6} parent=31 // pred_region
        %s507 = smul.u32 8, %s16
      $region40: #{gat_forward.6} parent=31 // pred_fallthru
        _
    $region32: #{gat_forward.6} parent=5 // pred_fallthru
      _
    %p508 = scmp.le.s32.totalorder 2, %s11
    // Predicated region
    $region41: #{gat_forward.6} parent=5 // pred_check
      %p509 = pneg %p508
    $region42: #{gat_forward.6} parent=5 // pred_check_branch
      %511 = sbr.rel (%p509) target = $region44
    $region43: #{gat_forward.6} parent=5 // pred_region
      %s512 = ssub.s32 %s11, 2
      // Predicated region
      $region45: #{gat_forward.6} parent=43 // pred_check
        %p513 = pneg %p108
      $region46: #{gat_forward.6} parent=43 // pred_check_branch
        %515 = sbr.rel (%p513) target = $region48
      $region47: #{gat_forward.6} parent=43 // pred_region
        %s516 = smul.u32 8, %s17
        %p517 = scmp.lt.s32.totalorder %s516, 15
        %s518 = scalar_select %p517, %s516, 15
        %s519 = smul.addr %s518, 4
        %s520 = scalar_lea.vmem %s3, %s519
      $region48: #{gat_forward.6} parent=43 // pred_fallthru
        _
      // Predicated region
      $region49: #{gat_forward.6} parent=43 // pred_check
        %p521 = pneg %p134
      $region50: #{gat_forward.6} parent=43 // pred_check_branch
        %523 = sbr.rel (%p521) target = $region52
      $region51: #{gat_forward.6} parent=43 // pred_region
        %s524 = smul.u32 8, %s17
        %p525 = scmp.lt.s32.totalorder %s524, 15
        %s526 = scalar_select %p525, %s524, 15
        %s527 = smul.addr %s526, 8
        %s528 = scalar_lea.vmem %s4, %s527
      $region52: #{gat_forward.6} parent=43 // pred_fallthru
        _
    $region44: #{gat_forward.6} parent=5 // pred_fallthru
      _
  $region6: #{gat_forward.6} parent=0 // loop_footer
    %s15 = sadd.s32 1, %s11
  $region7: #{gat_forward.6} parent=0 // loop_footer_branch
    %10 = sbr.rel target = $region3
  $region8: #{gat_forward.6} parent=0 // loop_exit
    _

// kernel: gat_forward.5
$region0: #{gat_forward.5}
  #allocation0 [shape = 'u32[]', space=smem, size = 0x4, offset = 0x4, fixed_abs, tag = 'smem constant byte address 0x4 - core index']
  #allocation1 [shape = 'u32[144,128]{1,0:T(1,128)}', space=vmem, size = 0x12000, scoped, tag = 'internal scratch']
  %s0 = inlined_call_operand.vmem [shape: f32[4,128], index: 0, kind: input, shape index: {}]
  %s1 = inlined_call_operand.vmem [shape: f32[128,4], index: 1, kind: input, shape index: {}]
  %s2 = inlined_call_operand.vmem [shape: bf16[128,128], index: 2, kind: input, shape index: {}]
  %s3 = inlined_call_operand.vmem [shape: bf16[512,68], index: 3, kind: input, shape index: {}]
  %s4 = inlined_call_operand.vmem [shape: f32[1,64], index: 4, kind: input, shape index: {}]
  %s5 = inlined_call_operand.vmem [shape: bf16[128,64], index: 5, kind: output, shape index: {}]
  %s6 = sld [smem:[#allocation0]]
  $region53: #{gat_forward.5} parent=0
    _
  %s8 = ssub.s32 1, %s6
  %s9 = scalar_select 0, %s8, %s6
  loop: start=0, step=1, limit=4
  $region2: #{gat_forward.5} parent=0 // loop_pre_header
    _
  $region3: #{gat_forward.5} parent=0 // loop_header
    %s11 = sphi 0, %s15
    %p12 = scmp.ge.s32.totalorder %s11, 4
    %s19 = sphi 0, %s19
    %s21 = sphi 0, %s19
    %s22 = sphi 0, %s21
    %s36 = sphi 0, %s22
    %s42 = sphi 0, %s44
    %s45 = sphi 0, %s42
    %s46 = sphi 0, %s45
    %s62 = sphi 0, %s46
    %s68 = sphi 0, %s70
    %s71 = sphi 0, %s68
    %s72 = sphi 0, %s71
    %s88 = sphi 0, %s72
    %s92 = sphi 0, %s92
    %s94 = sphi 0, %s92
    %s95 = sphi 0, %s94
    %s109 = sphi 0, %s95
    %s113 = sphi 0, %s113
    %s115 = sphi 0, %s113
    %s116 = sphi 0, %s115
    %s130 = sphi 0, %s116
    %s136 = sphi 0, %s138
    %s139 = sphi 0, %s136
    %s140 = sphi 0, %s139
    %s156 = sphi 0, %s140
  $region4: #{gat_forward.5} parent=0 // loop_header_branch
    %14 = sbr.rel (%p12) target = $region8
  $region5: #{gat_forward.5} parent=0 // loop_body
    %s16 = ssub.s32 %s11, 1
    %s17 = ssub.s32 %s11, 2
    %s18 = sadd.s32 %s11, 1
    %s20 = sadd.s32 %s19, 1
    %p23 = scmp.eq.s32.totalorder %s11, 1
    %p24 = scmp.ne.s32.totalorder %s19, %s21
    %p25 = scmp.eq.s32.totalorder %s11, 0
    %p26 = por %p24, %p25
    %p27 = scmp.ne.s32.totalorder %s19, %s21
    %p28 = scmp.eq.s32.totalorder %s16, 1
    %p29 = por %p27, %p28
    %p30 = scmp.ne.s32.totalorder %s21, %s22
    %p31 = scmp.eq.s32.totalorder %s16, 0
    %p32 = por %p30, %p31
    %p33 = scmp.ne.s32.totalorder %s21, %s22
    %p34 = scmp.eq.s32.totalorder %s17, 1
    %p35 = por %p33, %p34
    %p37 = scmp.ne.s32.totalorder %s22, %s36
    %p38 = scmp.eq.s32.totalorder %s17, 0
    %p39 = por %p37, %p38
    %s40 = ssub.s32 %s11, %s18
    %p41 = scmp.eq.s32.totalorder %s40, 0
    %s43 = sadd.s32 %s42, 1
    %s44 = scalar_select %p41, %s42, %s43
    %p47 = pneg %p41
    %p48 = scmp.eq.s32.totalorder %s11, 1
    %p49 = por %p47, %p48
    %p50 = scmp.ne.s32.totalorder %s42, %s45
    %p51 = scmp.eq.s32.totalorder %s11, 0
    %p52 = por %p50, %p51
    %p53 = scmp.ne.s32.totalorder %s42, %s45
    %p54 = scmp.eq.s32.totalorder %s16, 1
    %p55 = por %p53, %p54
    %p56 = scmp.ne.s32.totalorder %s45, %s46
    %p57 = scmp.eq.s32.totalorder %s16, 0
    %p58 = por %p56, %p57
    %p59 = scmp.ne.s32.totalorder %s45, %s46
    %p60 = scmp.eq.s32.totalorder %s17, 1
    %p61 = por %p59, %p60
    %p63 = scmp.ne.s32.totalorder %s46, %s62
    %p64 = scmp.eq.s32.totalorder %s17, 0
    %p65 = por %p63, %p64
    %s66 = ssub.s32 %s11, %s18
    %p67 = scmp.eq.s32.totalorder %s66, 0
    %s69 = sadd.s32 %s68, 1
    %s70 = scalar_select %p67, %s68, %s69
    %p73 = pneg %p67
    %p74 = scmp.eq.s32.totalorder %s11, 1
    %p75 = por %p73, %p74
    %p76 = scmp.ne.s32.totalorder %s68, %s71
    %p77 = scmp.eq.s32.totalorder %s11, 0
    %p78 = por %p76, %p77
    %p79 = scmp.ne.s32.totalorder %s68, %s71
    %p80 = scmp.eq.s32.totalorder %s16, 1
    %p81 = por %p79, %p80
    %p82 = scmp.ne.s32.totalorder %s71, %s72
    %p83 = scmp.eq.s32.totalorder %s16, 0
    %p84 = por %p82, %p83
    %p85 = scmp.ne.s32.totalorder %s71, %s72
    %p86 = scmp.eq.s32.totalorder %s17, 1
    %p87 = por %p85, %p86
    %p89 = scmp.ne.s32.totalorder %s72, %s88
    %p90 = scmp.eq.s32.totalorder %s17, 0
    %p91 = por %p89, %p90
    %s93 = sadd.s32 %s92, 1
    %p96 = scmp.eq.s32.totalorder %s11, 1
    %p97 = scmp.ne.s32.totalorder %s92, %s94
    %p98 = scmp.eq.s32.totalorder %s11, 0
    %p99 = por %p97, %p98
    %p100 = scmp.ne.s32.totalorder %s92, %s94
    %p101 = scmp.eq.s32.totalorder %s16, 1
    %p102 = por %p100, %p101
    %p103 = scmp.ne.s32.totalorder %s94, %s95
    %p104 = scmp.eq.s32.totalorder %s16, 0
    %p105 = por %p103, %p104
    %p106 = scmp.ne.s32.totalorder %s94, %s95
    %p107 = scmp.eq.s32.totalorder %s17, 1
    %p108 = por %p106, %p107
    %p110 = scmp.ne.s32.totalorder %s95, %s109
    %p111 = scmp.eq.s32.totalorder %s17, 0
    %p112 = por %p110, %p111
    %s114 = sadd.s32 %s113, 1
    %p117 = scmp.eq.s32.totalorder %s11, 1
    %p118 = scmp.ne.s32.totalorder %s113, %s115
    %p119 = scmp.eq.s32.totalorder %s11, 0
    %p120 = por %p118, %p119
    %p121 = scmp.ne.s32.totalorder %s113, %s115
    %p122 = scmp.eq.s32.totalorder %s16, 1
    %p123 = por %p121, %p122
    %p124 = scmp.ne.s32.totalorder %s115, %s116
    %p125 = scmp.eq.s32.totalorder %s16, 0
    %p126 = por %p124, %p125
    %p127 = scmp.ne.s32.totalorder %s115, %s116
    %p128 = scmp.eq.s32.totalorder %s17, 1
    %p129 = por %p127, %p128
    %p131 = scmp.ne.s32.totalorder %s116, %s130
    %p132 = scmp.eq.s32.totalorder %s17, 0
    %p133 = por %p131, %p132
    %s134 = ssub.s32 %s11, %s18
    %p135 = scmp.eq.s32.totalorder %s134, 0
    %s137 = sadd.s32 %s136, 1
    %s138 = scalar_select %p135, %s136, %s137
    %p141 = pneg %p135
    %p142 = scmp.eq.s32.totalorder %s11, 1
    %p143 = por %p141, %p142
    %p144 = scmp.ne.s32.totalorder %s136, %s139
    %p145 = scmp.eq.s32.totalorder %s11, 0
    %p146 = por %p144, %p145
    %p147 = scmp.ne.s32.totalorder %s136, %s139
    %p148 = scmp.eq.s32.totalorder %s16, 1
    %p149 = por %p147, %p148
    %p150 = scmp.ne.s32.totalorder %s139, %s140
    %p151 = scmp.eq.s32.totalorder %s16, 0
    %p152 = por %p150, %p151
    %p153 = scmp.ne.s32.totalorder %s139, %s140
    %p154 = scmp.eq.s32.totalorder %s17, 1
    %p155 = por %p153, %p154
    %p157 = scmp.ne.s32.totalorder %s140, %s156
    %p158 = scmp.eq.s32.totalorder %s17, 0
    %p159 = por %p157, %p158
    %p160 = scmp.le.s32.totalorder 1, %s11
    %p161 = scmp.lt.s32.totalorder %s11, 3
    %p162 = pnand %p160, %p161
    %p163 = pneg %p162
    // Predicated region
    $region9: #{gat_forward.5} parent=5 // pred_check
      _
    $region10: #{gat_forward.5} parent=5 // pred_check_branch
      %165 = sbr.rel (%p162) target = $region12
    $region11: #{gat_forward.5} parent=5 // pred_region
      %s166 = ssub.s32 %s11, 1
      // Predicated region
      $region13: #{gat_forward.5} parent=11 // pred_check
        %p167 = pneg %p32
      $region14: #{gat_forward.5} parent=11 // pred_check_branch
        %169 = sbr.rel (%p167) target = $region16
      $region15: #{gat_forward.5} parent=11 // pred_region
        _
      $region16: #{gat_forward.5} parent=11 // pred_fallthru
        _
      // Predicated region
      $region17: #{gat_forward.5} parent=11 // pred_check
        %p170 = pneg %p105
      $region18: #{gat_forward.5} parent=11 // pred_check_branch
        %172 = sbr.rel (%p170) target = $region20
      $region19: #{gat_forward.5} parent=11 // pred_region
        _
      $region20: #{gat_forward.5} parent=11 // pred_fallthru
        _
      // Predicated region
      $region21: #{gat_forward.5} parent=11 // pred_check
        %p173 = pneg %p126
      $region22: #{gat_forward.5} parent=11 // pred_check_branch
        %175 = sbr.rel (%p173) target = $region24
      $region23: #{gat_forward.5} parent=11 // pred_region
        _
      $region24: #{gat_forward.5} parent=11 // pred_fallthru
        _
    $region12: #{gat_forward.5} parent=5 // pred_fallthru
      _
    %p176 = scmp.lt.s32.totalorder %s11, 2
    // Predicated region
    $region25: #{gat_forward.5} parent=5 // pred_check
      %p177 = pneg %p176
    $region26: #{gat_forward.5} parent=5 // pred_check_branch
      %179 = sbr.rel (%p177) target = $region28
    $region27: #{gat_forward.5} parent=5 // pred_region
      // Predicated region
      $region29: #{gat_forward.5} parent=27 // pred_check
        %p180 = pneg %p52
      $region30: #{gat_forward.5} parent=27 // pred_check_branch
        %182 = sbr.rel (%p180) target = $region32
      $region31: #{gat_forward.5} parent=27 // pred_region
        %s183 = smul.u32 8, %s11
        %p184 = scmp.lt.s32.totalorder %s183, 15
        %s185 = scalar_select %p184, %s183, 15
        %s186 = smul.addr %s185, 8
        %s187 = scalar_lea.vmem %s1, %s186
        %s188 = smul.u32 8, %s11
      $region32: #{gat_forward.5} parent=27 // pred_fallthru
        _
      // Predicated region
      $region33: #{gat_forward.5} parent=27 // pred_check
        %p189 = pneg %p78
      $region34: #{gat_forward.5} parent=27 // pred_check_branch
        %191 = sbr.rel (%p189) target = $region36
      $region35: #{gat_forward.5} parent=27 // pred_region
        %s192 = smul.u32 8, %s11
        %p193 = scmp.lt.s32.totalorder %s192, 15
        %s194 = scalar_select %p193, %s192, 15
        %s195 = smul.addr %s194, 4
        %s196 = scalar_lea.vmem %s2, %s195
        %s197 = smul.u32 8, %s11
      $region36: #{gat_forward.5} parent=27 // pred_fallthru
        _
    $region28: #{gat_forward.5} parent=5 // pred_fallthru
      _
    %p198 = scmp.le.s32.totalorder 1, %s11
    %p199 = scmp.lt.s32.totalorder %s11, 3
    %p200 = pnand %p198, %p199
    %p201 = pneg %p200
    // Predicated region
    $region37: #{gat_forward.5} parent=5 // pred_check
      _
    $region38: #{gat_forward.5} parent=5 // pred_check_branch
      %203 = sbr.rel (%p200) target = $region40
    $region39: #{gat_forward.5} parent=5 // pred_region
      %s204 = ssub.s32 %s11, 1
      %p205 = pneg %p32
      %p206 = pneg %p29
      %s207 = smul.u32 8, %s16
      %p208 = scmp.lt.s32.totalorder %s207, 15
      %s209 = scalar_select %p208, %s207, 15
      %s210 = smul.addr %s209, 8
      %s211 = scalar_lea.vmem %s1, %s210
      %p212 = pneg %p58
      %p213 = pneg %p55
      %s214 = smul.u32 8, %s16
      %p215 = scmp.lt.s32.totalorder %s214, 15
      %s216 = scalar_select %p215, %s214, 15
      %s217 = smul.addr %s216, 4
      %s218 = scalar_lea.vmem %s2, %s217
      %p219 = pneg %p84
      %p220 = pneg %p81
      %p221 = pneg %p105
      %p222 = pneg %p102
      %p223 = pneg %p126
      %p224 = pneg %p123
      %p225 = pneg %p152
      %p226 = pneg %p149
      %s227 = smul.u32 8, %s16
      %p228 = scmp.lt.s32.totalorder %s227, 15
      %s229 = scalar_select %p228, %s227, 15
      %s230 = smul.addr %s229, 4
      %s231 = scalar_lea.vmem %s5, %s230
      %s232 = smul.u32 8, %s16
      %p233 = scmp.lt.s32.totalorder %s232, 15
      %s234 = scalar_select %p233, %s232, 15
      %s235 = smul.addr %s234, 8
      %s236 = scalar_lea.vmem %s1, %s235
      %s237 = smul.u32 8, %s16
      %s238 = smul.u32 8, %s16
      %p239 = scmp.lt.s32.totalorder %s238, 15
      %s240 = scalar_select %p239, %s238, 15
      %s241 = smul.addr %s240, 4
      %s242 = scalar_lea.vmem %s2, %s241
      %s243 = smul.u32 8, %s16
      %s244 = smul.u32 8, %s16
      %p245 = scmp.lt.s32.totalorder %s244, 15
      %s246 = scalar_select %p245, %s244, 15
      %s247 = smul.addr %s246, 4
      %s248 = scalar_lea.vmem %s5, %s247
      %s249 = smul.u32 8, %s16
      %v251 = vld [vmem:[%s0] sm:$0xf]
      %v252 = vld [vmem:[%s236] sm:$0xff]
      %v253 = vld [vmem:[%s236 + $0x8] sm:$0xff]
      %v254 = vld [vmem:[%s236 + $0x10] sm:$0xff]
      %v255 = vld [vmem:[%s236 + $0x18] sm:$0xff]
      %v256 = vld [vmem:[%s236 + $0x20] sm:$0xff]
      %v257 = vld [vmem:[%s236 + $0x28] sm:$0xff]
      %v258 = vld [vmem:[%s236 + $0x30] sm:$0xff]
      %v259 = vld [vmem:[%s236 + $0x38] sm:$0xff]
      %v260 = vld [vmem:[%s242] sm:$0xf]
      %v261 = vld [vmem:[%s242 + $0x4] sm:$0xf]
      %v262 = vld [vmem:[%s242 + $0x8] sm:$0xf]
      %v263 = vld [vmem:[%s242 + $0xc] sm:$0xf]
      %v264 = vld [vmem:[%s242 + $0x10] sm:$0xf]
      %v265 = vld [vmem:[%s242 + $0x14] sm:$0xf]
      %v266 = vld [vmem:[%s242 + $0x18] sm:$0xf]
      %v267 = vld [vmem:[%s242 + $0x1c] sm:$0xf]
      %269 = vset.pattern.permute.xlu0 0
      %270 = vperm.xlu0 %269, %v252
      %v271 = vpop.permute.xlu0 %270
      %274 = vset.pattern.permute.xlu0 0
      %275 = vperm.xlu0 %274, %v253
      %v276 = vpop.permute.xlu0 %275
      %279 = vset.pattern.permute.xlu0 0
      %280 = vperm.xlu0 %279, %v254
      %v281 = vpop.permute.xlu0 %280
      %284 = vset.pattern.permute.xlu0 0
      %285 = vperm.xlu0 %284, %v255
      %v286 = vpop.permute.xlu0 %285
      %289 = vset.pattern.permute.xlu0 0
      %290 = vperm.xlu0 %289, %v256
      %v291 = vpop.permute.xlu0 %290
      %294 = vset.pattern.permute.xlu0 0
      %295 = vperm.xlu0 %294, %v257
      %v296 = vpop.permute.xlu0 %295
      %299 = vset.pattern.permute.xlu0 0
      %300 = vperm.xlu0 %299, %v258
      %v301 = vpop.permute.xlu0 %300
      %304 = vset.pattern.permute.xlu0 0
      %305 = vperm.xlu0 %304, %v259
      %v306 = vpop.permute.xlu0 %305
      %v308 = vlaneseq
      %v309 = vshrl.u32 %v308, 7
      %v310 = vsub.s32 0, %v309
      %v311 = vrot.slane %v251, %v310
      %v312 = vadd.f32 %v271, %v311
      %v313 = vadd.f32 %v276, %v311
      %v314 = vadd.f32 %v281, %v311
      %v315 = vadd.f32 %v286, %v311
      %v316 = vadd.f32 %v291, %v311
      %v317 = vadd.f32 %v296, %v311
      %v318 = vadd.f32 %v301, %v311
      %v319 = vadd.f32 %v306, %v311
      %vm320 = vcmp.gt.f32.partialorder %v312, 0.0
      %vm321 = vcmp.gt.f32.partialorder %v313, 0.0
      %vm322 = vcmp.gt.f32.partialorder %v314, 0.0
      %vm323 = vcmp.gt.f32.partialorder %v315, 0.0
      %vm324 = vcmp.gt.f32.partialorder %v316, 0.0
      %vm325 = vcmp.gt.f32.partialorder %v317, 0.0
      %vm326 = vcmp.gt.f32.partialorder %v318, 0.0
      %vm327 = vcmp.gt.f32.partialorder %v319, 0.0
      %v328 = vmul.f32 %v312, 0.2
      %v329 = vmul.f32 %v313, 0.2
      %v330 = vmul.f32 %v314, 0.2
      %v331 = vmul.f32 %v315, 0.2
      %v332 = vmul.f32 %v316, 0.2
      %v333 = vmul.f32 %v317, 0.2
      %v334 = vmul.f32 %v318, 0.2
      %v335 = vmul.f32 %v319, 0.2
      %v336 = vsel %vm320, %v312, %v328
      %v337 = vsel %vm321, %v313, %v329
      %v338 = vsel %vm322, %v314, %v330
      %v339 = vsel %vm323, %v315, %v331
      %v340 = vsel %vm324, %v316, %v332
      %v341 = vsel %vm325, %v317, %v333
      %v342 = vsel %vm326, %v318, %v334
      %v343 = vsel %vm327, %v319, %v335
      %v344 = vunpack.c.l.bf16 %v260
      %v345 = vunpack.c.l.bf16 %v261
      %v346 = vunpack.c.l.bf16 %v262
      %v347 = vunpack.c.l.bf16 %v263
      %v348 = vunpack.c.l.bf16 %v264
      %v349 = vunpack.c.l.bf16 %v265
      %v350 = vunpack.c.l.bf16 %v266
      %v351 = vunpack.c.l.bf16 %v267
      %v352 = vadd.f32 %v336, %v344
      %v353 = vadd.f32 %v337, %v345
      %v354 = vadd.f32 %v338, %v346
      %v355 = vadd.f32 %v339, %v347
      %v356 = vadd.f32 %v340, %v348
      %v357 = vadd.f32 %v341, %v349
      %v358 = vadd.f32 %v342, %v350
      %v359 = vadd.f32 %v343, %v351
      %360 = vmax.xlane.f32.xlu0 %v352
      %v361 = vpop.xlane.xlu0 %360
      %362 = vmax.xlane.f32.xlu0 %v353
      %v363 = vpop.xlane.xlu0 %362
      %364 = vmax.xlane.f32.xlu0 %v354
      %v365 = vpop.xlane.xlu0 %364
      %366 = vmax.xlane.f32.xlu0 %v355
      %v367 = vpop.xlane.xlu0 %366
      %368 = vmax.xlane.f32.xlu0 %v356
      %v369 = vpop.xlane.xlu0 %368
      %370 = vmax.xlane.f32.xlu0 %v357
      %v371 = vpop.xlane.xlu0 %370
      %372 = vmax.xlane.f32.xlu0 %v358
      %v373 = vpop.xlane.xlu0 %372
      %374 = vmax.xlane.f32.xlu0 %v359
      %v375 = vpop.xlane.xlu0 %374
      %v376 = vsub.f32 %v352, %v361
      %v377 = vsub.f32 %v353, %v363
      %v378 = vsub.f32 %v354, %v365
      %v379 = vsub.f32 %v355, %v367
      %v380 = vsub.f32 %v356, %v369
      %v381 = vsub.f32 %v357, %v371
      %v382 = vsub.f32 %v358, %v373
      %v383 = vsub.f32 %v359, %v375
      %v384 = vpack.c.bf16 %v377, %v376
      %v385 = vpack.c.bf16 %v379, %v378
      %v386 = vpack.c.bf16 %v381, %v380
      %v387 = vpack.c.bf16 %v383, %v382
      %v389 = vmul.bf16 %v384, 1069105081
      %v390 = vpow.bf16.pop %v389
      %v392 = vmul.bf16 %v385, 1069105081
      %v393 = vpow.bf16.pop %v392
      %v395 = vmul.bf16 %v386, 1069105081
      %v396 = vpow.bf16.pop %v395
      %v398 = vmul.bf16 %v387, 1069105081
      %v399 = vpow.bf16.pop %v398
      %400 = vset.pattern.permute.xlu0 1
      %401 = vperm.xlu0 %400, %v252
      %v402 = vpop.permute.xlu0 %401
      %404 = vset.pattern.permute.xlu0 1
      %405 = vperm.xlu0 %404, %v253
      %v406 = vpop.permute.xlu0 %405
      %408 = vset.pattern.permute.xlu0 1
      %409 = vperm.xlu0 %408, %v254
      %v410 = vpop.permute.xlu0 %409
      %412 = vset.pattern.permute.xlu0 1
      %413 = vperm.xlu0 %412, %v255
      %v414 = vpop.permute.xlu0 %413
      %416 = vset.pattern.permute.xlu0 1
      %417 = vperm.xlu0 %416, %v256
      %v418 = vpop.permute.xlu0 %417
      %420 = vset.pattern.permute.xlu0 1
      %421 = vperm.xlu0 %420, %v257
      %v422 = vpop.permute.xlu0 %421
      %424 = vset.pattern.permute.xlu0 1
      %425 = vperm.xlu0 %424, %v258
      %v426 = vpop.permute.xlu0 %425
      %428 = vset.pattern.permute.xlu0 1
      %429 = vperm.xlu0 %428, %v259
      %v430 = vpop.permute.xlu0 %429
      %v432 = vlaneseq
      %v433 = vshrl.u32 %v432, 7
      %v434 = vsub.s32 1, %v433
      %v435 = vrot.slane %v251, %v434
      %v436 = vadd.f32 %v402, %v435
      %v437 = vadd.f32 %v406, %v435
      %v438 = vadd.f32 %v410, %v435
      %v439 = vadd.f32 %v414, %v435
      %v440 = vadd.f32 %v418, %v435
      %v441 = vadd.f32 %v422, %v435
      %v442 = vadd.f32 %v426, %v435
      %v443 = vadd.f32 %v430, %v435
      %vm444 = vcmp.gt.f32.partialorder %v436, 0.0
      %vm445 = vcmp.gt.f32.partialorder %v437, 0.0
      %vm446 = vcmp.gt.f32.partialorder %v438, 0.0
      %vm447 = vcmp.gt.f32.partialorder %v439, 0.0
      %vm448 = vcmp.gt.f32.partialorder %v440, 0.0
      %vm449 = vcmp.gt.f32.partialorder %v441, 0.0
      %vm450 = vcmp.gt.f32.partialorder %v442, 0.0
      %vm451 = vcmp.gt.f32.partialorder %v443, 0.0
      %v452 = vmul.f32 %v436, 0.2
      %v453 = vmul.f32 %v437, 0.2
      %v454 = vmul.f32 %v438, 0.2
      %v455 = vmul.f32 %v439, 0.2
      %v456 = vmul.f32 %v440, 0.2
      %v457 = vmul.f32 %v441, 0.2
      %v458 = vmul.f32 %v442, 0.2
      %v459 = vmul.f32 %v443, 0.2
      %v460 = vsel %vm444, %v436, %v452
      %v461 = vsel %vm445, %v437, %v453
      %v462 = vsel %vm446, %v438, %v454
      %v463 = vsel %vm447, %v439, %v455
      %v464 = vsel %vm448, %v440, %v456
      %v465 = vsel %vm449, %v441, %v457
      %v466 = vsel %vm450, %v442, %v458
      %v467 = vsel %vm451, %v443, %v459
      %v468 = vadd.f32 %v460, %v344
      %v469 = vadd.f32 %v461, %v345
      %v470 = vadd.f32 %v462, %v346
      %v471 = vadd.f32 %v463, %v347
      %v472 = vadd.f32 %v464, %v348
      %v473 = vadd.f32 %v465, %v349
      %v474 = vadd.f32 %v466, %v350
      %v475 = vadd.f32 %v467, %v351
      %476 = vmax.xlane.f32.xlu0 %v468
      %v477 = vpop.xlane.xlu0 %476
      %478 = vmax.xlane.f32.xlu0 %v469
      %v479 = vpop.xlane.xlu0 %478
      %480 = vmax.xlane.f32.xlu0 %v470
      %v481 = vpop.xlane.xlu0 %480
      %482 = vmax.xlane.f32.xlu0 %v471
      %v483 = vpop.xlane.xlu0 %482
      %484 = vmax.xlane.f32.xlu0 %v472
      %v485 = vpop.xlane.xlu0 %484
      %486 = vmax.xlane.f32.xlu0 %v473
      %v487 = vpop.xlane.xlu0 %486
      %488 = vmax.xlane.f32.xlu0 %v474
      %v489 = vpop.xlane.xlu0 %488
      %490 = vmax.xlane.f32.xlu0 %v475
      %v491 = vpop.xlane.xlu0 %490
      %v492 = vsub.f32 %v468, %v477
      %v493 = vsub.f32 %v469, %v479
      %v494 = vsub.f32 %v470, %v481
      %v495 = vsub.f32 %v471, %v483
      %v496 = vsub.f32 %v472, %v485
      %v497 = vsub.f32 %v473, %v487
      %v498 = vsub.f32 %v474, %v489
      %v499 = vsub.f32 %v475, %v491
      %v500 = vpack.c.bf16 %v493, %v492
      %v501 = vpack.c.bf16 %v495, %v494
      %v502 = vpack.c.bf16 %v497, %v496
      %v503 = vpack.c.bf16 %v499, %v498
      %v505 = vmul.bf16 %v500, 1069105081
      %v506 = vpow.bf16.pop %v505
      %v508 = vmul.bf16 %v501, 1069105081
      %v509 = vpow.bf16.pop %v508
      %v511 = vmul.bf16 %v502, 1069105081
      %v512 = vpow.bf16.pop %v511
      %v514 = vmul.bf16 %v503, 1069105081
      %v515 = vpow.bf16.pop %v514
      %516 = vset.pattern.permute.xlu0 2
      %517 = vperm.xlu0 %516, %v252
      %v518 = vpop.permute.xlu0 %517
      %520 = vset.pattern.permute.xlu0 2
      %521 = vperm.xlu0 %520, %v253
      %v522 = vpop.permute.xlu0 %521
      %524 = vset.pattern.permute.xlu0 2
      %525 = vperm.xlu0 %524, %v254
      %v526 = vpop.permute.xlu0 %525
      %528 = vset.pattern.permute.xlu0 2
      %529 = vperm.xlu0 %528, %v255
      %v530 = vpop.permute.xlu0 %529
      %532 = vset.pattern.permute.xlu0 2
      %533 = vperm.xlu0 %532, %v256
      %v534 = vpop.permute.xlu0 %533
      %536 = vset.pattern.permute.xlu0 2
      %537 = vperm.xlu0 %536, %v257
      %v538 = vpop.permute.xlu0 %537
      %540 = vset.pattern.permute.xlu0 2
      %541 = vperm.xlu0 %540, %v258
      %v542 = vpop.permute.xlu0 %541
      %544 = vset.pattern.permute.xlu0 2
      %545 = vperm.xlu0 %544, %v259
      %v546 = vpop.permute.xlu0 %545
      %v548 = vlaneseq
      %v549 = vshrl.u32 %v548, 7
      %v550 = vsub.s32 2, %v549
      %v551 = vrot.slane %v251, %v550
      %v552 = vadd.f32 %v518, %v551
      %v553 = vadd.f32 %v522, %v551
      %v554 = vadd.f32 %v526, %v551
      %v555 = vadd.f32 %v530, %v551
      %v556 = vadd.f32 %v534, %v551
      %v557 = vadd.f32 %v538, %v551
      %v558 = vadd.f32 %v542, %v551
      %v559 = vadd.f32 %v546, %v551
      %vm560 = vcmp.gt.f32.partialorder %v552, 0.0
      %vm561 = vcmp.gt.f32.partialorder %v553, 0.0
      %vm562 = vcmp.gt.f32.partialorder %v554, 0.0
      %vm563 = vcmp.gt.f32.partialorder %v555, 0.0
      %vm564 = vcmp.gt.f32.partialorder %v556, 0.0
      %vm565 = vcmp.gt.f32.partialorder %v557, 0.0
      %vm566 = vcmp.gt.f32.partialorder %v558, 0.0
      %vm567 = vcmp.gt.f32.partialorder %v559, 0.0
      %v568 = vmul.f32 %v552, 0.2
      %v569 = vmul.f32 %v553, 0.2
      %v570 = vmul.f32 %v554, 0.2
      %v571 = vmul.f32 %v555, 0.2
      %v572 = vmul.f32 %v556, 0.2
      %v573 = vmul.f32 %v557, 0.2
      %v574 = vmul.f32 %v558, 0.2
      %v575 = vmul.f32 %v559, 0.2
      %v576 = vsel %vm560, %v552, %v568
      %v577 = vsel %vm561, %v553, %v569
      %v578 = vsel %vm562, %v554, %v570
      %v579 = vsel %vm563, %v555, %v571
      %v580 = vsel %vm564, %v556, %v572
      %v581 = vsel %vm565, %v557, %v573
      %v582 = vsel %vm566, %v558, %v574
      %v583 = vsel %vm567, %v559, %v575
      %v584 = vadd.f32 %v576, %v344
      %v585 = vadd.f32 %v577, %v345
      %v586 = vadd.f32 %v578, %v346
      %v587 = vadd.f32 %v579, %v347
      %v588 = vadd.f32 %v580, %v348
      %v589 = vadd.f32 %v581, %v349
      %v590 = vadd.f32 %v582, %v350
      %v591 = vadd.f32 %v583, %v351
      %592 = vmax.xlane.f32.xlu0 %v584
      %v593 = vpop.xlane.xlu0 %592
      %594 = vmax.xlane.f32.xlu0 %v585
      %v595 = vpop.xlane.xlu0 %594
      %596 = vmax.xlane.f32.xlu0 %v586
      %v597 = vpop.xlane.xlu0 %596
      %598 = vmax.xlane.f32.xlu0 %v587
      %v599 = vpop.xlane.xlu0 %598
      %600 = vmax.xlane.f32.xlu0 %v588
      %v601 = vpop.xlane.xlu0 %600
      %602 = vmax.xlane.f32.xlu0 %v589
      %v603 = vpop.xlane.xlu0 %602
      %604 = vmax.xlane.f32.xlu0 %v590
      %v605 = vpop.xlane.xlu0 %604
      %606 = vmax.xlane.f32.xlu0 %v591
      %v607 = vpop.xlane.xlu0 %606
      %v608 = vsub.f32 %v584, %v593
      %v609 = vsub.f32 %v585, %v595
      %v610 = vsub.f32 %v586, %v597
      %v611 = vsub.f32 %v587, %v599
      %v612 = vsub.f32 %v588, %v601
      %v613 = vsub.f32 %v589, %v603
      %v614 = vsub.f32 %v590, %v605
      %v615 = vsub.f32 %v591, %v607
      %v616 = vpack.c.bf16 %v609, %v608
      %v617 = vpack.c.bf16 %v611, %v610
      %v618 = vpack.c.bf16 %v613, %v612
      %v619 = vpack.c.bf16 %v615, %v614
      %v621 = vmul.bf16 %v616, 1069105081
      %v622 = vpow.bf16.pop %v621
      %v624 = vmul.bf16 %v617, 1069105081
      %v625 = vpow.bf16.pop %v624
      %v627 = vmul.bf16 %v618, 1069105081
      %v628 = vpow.bf16.pop %v627
      %v630 = vmul.bf16 %v619, 1069105081
      %v631 = vpow.bf16.pop %v630
      %632 = vset.pattern.permute.xlu0 3
      %633 = vperm.xlu0 %632, %v252
      %v634 = vpop.permute.xlu0 %633
      %636 = vset.pattern.permute.xlu0 3
      %637 = vperm.xlu0 %636, %v253
      %v638 = vpop.permute.xlu0 %637
      %640 = vset.pattern.permute.xlu0 3
      %641 = vperm.xlu0 %640, %v254
      %v642 = vpop.permute.xlu0 %641
      %644 = vset.pattern.permute.xlu0 3
      %645 = vperm.xlu0 %644, %v255
      %v646 = vpop.permute.xlu0 %645
      %648 = vset.pattern.permute.xlu0 3
      %649 = vperm.xlu0 %648, %v256
      %v650 = vpop.permute.xlu0 %649
      %652 = vset.pattern.permute.xlu0 3
      %653 = vperm.xlu0 %652, %v257
      %v654 = vpop.permute.xlu0 %653
      %656 = vset.pattern.permute.xlu0 3
      %657 = vperm.xlu0 %656, %v258
      %v658 = vpop.permute.xlu0 %657
      %660 = vset.pattern.permute.xlu0 3
      %661 = vperm.xlu0 %660, %v259
      %v662 = vpop.permute.xlu0 %661
      %v664 = vlaneseq
      %v665 = vshrl.u32 %v664, 7
      %v666 = vsub.s32 3, %v665
      %v667 = vrot.slane %v251, %v666
      %v668 = vadd.f32 %v634, %v667
      %v669 = vadd.f32 %v638, %v667
      %v670 = vadd.f32 %v642, %v667
      %v671 = vadd.f32 %v646, %v667
      %v672 = vadd.f32 %v650, %v667
      %v673 = vadd.f32 %v654, %v667
      %v674 = vadd.f32 %v658, %v667
      %v675 = vadd.f32 %v662, %v667
      %vm676 = vcmp.gt.f32.partialorder %v668, 0.0
      %vm677 = vcmp.gt.f32.partialorder %v669, 0.0
      %vm678 = vcmp.gt.f32.partialorder %v670, 0.0
      %vm679 = vcmp.gt.f32.partialorder %v671, 0.0
      %vm680 = vcmp.gt.f32.partialorder %v672, 0.0
      %vm681 = vcmp.gt.f32.partialorder %v673, 0.0
      %vm682 = vcmp.gt.f32.partialorder %v674, 0.0
      %vm683 = vcmp.gt.f32.partialorder %v675, 0.0
      %v684 = vmul.f32 %v668, 0.2
      %v685 = vmul.f32 %v669, 0.2
      %v686 = vmul.f32 %v670, 0.2
      %v687 = vmul.f32 %v671, 0.2
      %v688 = vmul.f32 %v672, 0.2
      %v689 = vmul.f32 %v673, 0.2
      %v690 = vmul.f32 %v674, 0.2
      %v691 = vmul.f32 %v675, 0.2
      %v692 = vsel %vm676, %v668, %v684
      %v693 = vsel %vm677, %v669, %v685
      %v694 = vsel %vm678, %v670, %v686
      %v695 = vsel %vm679, %v671, %v687
      %v696 = vsel %vm680, %v672, %v688
      %v697 = vsel %vm681, %v673, %v689
      %v698 = vsel %vm682, %v674, %v690
      %v699 = vsel %vm683, %v675, %v691
      %v700 = vadd.f32 %v692, %v344
      %v701 = vadd.f32 %v693, %v345
      %v702 = vadd.f32 %v694, %v346
      %v703 = vadd.f32 %v695, %v347
      %v704 = vadd.f32 %v696, %v348
      %v705 = vadd.f32 %v697, %v349
      %v706 = vadd.f32 %v698, %v350
      %v707 = vadd.f32 %v699, %v351
      %708 = vmax.xlane.f32.xlu0 %v700
      %v709 = vpop.xlane.xlu0 %708
      %710 = vmax.xlane.f32.xlu0 %v701
      %v711 = vpop.xlane.xlu0 %710
      %712 = vmax.xlane.f32.xlu0 %v702
      %v713 = vpop.xlane.xlu0 %712
      %714 = vmax.xlane.f32.xlu0 %v703
      %v715 = vpop.xlane.xlu0 %714
      %716 = vmax.xlane.f32.xlu0 %v704
      %v717 = vpop.xlane.xlu0 %716
      %718 = vmax.xlane.f32.xlu0 %v705
      %v719 = vpop.xlane.xlu0 %718
      %720 = vmax.xlane.f32.xlu0 %v706
      %v721 = vpop.xlane.xlu0 %720
      %722 = vmax.xlane.f32.xlu0 %v707
      %v723 = vpop.xlane.xlu0 %722
      %v724 = vsub.f32 %v700, %v709
      %v725 = vsub.f32 %v701, %v711
      %v726 = vsub.f32 %v702, %v713
      %v727 = vsub.f32 %v703, %v715
      %v728 = vsub.f32 %v704, %v717
      %v729 = vsub.f32 %v705, %v719
      %v730 = vsub.f32 %v706, %v721
      %v731 = vsub.f32 %v707, %v723
      %v732 = vpack.c.bf16 %v725, %v724
      %v733 = vpack.c.bf16 %v727, %v726
      %v734 = vpack.c.bf16 %v729, %v728
      %v735 = vpack.c.bf16 %v731, %v730
      %v737 = vmul.bf16 %v732, 1069105081
      %v738 = vpow.bf16.pop %v737
      %v740 = vmul.bf16 %v733, 1069105081
      %v741 = vpow.bf16.pop %v740
      %v743 = vmul.bf16 %v734, 1069105081
      %v744 = vpow.bf16.pop %v743
      %v746 = vmul.bf16 %v735, 1069105081
      %v747 = vpow.bf16.pop %v746
      %v748 = vld [vmem:[%s3] sm:$0xf]
      %v749 = vld [vmem:[%s3 + $0x4] sm:$0xf]
      %v750 = vld [vmem:[%s3 + $0x8] sm:$0xf]
      %v751 = vld [vmem:[%s3 + $0xc] sm:$0xf]
      %v752 = vld [vmem:[%s3 + $0x10] sm:$0xf]
      %v753 = vld [vmem:[%s3 + $0x14] sm:$0xf]
      %v754 = vld [vmem:[%s3 + $0x18] sm:$0xf]
      %v755 = vld [vmem:[%s3 + $0x1c] sm:$0xf]
      %v756 = vld [vmem:[%s3 + $0x20] sm:$0xf]
      %v757 = vld [vmem:[%s3 + $0x24] sm:$0xf]
      %v758 = vld [vmem:[%s3 + $0x28] sm:$0xf]
      %v759 = vld [vmem:[%s3 + $0x2c] sm:$0xf]
      %v760 = vld [vmem:[%s3 + $0x30] sm:$0xf]
      %v761 = vld [vmem:[%s3 + $0x34] sm:$0xf]
      %v762 = vld [vmem:[%s3 + $0x38] sm:$0xf]
      %v763 = vld [vmem:[%s3 + $0x3c] sm:$0xf]
      %v764 = vld [vmem:[%s3 + $0x40] sm:$0xf]
      %v765 = vld [vmem:[%s3 + $0x44] sm:$0xf]
      %v766 = vld [vmem:[%s3 + $0x48] sm:$0xf]
      %v767 = vld [vmem:[%s3 + $0x4c] sm:$0xf]
      %v768 = vld [vmem:[%s3 + $0x50] sm:$0xf]
      %v769 = vld [vmem:[%s3 + $0x54] sm:$0xf]
      %v770 = vld [vmem:[%s3 + $0x58] sm:$0xf]
      %v771 = vld [vmem:[%s3 + $0x5c] sm:$0xf]
      %v772 = vld [vmem:[%s3 + $0x60] sm:$0xf]
      %v773 = vld [vmem:[%s3 + $0x64] sm:$0xf]
      %v774 = vld [vmem:[%s3 + $0x68] sm:$0xf]
      %v775 = vld [vmem:[%s3 + $0x6c] sm:$0xf]
      %v776 = vld [vmem:[%s3 + $0x70] sm:$0xf]
      %v777 = vld [vmem:[%s3 + $0x74] sm:$0xf]
      %v778 = vld [vmem:[%s3 + $0x78] sm:$0xf]
      %v779 = vld [vmem:[%s3 + $0x7c] sm:$0xf]
      %v780 = vld [vmem:[%s3 + $0x80] sm:$0xf]
      %v781 = vld [vmem:[%s3 + $0x84] sm:$0xf]
      %v782 = vld [vmem:[%s3 + $0x88] sm:$0xf]
      %v783 = vld [vmem:[%s3 + $0x8c] sm:$0xf]
      %v784 = vld [vmem:[%s3 + $0x90] sm:$0xf]
      %v785 = vld [vmem:[%s3 + $0x94] sm:$0xf]
      %v786 = vld [vmem:[%s3 + $0x98] sm:$0xf]
      %v787 = vld [vmem:[%s3 + $0x9c] sm:$0xf]
      %v788 = vld [vmem:[%s3 + $0xa0] sm:$0xf]
      %v789 = vld [vmem:[%s3 + $0xa4] sm:$0xf]
      %v790 = vld [vmem:[%s3 + $0xa8] sm:$0xf]
      %v791 = vld [vmem:[%s3 + $0xac] sm:$0xf]
      %v792 = vld [vmem:[%s3 + $0xb0] sm:$0xf]
      %v793 = vld [vmem:[%s3 + $0xb4] sm:$0xf]
      %v794 = vld [vmem:[%s3 + $0xb8] sm:$0xf]
      %v795 = vld [vmem:[%s3 + $0xbc] sm:$0xf]
      %v796 = vld [vmem:[%s3 + $0xc0] sm:$0xf]
      %v797 = vld [vmem:[%s3 + $0xc4] sm:$0xf]
      %v798 = vld [vmem:[%s3 + $0xc8] sm:$0xf]
      %v799 = vld [vmem:[%s3 + $0xcc] sm:$0xf]
      %v800 = vld [vmem:[%s3 + $0xd0] sm:$0xf]
      %v801 = vld [vmem:[%s3 + $0xd4] sm:$0xf]
      %v802 = vld [vmem:[%s3 + $0xd8] sm:$0xf]
      %v803 = vld [vmem:[%s3 + $0xdc] sm:$0xf]
      %v804 = vld [vmem:[%s3 + $0xe0] sm:$0xf]
      %v805 = vld [vmem:[%s3 + $0xe4] sm:$0xf]
      %v806 = vld [vmem:[%s3 + $0xe8] sm:$0xf]
      %v807 = vld [vmem:[%s3 + $0xec] sm:$0xf]
      %v808 = vld [vmem:[%s3 + $0xf0] sm:$0xf]
      %v809 = vld [vmem:[%s3 + $0xf4] sm:$0xf]
      %v810 = vld [vmem:[%s3 + $0xf8] sm:$0xf]
      %v811 = vld [vmem:[%s3 + $0xfc] sm:$0xf]
      %v876 = vunpack.c.l.b16 %v748
      %v877 = vunpack.c.l.b16 %v749
      %v878 = vunpack.c.l.b16 %v750
      %v879 = vunpack.c.l.b16 %v751
      %v880 = vunpack.c.l.b16 %v752
      %v881 = vunpack.c.l.b16 %v753
      %v882 = vunpack.c.l.b16 %v754
      %v883 = vunpack.c.l.b16 %v755
      %v884 = vunpack.c.l.b16 %v756
      %v885 = vunpack.c.l.b16 %v757
      %v886 = vunpack.c.l.b16 %v758
      %v887 = vunpack.c.l.b16 %v759
      %v888 = vunpack.c.l.b16 %v760
      %v889 = vunpack.c.l.b16 %v761
      %v890 = vunpack.c.l.b16 %v762
      %v891 = vunpack.c.l.b16 %v763
      %v892 = vunpack.c.l.b16 %v764
      %v893 = vunpack.c.l.b16 %v765
      %v894 = vunpack.c.l.b16 %v766
      %v895 = vunpack.c.l.b16 %v767
      %v896 = vunpack.c.l.b16 %v768
      %v897 = vunpack.c.l.b16 %v769
      %v898 = vunpack.c.l.b16 %v770
      %v899 = vunpack.c.l.b16 %v771
      %v900 = vunpack.c.l.b16 %v772
      %v901 = vunpack.c.l.b16 %v773
      %v902 = vunpack.c.l.b16 %v774
      %v903 = vunpack.c.l.b16 %v775
      %v904 = vunpack.c.l.b16 %v776
      %v905 = vunpack.c.l.b16 %v777
      %v906 = vunpack.c.l.b16 %v778
      %v907 = vunpack.c.l.b16 %v779
      %v908 = vunpack.c.l.b16 %v780
      %v909 = vunpack.c.l.b16 %v781
      %v910 = vunpack.c.l.b16 %v782
      %v911 = vunpack.c.l.b16 %v783
      %v912 = vunpack.c.l.b16 %v784
      %v913 = vunpack.c.l.b16 %v785
      %v914 = vunpack.c.l.b16 %v786
      %v915 = vunpack.c.l.b16 %v787
      %v916 = vunpack.c.l.b16 %v788
      %v917 = vunpack.c.l.b16 %v789
      %v918 = vunpack.c.l.b16 %v790
      %v919 = vunpack.c.l.b16 %v791
      %v920 = vunpack.c.l.b16 %v792
      %v921 = vunpack.c.l.b16 %v793
      %v922 = vunpack.c.l.b16 %v794
      %v923 = vunpack.c.l.b16 %v795
      %v924 = vunpack.c.l.b16 %v796
      %v925 = vunpack.c.l.b16 %v797
      %v926 = vunpack.c.l.b16 %v798
      %v927 = vunpack.c.l.b16 %v799
      %v928 = vunpack.c.l.b16 %v800
      %v929 = vunpack.c.l.b16 %v801
      %v930 = vunpack.c.l.b16 %v802
      %v931 = vunpack.c.l.b16 %v803
      %v932 = vunpack.c.l.b16 %v804
      %v933 = vunpack.c.l.b16 %v805
      %v934 = vunpack.c.l.b16 %v806
      %v935 = vunpack.c.l.b16 %v807
      %v936 = vunpack.c.l.b16 %v808
      %v937 = vunpack.c.l.b16 %v809
      %v938 = vunpack.c.l.b16 %v810
      %v939 = vunpack.c.l.b16 %v811
      %v940 = vpack.c.b16 %v877, %v876
      %v941 = vpack.c.b16 %v879, %v878
      %v942 = vpack.c.b16 %v881, %v880
      %v943 = vpack.c.b16 %v883, %v882
      %v944 = vpack.c.b16 %v885, %v884
      %v945 = vpack.c.b16 %v887, %v886
      %v946 = vpack.c.b16 %v889, %v888
      %v947 = vpack.c.b16 %v891, %v890
      %v948 = vpack.c.b16 %v893, %v892
      %v949 = vpack.c.b16 %v895, %v894
      %v950 = vpack.c.b16 %v897, %v896
      %v951 = vpack.c.b16 %v899, %v898
      %v952 = vpack.c.b16 %v901, %v900
      %v953 = vpack.c.b16 %v903, %v902
      %v954 = vpack.c.b16 %v905, %v904
      %v955 = vpack.c.b16 %v907, %v906
      %v956 = vpack.c.b16 %v909, %v908
      %v957 = vpack.c.b16 %v911, %v910
      %v958 = vpack.c.b16 %v913, %v912
      %v959 = vpack.c.b16 %v915, %v914
      %v960 = vpack.c.b16 %v917, %v916
      %v961 = vpack.c.b16 %v919, %v918
      %v962 = vpack.c.b16 %v921, %v920
      %v963 = vpack.c.b16 %v923, %v922
      %v964 = vpack.c.b16 %v925, %v924
      %v965 = vpack.c.b16 %v927, %v926
      %v966 = vpack.c.b16 %v929, %v928
      %v967 = vpack.c.b16 %v931, %v930
      %v968 = vpack.c.b16 %v933, %v932
      %v969 = vpack.c.b16 %v935, %v934
      %v970 = vpack.c.b16 %v937, %v936
      %v971 = vpack.c.b16 %v939, %v938
      %1004 = vmatprep.subr.bf16.mxu0 0
      %1005 = vmatpush1.bf16.msra.mxu0 %v940
      %1006 = vmatprep.subr.bf16.mxu0 0
      %1007 = vmatpush1.bf16.msra.mxu0 %v941
      %1008 = vmatprep.subr.bf16.mxu0 0
      %1009 = vmatpush1.bf16.msra.mxu0 %v942
      %1010 = vmatprep.subr.bf16.mxu0 0
      %1011 = vmatpush1.bf16.msra.mxu0 %v943
      %1012 = vmatprep.subr.bf16.mxu0 0
      %1013 = vmatpush1.bf16.msra.mxu0 %v944
      %1014 = vmatprep.subr.bf16.mxu0 0
      %1015 = vmatpush1.bf16.msra.mxu0 %v945
      %1016 = vmatprep.subr.bf16.mxu0 0
      %1017 = vmatpush1.bf16.msra.mxu0 %v946
      %1018 = vmatprep.subr.bf16.mxu0 0
      %1019 = vmatpush1.bf16.msra.mxu0 %v947
      %1020 = vmatprep.subr.bf16.mxu0 0
      %1021 = vmatpush1.bf16.msra.mxu0 %v948
      %1022 = vmatprep.subr.bf16.mxu0 0
      %1023 = vmatpush1.bf16.msra.mxu0 %v949
      %1024 = vmatprep.subr.bf16.mxu0 0
      %1025 = vmatpush1.bf16.msra.mxu0 %v950
      %1026 = vmatprep.subr.bf16.mxu0 0
      %1027 = vmatpush1.bf16.msra.mxu0 %v951
      %1028 = vmatprep.subr.bf16.mxu0 0
      %1029 = vmatpush1.bf16.msra.mxu0 %v952
      %1030 = vmatprep.subr.bf16.mxu0 0
      %1031 = vmatpush1.bf16.msra.mxu0 %v953
      %1032 = vmatprep.subr.bf16.mxu0 0
      %1033 = vmatpush1.bf16.msra.mxu0 %v954
      %1034 = vmatprep.subr.bf16.mxu0 0
      %1035 = vmatpush1.bf16.msra.mxu0 %v955
      %1036 = vmatprep.mubr.bf16.mxu0 %v506
      %1037 = vmatmul.mubr.bf16.gmra.mrb[0].mxu0 %v390
      %v1038 = vpop.f32.mrb[0].mxu0
      %v1039 = vadd.f32 0.0, %v1038
      %v1040 = vpop.f32.mrb[0].mxu0
      %v1041 = vpop.f32.mrb[0].mxu0
      %v1042 = vadd.f32 0.0, %v1041
      %v1043 = vpop.f32.mrb[0].mxu0
      %1044 = vmatprep.mubr.bf16.mxu0 %v509
      %1045 = vmatmul.mubr.bf16.gmra.mrb[0].mxu0 %v393
      %v1046 = vpop.f32.mrb[0].mxu0
      %v1047 = vadd.f32 0.0, %v1046
      %v1048 = vpop.f32.mrb[0].mxu0
      %v1049 = vpop.f32.mrb[0].mxu0
      %v1050 = vadd.f32 0.0, %v1049
      %v1051 = vpop.f32.mrb[0].mxu0
      %1052 = vmatprep.mubr.bf16.mxu0 %v512
      %1053 = vmatmul.mubr.bf16.gmra.mrb[0].mxu0 %v396
      %v1054 = vpop.f32.mrb[0].mxu0
      %v1055 = vadd.f32 0.0, %v1054
      %v1056 = vpop.f32.mrb[0].mxu0
      %v1057 = vpop.f32.mrb[0].mxu0
      %v1058 = vadd.f32 0.0, %v1057
      %v1059 = vpop.f32.mrb[0].mxu0
      %1060 = vmatprep.mubr.bf16.mxu0 %v515
      %1061 = vmatmul.mubr.bf16.gmra.mrb[0].mxu0 %v399
      %v1062 = vpop.f32.mrb[0].mxu0
      %v1063 = vadd.f32 0.0, %v1062
      %v1064 = vpop.f32.mrb[0].mxu0
      %v1065 = vpop.f32.mrb[0].mxu0
      %v1066 = vadd.f32 0.0, %v1065
      %v1067 = vpop.f32.mrb[0].mxu0
      %1068 = vdwg.mxu0
      %1069 = vmatprep.subr.bf16.mxu0 0
      %1070 = vmatpush1.bf16.msra.mxu0 %v956
      %1071 = vmatprep.subr.bf16.mxu0 0
      %1072 = vmatpush1.bf16.msra.mxu0 %v957
      %1073 = vmatprep.subr.bf16.mxu0 0
      %1074 = vmatpush1.bf16.msra.mxu0 %v958
      %1075 = vmatprep.subr.bf16.mxu0 0
      %1076 = vmatpush1.bf16.msra.mxu0 %v959
      %1077 = vmatprep.subr.bf16.mxu0 0
      %1078 = vmatpush1.bf16.msra.mxu0 %v960
      %1079 = vmatprep.subr.bf16.mxu0 0
      %1080 = vmatpush1.bf16.msra.mxu0 %v961
      %1081 = vmatprep.subr.bf16.mxu0 0
      %1082 = vmatpush1.bf16.msra.mxu0 %v962
      %1083 = vmatprep.subr.bf16.mxu0 0
      %1084 = vmatpush1.bf16.msra.mxu0 %v963
      %1085 = vmatprep.subr.bf16.mxu0 0
      %1086 = vmatpush1.bf16.msra.mxu0 %v964
      %1087 = vmatprep.subr.bf16.mxu0 0
      %1088 = vmatpush1.bf16.msra.mxu0 %v965
      %1089 = vmatprep.subr.bf16.mxu0 0
      %1090 = vmatpush1.bf16.msra.mxu0 %v966
      %1091 = vmatprep.subr.bf16.mxu0 0
      %1092 = vmatpush1.bf16.msra.mxu0 %v967
      %1093 = vmatprep.subr.bf16.mxu0 0
      %1094 = vmatpush1.bf16.msra.mxu0 %v968
      %1095 = vmatprep.subr.bf16.mxu0 0
      %1096 = vmatpush1.bf16.msra.mxu0 %v969
      %1097 = vmatprep.subr.bf16.mxu0 0
      %1098 = vmatpush1.bf16.msra.mxu0 %v970
      %1099 = vmatprep.subr.bf16.mxu0 0
      %1100 = vmatpush1.bf16.msra.mxu0 %v971
      %1101 = vmatprep.mubr.bf16.mxu0 %v738
      %1102 = vmatmul.mubr.bf16.gmra.mrb[0].mxu0 %v622
      %v1103 = vpop.f32.mrb[0].mxu0
      %v1104 = vadd.f32 %v1039, %v1103
      %v1105 = vpop.f32.mrb[0].mxu0
      %v1106 = vpop.f32.mrb[0].mxu0
      %v1107 = vadd.f32 %v1042, %v1106
      %v1108 = vpop.f32.mrb[0].mxu0
      %1109 = vmatprep.mubr.bf16.mxu0 %v741
      %1110 = vmatmul.mubr.bf16.gmra.mrb[0].mxu0 %v625
      %v1111 = vpop.f32.mrb[0].mxu0
      %v1112 = vadd.f32 %v1047, %v1111
      %v1113 = vpop.f32.mrb[0].mxu0
      %v1114 = vpop.f32.mrb[0].mxu0
      %v1115 = vadd.f32 %v1050, %v1114
      %v1116 = vpop.f32.mrb[0].mxu0
      %1117 = vmatprep.mubr.bf16.mxu0 %v744
      %1118 = vmatmul.mubr.bf16.gmra.mrb[0].mxu0 %v628
      %v1119 = vpop.f32.mrb[0].mxu0
      %v1120 = vadd.f32 %v1055, %v1119
      %v1121 = vpop.f32.mrb[0].mxu0
      %v1122 = vpop.f32.mrb[0].mxu0
      %v1123 = vadd.f32 %v1058, %v1122
      %v1124 = vpop.f32.mrb[0].mxu0
      %1125 = vmatprep.mubr.bf16.mxu0 %v747
      %1126 = vmatmul.mubr.bf16.gmra.mrb[0].mxu0 %v631
      %v1127 = vpop.f32.mrb[0].mxu0
      %v1128 = vadd.f32 %v1063, %v1127
      %v1129 = vpop.f32.mrb[0].mxu0
      %v1130 = vpop.f32.mrb[0].mxu0
      %v1131 = vadd.f32 %v1066, %v1130
      %v1132 = vpop.f32.mrb[0].mxu0
      %1133 = vdwg.mxu0
      %v1134 = vrcp.pop %v1104
      %v1135 = vrcp.pop %v1107
      %v1136 = vrcp.pop %v1112
      %v1137 = vrcp.pop %v1115
      %v1138 = vrcp.pop %v1120
      %v1139 = vrcp.pop %v1123
      %v1140 = vrcp.pop %v1128
      %v1141 = vrcp.pop %v1131
      %1143 = vset.pattern.permute.xlu0 64
      %1144 = vperm.xlu0 %1143, %v1134
      %v1145 = vpop.permute.xlu0 %1144
      %1148 = vset.pattern.permute.xlu0 64
      %1149 = vperm.xlu0 %1148, %v1135
      %v1150 = vpop.permute.xlu0 %1149
      %1153 = vset.pattern.permute.xlu0 64
      %1154 = vperm.xlu0 %1153, %v1136
      %v1155 = vpop.permute.xlu0 %1154
      %1158 = vset.pattern.permute.xlu0 64
      %1159 = vperm.xlu0 %1158, %v1137
      %v1160 = vpop.permute.xlu0 %1159
      %1163 = vset.pattern.permute.xlu0 64
      %1164 = vperm.xlu0 %1163, %v1138
      %v1165 = vpop.permute.xlu0 %1164
      %1168 = vset.pattern.permute.xlu0 64
      %1169 = vperm.xlu0 %1168, %v1139
      %v1170 = vpop.permute.xlu0 %1169
      %1173 = vset.pattern.permute.xlu0 64
      %1174 = vperm.xlu0 %1173, %v1140
      %v1175 = vpop.permute.xlu0 %1174
      %1178 = vset.pattern.permute.xlu0 64
      %1179 = vperm.xlu0 %1178, %v1141
      %v1180 = vpop.permute.xlu0 %1179
      %v1182 = vmul.f32 %v1104, %v1145
      %v1183 = vmul.f32 %v1107, %v1150
      %v1184 = vmul.f32 %v1112, %v1155
      %v1185 = vmul.f32 %v1115, %v1160
      %v1186 = vmul.f32 %v1120, %v1165
      %v1187 = vmul.f32 %v1123, %v1170
      %v1188 = vmul.f32 %v1128, %v1175
      %v1189 = vmul.f32 %v1131, %v1180
      %1190 = vset.pattern.permute.xlu0 65
      %1191 = vperm.xlu0 %1190, %v1134
      %v1192 = vpop.permute.xlu0 %1191
      %1194 = vset.pattern.permute.xlu0 65
      %1195 = vperm.xlu0 %1194, %v1135
      %v1196 = vpop.permute.xlu0 %1195
      %1198 = vset.pattern.permute.xlu0 65
      %1199 = vperm.xlu0 %1198, %v1136
      %v1200 = vpop.permute.xlu0 %1199
      %1202 = vset.pattern.permute.xlu0 65
      %1203 = vperm.xlu0 %1202, %v1137
      %v1204 = vpop.permute.xlu0 %1203
      %1206 = vset.pattern.permute.xlu0 65
      %1207 = vperm.xlu0 %1206, %v1138
      %v1208 = vpop.permute.xlu0 %1207
      %1210 = vset.pattern.permute.xlu0 65
      %1211 = vperm.xlu0 %1210, %v1139
      %v1212 = vpop.permute.xlu0 %1211
      %1214 = vset.pattern.permute.xlu0 65
      %1215 = vperm.xlu0 %1214, %v1140
      %v1216 = vpop.permute.xlu0 %1215
      %1218 = vset.pattern.permute.xlu0 65
      %1219 = vperm.xlu0 %1218, %v1141
      %v1220 = vpop.permute.xlu0 %1219
      %v1222 = vmul.f32 %v1104, %v1192
      %v1223 = vmul.f32 %v1107, %v1196
      %v1224 = vmul.f32 %v1112, %v1200
      %v1225 = vmul.f32 %v1115, %v1204
      %v1226 = vmul.f32 %v1120, %v1208
      %v1227 = vmul.f32 %v1123, %v1212
      %v1228 = vmul.f32 %v1128, %v1216
      %v1229 = vmul.f32 %v1131, %v1220
      %1230 = vset.pattern.permute.xlu0 66
      %1231 = vperm.xlu0 %1230, %v1134
      %v1232 = vpop.permute.xlu0 %1231
      %1234 = vset.pattern.permute.xlu0 66
      %1235 = vperm.xlu0 %1234, %v1135
      %v1236 = vpop.permute.xlu0 %1235
      %1238 = vset.pattern.permute.xlu0 66
      %1239 = vperm.xlu0 %1238, %v1136
      %v1240 = vpop.permute.xlu0 %1239
      %1242 = vset.pattern.permute.xlu0 66
      %1243 = vperm.xlu0 %1242, %v1137
      %v1244 = vpop.permute.xlu0 %1243
      %1246 = vset.pattern.permute.xlu0 66
      %1247 = vperm.xlu0 %1246, %v1138
      %v1248 = vpop.permute.xlu0 %1247
      %1250 = vset.pattern.permute.xlu0 66
      %1251 = vperm.xlu0 %1250, %v1139
      %v1252 = vpop.permute.xlu0 %1251
      %1254 = vset.pattern.permute.xlu0 66
      %1255 = vperm.xlu0 %1254, %v1140
      %v1256 = vpop.permute.xlu0 %1255
      %1258 = vset.pattern.permute.xlu0 66
      %1259 = vperm.xlu0 %1258, %v1141
      %v1260 = vpop.permute.xlu0 %1259
      %v1262 = vmul.f32 %v1104, %v1232
      %v1263 = vmul.f32 %v1107, %v1236
      %v1264 = vmul.f32 %v1112, %v1240
      %v1265 = vmul.f32 %v1115, %v1244
      %v1266 = vmul.f32 %v1120, %v1248
      %v1267 = vmul.f32 %v1123, %v1252
      %v1268 = vmul.f32 %v1128, %v1256
      %v1269 = vmul.f32 %v1131, %v1260
      %1270 = vset.pattern.permute.xlu0 67
      %1271 = vperm.xlu0 %1270, %v1134
      %v1272 = vpop.permute.xlu0 %1271
      %1274 = vset.pattern.permute.xlu0 67
      %1275 = vperm.xlu0 %1274, %v1135
      %v1276 = vpop.permute.xlu0 %1275
      %1278 = vset.pattern.permute.xlu0 67
      %1279 = vperm.xlu0 %1278, %v1136
      %v1280 = vpop.permute.xlu0 %1279
      %1282 = vset.pattern.permute.xlu0 67
      %1283 = vperm.xlu0 %1282, %v1137
      %v1284 = vpop.permute.xlu0 %1283
      %1286 = vset.pattern.permute.xlu0 67
      %1287 = vperm.xlu0 %1286, %v1138
      %v1288 = vpop.permute.xlu0 %1287
      %1290 = vset.pattern.permute.xlu0 67
      %1291 = vperm.xlu0 %1290, %v1139
      %v1292 = vpop.permute.xlu0 %1291
      %1294 = vset.pattern.permute.xlu0 67
      %1295 = vperm.xlu0 %1294, %v1140
      %v1296 = vpop.permute.xlu0 %1295
      %1298 = vset.pattern.permute.xlu0 67
      %1299 = vperm.xlu0 %1298, %v1141
      %v1300 = vpop.permute.xlu0 %1299
      %v1302 = vmul.f32 %v1104, %v1272
      %v1303 = vmul.f32 %v1107, %v1276
      %v1304 = vmul.f32 %v1112, %v1280
      %v1305 = vmul.f32 %v1115, %v1284
      %v1306 = vmul.f32 %v1120, %v1288
      %v1307 = vmul.f32 %v1123, %v1292
      %v1308 = vmul.f32 %v1128, %v1296
      %v1309 = vmul.f32 %v1131, %v1300
      %vm1310 = vcmask 130048
      %v1311 = vsel %vm1310, %v1182, %v1222
      %v1312 = vsel %vm1310, %v1183, %v1223
      %v1313 = vsel %vm1310, %v1184, %v1224
      %v1314 = vsel %vm1310, %v1185, %v1225
      %v1315 = vsel %vm1310, %v1186, %v1226
      %v1316 = vsel %vm1310, %v1187, %v1227
      %v1317 = vsel %vm1310, %v1188, %v1228
      %v1318 = vsel %vm1310, %v1189, %v1229
      %vm1319 = vcmask 261120
      %v1320 = vsel %vm1319, %v1311, %v1262
      %v1321 = vsel %vm1319, %v1312, %v1263
      %v1322 = vsel %vm1319, %v1313, %v1264
      %v1323 = vsel %vm1319, %v1314, %v1265
      %v1324 = vsel %vm1319, %v1315, %v1266
      %v1325 = vsel %vm1319, %v1316, %v1267
      %v1326 = vsel %vm1319, %v1317, %v1268
      %v1327 = vsel %vm1319, %v1318, %v1269
      %vm1328 = vcmask 392192
      %v1329 = vsel %vm1328, %v1320, %v1302
      %v1330 = vsel %vm1328, %v1321, %v1303
      %v1331 = vsel %vm1328, %v1322, %v1304
      %v1332 = vsel %vm1328, %v1323, %v1305
      %v1333 = vsel %vm1328, %v1324, %v1306
      %v1334 = vsel %vm1328, %v1325, %v1307
      %v1335 = vsel %vm1328, %v1326, %v1308
      %v1336 = vsel %vm1328, %v1327, %v1309
      %v1337 = vld [vmem:[%s4] sm:$0x1]
      %v1339 = vlaneseq
      %v1340 = vshrl.u32 %v1339, 7
      %v1341 = vsub.s32 0, %v1340
      %v1342 = vrot.slane %v1337, %v1341
      %v1344 = vadd.f32 %v1329, %v1342
      %v1345 = vadd.f32 %v1330, %v1342
      %v1346 = vadd.f32 %v1331, %v1342
      %v1347 = vadd.f32 %v1332, %v1342
      %v1348 = vadd.f32 %v1333, %v1342
      %v1349 = vadd.f32 %v1334, %v1342
      %v1350 = vadd.f32 %v1335, %v1342
      %v1351 = vadd.f32 %v1336, %v1342
      %vm1352 = vcmp.gt.f32.partialorder %v1344, 0.0
      %vm1353 = vcmp.gt.f32.partialorder %v1345, 0.0
      %vm1354 = vcmp.gt.f32.partialorder %v1346, 0.0
      %vm1355 = vcmp.gt.f32.partialorder %v1347, 0.0
      %vm1356 = vcmp.gt.f32.partialorder %v1348, 0.0
      %vm1357 = vcmp.gt.f32.partialorder %v1349, 0.0
      %vm1358 = vcmp.gt.f32.partialorder %v1350, 0.0
      %vm1359 = vcmp.gt.f32.partialorder %v1351, 0.0
      %v1360 = vmul.f32 %v1344, 1.442695
      %v1361 = vpow.pop %v1360
      %v1362 = vmul.f32 %v1345, 1.442695
      %v1363 = vpow.pop %v1362
      %v1364 = vmul.f32 %v1346, 1.442695
      %v1365 = vpow.pop %v1364
      %v1366 = vmul.f32 %v1347, 1.442695
      %v1367 = vpow.pop %v1366
      %v1368 = vmul.f32 %v1348, 1.442695
      %v1369 = vpow.pop %v1368
      %v1370 = vmul.f32 %v1349, 1.442695
      %v1371 = vpow.pop %v1370
      %v1372 = vmul.f32 %v1350, 1.442695
      %v1373 = vpow.pop %v1372
      %v1374 = vmul.f32 %v1351, 1.442695
      %v1375 = vpow.pop %v1374
      %v1376 = vsub.f32 %v1361, 1.0
      %v1377 = vsub.f32 %v1363, 1.0
      %v1378 = vsub.f32 %v1365, 1.0
      %v1379 = vsub.f32 %v1367, 1.0
      %v1380 = vsub.f32 %v1369, 1.0
      %v1381 = vsub.f32 %v1371, 1.0
      %v1382 = vsub.f32 %v1373, 1.0
      %v1383 = vsub.f32 %v1375, 1.0
      %v1384 = vsel %vm1352, %v1344, %v1376
      %v1385 = vsel %vm1353, %v1345, %v1377
      %v1386 = vsel %vm1354, %v1346, %v1378
      %v1387 = vsel %vm1355, %v1347, %v1379
      %v1388 = vsel %vm1356, %v1348, %v1380
      %v1389 = vsel %vm1357, %v1349, %v1381
      %v1390 = vsel %vm1358, %v1350, %v1382
      %v1391 = vsel %vm1359, %v1351, %v1383
      %v1392 = vpack.c.bf16 %v1385, %v1384
      %v1393 = vpack.c.bf16 %v1387, %v1386
      %v1394 = vpack.c.bf16 %v1389, %v1388
      %v1395 = vpack.c.bf16 %v1391, %v1390
      %v1400 = vunpack.c.l.b16 %v1392
      %v1401 = vunpack.c.h.b16 %v1392
      %v1402 = vunpack.c.l.b16 %v1393
      %v1403 = vunpack.c.h.b16 %v1393
      %v1404 = vunpack.c.l.b16 %v1394
      %v1405 = vunpack.c.h.b16 %v1394
      %v1406 = vunpack.c.l.b16 %v1395
      %v1407 = vunpack.c.h.b16 %v1395
      %v1408 = vpack.c.b16 %v1400, %v1400
      %v1409 = vpack.c.b16 %v1401, %v1401
      %v1410 = vpack.c.b16 %v1402, %v1402
      %v1411 = vpack.c.b16 %v1403, %v1403
      %v1412 = vpack.c.b16 %v1404, %v1404
      %v1413 = vpack.c.b16 %v1405, %v1405
      %v1414 = vpack.c.b16 %v1406, %v1406
      %v1415 = vpack.c.b16 %v1407, %v1407
      %vm1424 = vcmask 519168
      %1425 = vst.msk [vmem:[%s248] sm:$0xf] %vm1424, %v1408
      %1426 = vst.msk [vmem:[%s248 + $0x4] sm:$0xf] %vm1424, %v1409
      %1427 = vst.msk [vmem:[%s248 + $0x8] sm:$0xf] %vm1424, %v1410
      %1428 = vst.msk [vmem:[%s248 + $0xc] sm:$0xf] %vm1424, %v1411
      %1429 = vst.msk [vmem:[%s248 + $0x10] sm:$0xf] %vm1424, %v1412
      %1430 = vst.msk [vmem:[%s248 + $0x14] sm:$0xf] %vm1424, %v1413
      %1431 = vst.msk [vmem:[%s248 + $0x18] sm:$0xf] %vm1424, %v1414
      %1432 = vst.msk [vmem:[%s248 + $0x1c] sm:$0xf] %vm1424, %v1415
      %s1433 = smul.u32 8, %s16
      %p1434 = scmp.lt.s32.totalorder %s1433, 15
      %s1435 = scalar_select %p1434, %s1433, 15
      %s1436 = smul.addr %s1435, 4
      %s1437 = scalar_lea.vmem %s5, %s1436
      // Predicated region
      $region41: #{gat_forward.5} parent=39 // pred_check
        %p1438 = pneg %p149
      $region42: #{gat_forward.5} parent=39 // pred_check_branch
        %1440 = sbr.rel (%p1438) target = $region44
      $region43: #{gat_forward.5} parent=39 // pred_region
        %s1441 = smul.u32 8, %s16
      $region44: #{gat_forward.5} parent=39 // pred_fallthru
        _
    $region40: #{gat_forward.5} parent=5 // pred_fallthru
      _
    %p1442 = scmp.le.s32.totalorder 2, %s11
    // Predicated region
    $region45: #{gat_forward.5} parent=5 // pred_check
      %p1443 = pneg %p1442
    $region46: #{gat_forward.5} parent=5 // pred_check_branch
      %1445 = sbr.rel (%p1443) target = $region48
    $region47: #{gat_forward.5} parent=5 // pred_region
      %s1446 = ssub.s32 %s11, 2
      // Predicated region
      $region49: #{gat_forward.5} parent=47 // pred_check
        %p1447 = pneg %p155
      $region50: #{gat_forward.5} parent=47 // pred_check_branch
        %1449 = sbr.rel (%p1447) target = $region52
      $region51: #{gat_forward.5} parent=47 // pred_region
        %s1450 = smul.u32 8, %s17
        %p1451 = scmp.lt.s32.totalorder %s1450, 15
        %s1452 = scalar_select %p1451, %s1450, 15
        %s1453 = smul.addr %s1452, 4
        %s1454 = scalar_lea.vmem %s5, %s1453
      $region52: #{gat_forward.5} parent=47 // pred_fallthru
        _
    $region48: #{gat_forward.5} parent=5 // pred_fallthru
      _
  $region6: #{gat_forward.5} parent=0 // loop_footer
    %s15 = sadd.s32 1, %s11
  $region7: #{gat_forward.5} parent=0 // loop_footer_branch
    %10 = sbr.rel target = $region3
  $region8: #{gat_forward.5} parent=0 // loop_exit
    _

// kernel: gat_forward.7
$region0: #{gat_forward.7}
  #allocation0 [shape = 'u32[]', space=smem, size = 0x4, offset = 0x4, fixed_abs, tag = 'smem constant byte address 0x4 - core index']
  #allocation1 [shape = 'u32[144,128]{1,0:T(1,128)}', space=vmem, size = 0x12000, scoped, tag = 'internal scratch']
  %s0 = inlined_call_operand.vmem [shape: f32[2,128], index: 0, kind: input, shape index: {}]
  %s1 = inlined_call_operand.vmem [shape: f32[128,2], index: 1, kind: input, shape index: {}]
  %s2 = inlined_call_operand.vmem [shape: bf16[128,128], index: 2, kind: input, shape index: {}]
  %s3 = inlined_call_operand.vmem [shape: bf16[256,18], index: 3, kind: input, shape index: {}]
  %s4 = inlined_call_operand.vmem [shape: f32[1,16], index: 4, kind: input, shape index: {}]
  %s5 = inlined_call_operand.vmem [shape: f32[128,8], index: 5, kind: output, shape index: {}]
  %s6 = sld [smem:[#allocation0]]
  $region53: #{gat_forward.7} parent=0
    _
  %s8 = ssub.s32 1, %s6
  %s9 = scalar_select 0, %s8, %s6
  loop: start=0, step=1, limit=4
  $region2: #{gat_forward.7} parent=0 // loop_pre_header
    _
  $region3: #{gat_forward.7} parent=0 // loop_header
    %s11 = sphi 0, %s15
    %p12 = scmp.ge.s32.totalorder %s11, 4
    %s19 = sphi 0, %s19
    %s21 = sphi 0, %s19
    %s22 = sphi 0, %s21
    %s36 = sphi 0, %s22
    %s42 = sphi 0, %s44
    %s45 = sphi 0, %s42
    %s46 = sphi 0, %s45
    %s62 = sphi 0, %s46
    %s68 = sphi 0, %s70
    %s71 = sphi 0, %s68
    %s72 = sphi 0, %s71
    %s88 = sphi 0, %s72
    %s92 = sphi 0, %s92
    %s94 = sphi 0, %s92
    %s95 = sphi 0, %s94
    %s109 = sphi 0, %s95
    %s113 = sphi 0, %s113
    %s115 = sphi 0, %s113
    %s116 = sphi 0, %s115
    %s130 = sphi 0, %s116
    %s136 = sphi 0, %s138
    %s139 = sphi 0, %s136
    %s140 = sphi 0, %s139
    %s156 = sphi 0, %s140
  $region4: #{gat_forward.7} parent=0 // loop_header_branch
    %14 = sbr.rel (%p12) target = $region8
  $region5: #{gat_forward.7} parent=0 // loop_body
    %s16 = ssub.s32 %s11, 1
    %s17 = ssub.s32 %s11, 2
    %s18 = sadd.s32 %s11, 1
    %s20 = sadd.s32 %s19, 1
    %p23 = scmp.eq.s32.totalorder %s11, 1
    %p24 = scmp.ne.s32.totalorder %s19, %s21
    %p25 = scmp.eq.s32.totalorder %s11, 0
    %p26 = por %p24, %p25
    %p27 = scmp.ne.s32.totalorder %s19, %s21
    %p28 = scmp.eq.s32.totalorder %s16, 1
    %p29 = por %p27, %p28
    %p30 = scmp.ne.s32.totalorder %s21, %s22
    %p31 = scmp.eq.s32.totalorder %s16, 0
    %p32 = por %p30, %p31
    %p33 = scmp.ne.s32.totalorder %s21, %s22
    %p34 = scmp.eq.s32.totalorder %s17, 1
    %p35 = por %p33, %p34
    %p37 = scmp.ne.s32.totalorder %s22, %s36
    %p38 = scmp.eq.s32.totalorder %s17, 0
    %p39 = por %p37, %p38
    %s40 = ssub.s32 %s11, %s18
    %p41 = scmp.eq.s32.totalorder %s40, 0
    %s43 = sadd.s32 %s42, 1
    %s44 = scalar_select %p41, %s42, %s43
    %p47 = pneg %p41
    %p48 = scmp.eq.s32.totalorder %s11, 1
    %p49 = por %p47, %p48
    %p50 = scmp.ne.s32.totalorder %s42, %s45
    %p51 = scmp.eq.s32.totalorder %s11, 0
    %p52 = por %p50, %p51
    %p53 = scmp.ne.s32.totalorder %s42, %s45
    %p54 = scmp.eq.s32.totalorder %s16, 1
    %p55 = por %p53, %p54
    %p56 = scmp.ne.s32.totalorder %s45, %s46
    %p57 = scmp.eq.s32.totalorder %s16, 0
    %p58 = por %p56, %p57
    %p59 = scmp.ne.s32.totalorder %s45, %s46
    %p60 = scmp.eq.s32.totalorder %s17, 1
    %p61 = por %p59, %p60
    %p63 = scmp.ne.s32.totalorder %s46, %s62
    %p64 = scmp.eq.s32.totalorder %s17, 0
    %p65 = por %p63, %p64
    %s66 = ssub.s32 %s11, %s18
    %p67 = scmp.eq.s32.totalorder %s66, 0
    %s69 = sadd.s32 %s68, 1
    %s70 = scalar_select %p67, %s68, %s69
    %p73 = pneg %p67
    %p74 = scmp.eq.s32.totalorder %s11, 1
    %p75 = por %p73, %p74
    %p76 = scmp.ne.s32.totalorder %s68, %s71
    %p77 = scmp.eq.s32.totalorder %s11, 0
    %p78 = por %p76, %p77
    %p79 = scmp.ne.s32.totalorder %s68, %s71
    %p80 = scmp.eq.s32.totalorder %s16, 1
    %p81 = por %p79, %p80
    %p82 = scmp.ne.s32.totalorder %s71, %s72
    %p83 = scmp.eq.s32.totalorder %s16, 0
    %p84 = por %p82, %p83
    %p85 = scmp.ne.s32.totalorder %s71, %s72
    %p86 = scmp.eq.s32.totalorder %s17, 1
    %p87 = por %p85, %p86
    %p89 = scmp.ne.s32.totalorder %s72, %s88
    %p90 = scmp.eq.s32.totalorder %s17, 0
    %p91 = por %p89, %p90
    %s93 = sadd.s32 %s92, 1
    %p96 = scmp.eq.s32.totalorder %s11, 1
    %p97 = scmp.ne.s32.totalorder %s92, %s94
    %p98 = scmp.eq.s32.totalorder %s11, 0
    %p99 = por %p97, %p98
    %p100 = scmp.ne.s32.totalorder %s92, %s94
    %p101 = scmp.eq.s32.totalorder %s16, 1
    %p102 = por %p100, %p101
    %p103 = scmp.ne.s32.totalorder %s94, %s95
    %p104 = scmp.eq.s32.totalorder %s16, 0
    %p105 = por %p103, %p104
    %p106 = scmp.ne.s32.totalorder %s94, %s95
    %p107 = scmp.eq.s32.totalorder %s17, 1
    %p108 = por %p106, %p107
    %p110 = scmp.ne.s32.totalorder %s95, %s109
    %p111 = scmp.eq.s32.totalorder %s17, 0
    %p112 = por %p110, %p111
    %s114 = sadd.s32 %s113, 1
    %p117 = scmp.eq.s32.totalorder %s11, 1
    %p118 = scmp.ne.s32.totalorder %s113, %s115
    %p119 = scmp.eq.s32.totalorder %s11, 0
    %p120 = por %p118, %p119
    %p121 = scmp.ne.s32.totalorder %s113, %s115
    %p122 = scmp.eq.s32.totalorder %s16, 1
    %p123 = por %p121, %p122
    %p124 = scmp.ne.s32.totalorder %s115, %s116
    %p125 = scmp.eq.s32.totalorder %s16, 0
    %p126 = por %p124, %p125
    %p127 = scmp.ne.s32.totalorder %s115, %s116
    %p128 = scmp.eq.s32.totalorder %s17, 1
    %p129 = por %p127, %p128
    %p131 = scmp.ne.s32.totalorder %s116, %s130
    %p132 = scmp.eq.s32.totalorder %s17, 0
    %p133 = por %p131, %p132
    %s134 = ssub.s32 %s11, %s18
    %p135 = scmp.eq.s32.totalorder %s134, 0
    %s137 = sadd.s32 %s136, 1
    %s138 = scalar_select %p135, %s136, %s137
    %p141 = pneg %p135
    %p142 = scmp.eq.s32.totalorder %s11, 1
    %p143 = por %p141, %p142
    %p144 = scmp.ne.s32.totalorder %s136, %s139
    %p145 = scmp.eq.s32.totalorder %s11, 0
    %p146 = por %p144, %p145
    %p147 = scmp.ne.s32.totalorder %s136, %s139
    %p148 = scmp.eq.s32.totalorder %s16, 1
    %p149 = por %p147, %p148
    %p150 = scmp.ne.s32.totalorder %s139, %s140
    %p151 = scmp.eq.s32.totalorder %s16, 0
    %p152 = por %p150, %p151
    %p153 = scmp.ne.s32.totalorder %s139, %s140
    %p154 = scmp.eq.s32.totalorder %s17, 1
    %p155 = por %p153, %p154
    %p157 = scmp.ne.s32.totalorder %s140, %s156
    %p158 = scmp.eq.s32.totalorder %s17, 0
    %p159 = por %p157, %p158
    %p160 = scmp.le.s32.totalorder 1, %s11
    %p161 = scmp.lt.s32.totalorder %s11, 3
    %p162 = pnand %p160, %p161
    %p163 = pneg %p162
    // Predicated region
    $region9: #{gat_forward.7} parent=5 // pred_check
      _
    $region10: #{gat_forward.7} parent=5 // pred_check_branch
      %165 = sbr.rel (%p162) target = $region12
    $region11: #{gat_forward.7} parent=5 // pred_region
      %s166 = ssub.s32 %s11, 1
      // Predicated region
      $region13: #{gat_forward.7} parent=11 // pred_check
        %p167 = pneg %p32
      $region14: #{gat_forward.7} parent=11 // pred_check_branch
        %169 = sbr.rel (%p167) target = $region16
      $region15: #{gat_forward.7} parent=11 // pred_region
        _
      $region16: #{gat_forward.7} parent=11 // pred_fallthru
        _
      // Predicated region
      $region17: #{gat_forward.7} parent=11 // pred_check
        %p170 = pneg %p105
      $region18: #{gat_forward.7} parent=11 // pred_check_branch
        %172 = sbr.rel (%p170) target = $region20
      $region19: #{gat_forward.7} parent=11 // pred_region
        _
      $region20: #{gat_forward.7} parent=11 // pred_fallthru
        _
      // Predicated region
      $region21: #{gat_forward.7} parent=11 // pred_check
        %p173 = pneg %p126
      $region22: #{gat_forward.7} parent=11 // pred_check_branch
        %175 = sbr.rel (%p173) target = $region24
      $region23: #{gat_forward.7} parent=11 // pred_region
        _
      $region24: #{gat_forward.7} parent=11 // pred_fallthru
        _
    $region12: #{gat_forward.7} parent=5 // pred_fallthru
      _
    %p176 = scmp.lt.s32.totalorder %s11, 2
    // Predicated region
    $region25: #{gat_forward.7} parent=5 // pred_check
      %p177 = pneg %p176
    $region26: #{gat_forward.7} parent=5 // pred_check_branch
      %179 = sbr.rel (%p177) target = $region28
    $region27: #{gat_forward.7} parent=5 // pred_region
      // Predicated region
      $region29: #{gat_forward.7} parent=27 // pred_check
        %p180 = pneg %p52
      $region30: #{gat_forward.7} parent=27 // pred_check_branch
        %182 = sbr.rel (%p180) target = $region32
      $region31: #{gat_forward.7} parent=27 // pred_region
        %s183 = smul.u32 8, %s11
        %p184 = scmp.lt.s32.totalorder %s183, 15
        %s185 = scalar_select %p184, %s183, 15
        %s186 = smul.addr %s185, 8
        %s187 = scalar_lea.vmem %s1, %s186
        %s188 = smul.u32 8, %s11
      $region32: #{gat_forward.7} parent=27 // pred_fallthru
        _
      // Predicated region
      $region33: #{gat_forward.7} parent=27 // pred_check
        %p189 = pneg %p78
      $region34: #{gat_forward.7} parent=27 // pred_check_branch
        %191 = sbr.rel (%p189) target = $region36
      $region35: #{gat_forward.7} parent=27 // pred_region
        %s192 = smul.u32 8, %s11
        %p193 = scmp.lt.s32.totalorder %s192, 15
        %s194 = scalar_select %p193, %s192, 15
        %s195 = smul.addr %s194, 4
        %s196 = scalar_lea.vmem %s2, %s195
        %s197 = smul.u32 8, %s11
      $region36: #{gat_forward.7} parent=27 // pred_fallthru
        _
    $region28: #{gat_forward.7} parent=5 // pred_fallthru
      _
    %p198 = scmp.le.s32.totalorder 1, %s11
    %p199 = scmp.lt.s32.totalorder %s11, 3
    %p200 = pnand %p198, %p199
    %p201 = pneg %p200
    // Predicated region
    $region37: #{gat_forward.7} parent=5 // pred_check
      _
    $region38: #{gat_forward.7} parent=5 // pred_check_branch
      %203 = sbr.rel (%p200) target = $region40
    $region39: #{gat_forward.7} parent=5 // pred_region
      %s204 = ssub.s32 %s11, 1
      %p205 = pneg %p32
      %p206 = pneg %p29
      %s207 = smul.u32 8, %s16
      %p208 = scmp.lt.s32.totalorder %s207, 15
      %s209 = scalar_select %p208, %s207, 15
      %s210 = smul.addr %s209, 8
      %s211 = scalar_lea.vmem %s1, %s210
      %p212 = pneg %p58
      %p213 = pneg %p55
      %s214 = smul.u32 8, %s16
      %p215 = scmp.lt.s32.totalorder %s214, 15
      %s216 = scalar_select %p215, %s214, 15
      %s217 = smul.addr %s216, 4
      %s218 = scalar_lea.vmem %s2, %s217
      %p219 = pneg %p84
      %p220 = pneg %p81
      %p221 = pneg %p105
      %p222 = pneg %p102
      %p223 = pneg %p126
      %p224 = pneg %p123
      %p225 = pneg %p152
      %p226 = pneg %p149
      %s227 = smul.u32 8, %s16
      %p228 = scmp.lt.s32.totalorder %s227, 15
      %s229 = scalar_select %p228, %s227, 15
      %s230 = smul.addr %s229, 8
      %s231 = scalar_lea.vmem %s5, %s230
      %s232 = smul.u32 8, %s16
      %p233 = scmp.lt.s32.totalorder %s232, 15
      %s234 = scalar_select %p233, %s232, 15
      %s235 = smul.addr %s234, 8
      %s236 = scalar_lea.vmem %s1, %s235
      %s237 = smul.u32 8, %s16
      %s238 = smul.u32 8, %s16
      %p239 = scmp.lt.s32.totalorder %s238, 15
      %s240 = scalar_select %p239, %s238, 15
      %s241 = smul.addr %s240, 4
      %s242 = scalar_lea.vmem %s2, %s241
      %s243 = smul.u32 8, %s16
      %s244 = smul.u32 8, %s16
      %p245 = scmp.lt.s32.totalorder %s244, 15
      %s246 = scalar_select %p245, %s244, 15
      %s247 = smul.addr %s246, 8
      %s248 = scalar_lea.vmem %s5, %s247
      %s249 = smul.u32 8, %s16
      %v251 = vld [vmem:[%s0] sm:$0x3]
      %v252 = vld [vmem:[%s236] sm:$0xff]
      %v253 = vld [vmem:[%s236 + $0x8] sm:$0xff]
      %v254 = vld [vmem:[%s236 + $0x10] sm:$0xff]
      %v255 = vld [vmem:[%s236 + $0x18] sm:$0xff]
      %v256 = vld [vmem:[%s236 + $0x20] sm:$0xff]
      %v257 = vld [vmem:[%s236 + $0x28] sm:$0xff]
      %v258 = vld [vmem:[%s236 + $0x30] sm:$0xff]
      %v259 = vld [vmem:[%s236 + $0x38] sm:$0xff]
      %v260 = vld [vmem:[%s242] sm:$0xf]
      %v261 = vld [vmem:[%s242 + $0x4] sm:$0xf]
      %v262 = vld [vmem:[%s242 + $0x8] sm:$0xf]
      %v263 = vld [vmem:[%s242 + $0xc] sm:$0xf]
      %v264 = vld [vmem:[%s242 + $0x10] sm:$0xf]
      %v265 = vld [vmem:[%s242 + $0x14] sm:$0xf]
      %v266 = vld [vmem:[%s242 + $0x18] sm:$0xf]
      %v267 = vld [vmem:[%s242 + $0x1c] sm:$0xf]
      %269 = vset.pattern.permute.xlu0 0
      %270 = vperm.xlu0 %269, %v252
      %v271 = vpop.permute.xlu0 %270
      %274 = vset.pattern.permute.xlu0 0
      %275 = vperm.xlu0 %274, %v253
      %v276 = vpop.permute.xlu0 %275
      %279 = vset.pattern.permute.xlu0 0
      %280 = vperm.xlu0 %279, %v254
      %v281 = vpop.permute.xlu0 %280
      %284 = vset.pattern.permute.xlu0 0
      %285 = vperm.xlu0 %284, %v255
      %v286 = vpop.permute.xlu0 %285
      %289 = vset.pattern.permute.xlu0 0
      %290 = vperm.xlu0 %289, %v256
      %v291 = vpop.permute.xlu0 %290
      %294 = vset.pattern.permute.xlu0 0
      %295 = vperm.xlu0 %294, %v257
      %v296 = vpop.permute.xlu0 %295
      %299 = vset.pattern.permute.xlu0 0
      %300 = vperm.xlu0 %299, %v258
      %v301 = vpop.permute.xlu0 %300
      %304 = vset.pattern.permute.xlu0 0
      %305 = vperm.xlu0 %304, %v259
      %v306 = vpop.permute.xlu0 %305
      %v308 = vlaneseq
      %v309 = vshrl.u32 %v308, 7
      %v310 = vsub.s32 0, %v309
      %v311 = vrot.slane %v251, %v310
      %v312 = vadd.f32 %v271, %v311
      %v313 = vadd.f32 %v276, %v311
      %v314 = vadd.f32 %v281, %v311
      %v315 = vadd.f32 %v286, %v311
      %v316 = vadd.f32 %v291, %v311
      %v317 = vadd.f32 %v296, %v311
      %v318 = vadd.f32 %v301, %v311
      %v319 = vadd.f32 %v306, %v311
      %vm320 = vcmp.gt.f32.partialorder %v312, 0.0
      %vm321 = vcmp.gt.f32.partialorder %v313, 0.0
      %vm322 = vcmp.gt.f32.partialorder %v314, 0.0
      %vm323 = vcmp.gt.f32.partialorder %v315, 0.0
      %vm324 = vcmp.gt.f32.partialorder %v316, 0.0
      %vm325 = vcmp.gt.f32.partialorder %v317, 0.0
      %vm326 = vcmp.gt.f32.partialorder %v318, 0.0
      %vm327 = vcmp.gt.f32.partialorder %v319, 0.0
      %v328 = vmul.f32 %v312, 0.2
      %v329 = vmul.f32 %v313, 0.2
      %v330 = vmul.f32 %v314, 0.2
      %v331 = vmul.f32 %v315, 0.2
      %v332 = vmul.f32 %v316, 0.2
      %v333 = vmul.f32 %v317, 0.2
      %v334 = vmul.f32 %v318, 0.2
      %v335 = vmul.f32 %v319, 0.2
      %v336 = vsel %vm320, %v312, %v328
      %v337 = vsel %vm321, %v313, %v329
      %v338 = vsel %vm322, %v314, %v330
      %v339 = vsel %vm323, %v315, %v331
      %v340 = vsel %vm324, %v316, %v332
      %v341 = vsel %vm325, %v317, %v333
      %v342 = vsel %vm326, %v318, %v334
      %v343 = vsel %vm327, %v319, %v335
      %v344 = vunpack.c.l.bf16 %v260
      %v345 = vunpack.c.l.bf16 %v261
      %v346 = vunpack.c.l.bf16 %v262
      %v347 = vunpack.c.l.bf16 %v263
      %v348 = vunpack.c.l.bf16 %v264
      %v349 = vunpack.c.l.bf16 %v265
      %v350 = vunpack.c.l.bf16 %v266
      %v351 = vunpack.c.l.bf16 %v267
      %v352 = vadd.f32 %v336, %v344
      %v353 = vadd.f32 %v337, %v345
      %v354 = vadd.f32 %v338, %v346
      %v355 = vadd.f32 %v339, %v347
      %v356 = vadd.f32 %v340, %v348
      %v357 = vadd.f32 %v341, %v349
      %v358 = vadd.f32 %v342, %v350
      %v359 = vadd.f32 %v343, %v351
      %360 = vmax.xlane.f32.xlu0 %v352
      %v361 = vpop.xlane.xlu0 %360
      %362 = vmax.xlane.f32.xlu0 %v353
      %v363 = vpop.xlane.xlu0 %362
      %364 = vmax.xlane.f32.xlu0 %v354
      %v365 = vpop.xlane.xlu0 %364
      %366 = vmax.xlane.f32.xlu0 %v355
      %v367 = vpop.xlane.xlu0 %366
      %368 = vmax.xlane.f32.xlu0 %v356
      %v369 = vpop.xlane.xlu0 %368
      %370 = vmax.xlane.f32.xlu0 %v357
      %v371 = vpop.xlane.xlu0 %370
      %372 = vmax.xlane.f32.xlu0 %v358
      %v373 = vpop.xlane.xlu0 %372
      %374 = vmax.xlane.f32.xlu0 %v359
      %v375 = vpop.xlane.xlu0 %374
      %v376 = vsub.f32 %v352, %v361
      %v377 = vsub.f32 %v353, %v363
      %v378 = vsub.f32 %v354, %v365
      %v379 = vsub.f32 %v355, %v367
      %v380 = vsub.f32 %v356, %v369
      %v381 = vsub.f32 %v357, %v371
      %v382 = vsub.f32 %v358, %v373
      %v383 = vsub.f32 %v359, %v375
      %v384 = vpack.c.bf16 %v377, %v376
      %v385 = vpack.c.bf16 %v379, %v378
      %v386 = vpack.c.bf16 %v381, %v380
      %v387 = vpack.c.bf16 %v383, %v382
      %v389 = vmul.bf16 %v384, 1069105081
      %v390 = vpow.bf16.pop %v389
      %v392 = vmul.bf16 %v385, 1069105081
      %v393 = vpow.bf16.pop %v392
      %v395 = vmul.bf16 %v386, 1069105081
      %v396 = vpow.bf16.pop %v395
      %v398 = vmul.bf16 %v387, 1069105081
      %v399 = vpow.bf16.pop %v398
      %400 = vset.pattern.permute.xlu0 1
      %401 = vperm.xlu0 %400, %v252
      %v402 = vpop.permute.xlu0 %401
      %404 = vset.pattern.permute.xlu0 1
      %405 = vperm.xlu0 %404, %v253
      %v406 = vpop.permute.xlu0 %405
      %408 = vset.pattern.permute.xlu0 1
      %409 = vperm.xlu0 %408, %v254
      %v410 = vpop.permute.xlu0 %409
      %412 = vset.pattern.permute.xlu0 1
      %413 = vperm.xlu0 %412, %v255
      %v414 = vpop.permute.xlu0 %413
      %416 = vset.pattern.permute.xlu0 1
      %417 = vperm.xlu0 %416, %v256
      %v418 = vpop.permute.xlu0 %417
      %420 = vset.pattern.permute.xlu0 1
      %421 = vperm.xlu0 %420, %v257
      %v422 = vpop.permute.xlu0 %421
      %424 = vset.pattern.permute.xlu0 1
      %425 = vperm.xlu0 %424, %v258
      %v426 = vpop.permute.xlu0 %425
      %428 = vset.pattern.permute.xlu0 1
      %429 = vperm.xlu0 %428, %v259
      %v430 = vpop.permute.xlu0 %429
      %v432 = vlaneseq
      %v433 = vshrl.u32 %v432, 7
      %v434 = vsub.s32 1, %v433
      %v435 = vrot.slane %v251, %v434
      %v436 = vadd.f32 %v402, %v435
      %v437 = vadd.f32 %v406, %v435
      %v438 = vadd.f32 %v410, %v435
      %v439 = vadd.f32 %v414, %v435
      %v440 = vadd.f32 %v418, %v435
      %v441 = vadd.f32 %v422, %v435
      %v442 = vadd.f32 %v426, %v435
      %v443 = vadd.f32 %v430, %v435
      %vm444 = vcmp.gt.f32.partialorder %v436, 0.0
      %vm445 = vcmp.gt.f32.partialorder %v437, 0.0
      %vm446 = vcmp.gt.f32.partialorder %v438, 0.0
      %vm447 = vcmp.gt.f32.partialorder %v439, 0.0
      %vm448 = vcmp.gt.f32.partialorder %v440, 0.0
      %vm449 = vcmp.gt.f32.partialorder %v441, 0.0
      %vm450 = vcmp.gt.f32.partialorder %v442, 0.0
      %vm451 = vcmp.gt.f32.partialorder %v443, 0.0
      %v452 = vmul.f32 %v436, 0.2
      %v453 = vmul.f32 %v437, 0.2
      %v454 = vmul.f32 %v438, 0.2
      %v455 = vmul.f32 %v439, 0.2
      %v456 = vmul.f32 %v440, 0.2
      %v457 = vmul.f32 %v441, 0.2
      %v458 = vmul.f32 %v442, 0.2
      %v459 = vmul.f32 %v443, 0.2
      %v460 = vsel %vm444, %v436, %v452
      %v461 = vsel %vm445, %v437, %v453
      %v462 = vsel %vm446, %v438, %v454
      %v463 = vsel %vm447, %v439, %v455
      %v464 = vsel %vm448, %v440, %v456
      %v465 = vsel %vm449, %v441, %v457
      %v466 = vsel %vm450, %v442, %v458
      %v467 = vsel %vm451, %v443, %v459
      %v468 = vadd.f32 %v460, %v344
      %v469 = vadd.f32 %v461, %v345
      %v470 = vadd.f32 %v462, %v346
      %v471 = vadd.f32 %v463, %v347
      %v472 = vadd.f32 %v464, %v348
      %v473 = vadd.f32 %v465, %v349
      %v474 = vadd.f32 %v466, %v350
      %v475 = vadd.f32 %v467, %v351
      %476 = vmax.xlane.f32.xlu0 %v468
      %v477 = vpop.xlane.xlu0 %476
      %478 = vmax.xlane.f32.xlu0 %v469
      %v479 = vpop.xlane.xlu0 %478
      %480 = vmax.xlane.f32.xlu0 %v470
      %v481 = vpop.xlane.xlu0 %480
      %482 = vmax.xlane.f32.xlu0 %v471
      %v483 = vpop.xlane.xlu0 %482
      %484 = vmax.xlane.f32.xlu0 %v472
      %v485 = vpop.xlane.xlu0 %484
      %486 = vmax.xlane.f32.xlu0 %v473
      %v487 = vpop.xlane.xlu0 %486
      %488 = vmax.xlane.f32.xlu0 %v474
      %v489 = vpop.xlane.xlu0 %488
      %490 = vmax.xlane.f32.xlu0 %v475
      %v491 = vpop.xlane.xlu0 %490
      %v492 = vsub.f32 %v468, %v477
      %v493 = vsub.f32 %v469, %v479
      %v494 = vsub.f32 %v470, %v481
      %v495 = vsub.f32 %v471, %v483
      %v496 = vsub.f32 %v472, %v485
      %v497 = vsub.f32 %v473, %v487
      %v498 = vsub.f32 %v474, %v489
      %v499 = vsub.f32 %v475, %v491
      %v500 = vpack.c.bf16 %v493, %v492
      %v501 = vpack.c.bf16 %v495, %v494
      %v502 = vpack.c.bf16 %v497, %v496
      %v503 = vpack.c.bf16 %v499, %v498
      %v505 = vmul.bf16 %v500, 1069105081
      %v506 = vpow.bf16.pop %v505
      %v508 = vmul.bf16 %v501, 1069105081
      %v509 = vpow.bf16.pop %v508
      %v511 = vmul.bf16 %v502, 1069105081
      %v512 = vpow.bf16.pop %v511
      %v514 = vmul.bf16 %v503, 1069105081
      %v515 = vpow.bf16.pop %v514
      %v516 = vld [vmem:[%s3] sm:$0xf]
      %v517 = vld [vmem:[%s3 + $0x4] sm:$0xf]
      %v518 = vld [vmem:[%s3 + $0x8] sm:$0xf]
      %v519 = vld [vmem:[%s3 + $0xc] sm:$0xf]
      %v520 = vld [vmem:[%s3 + $0x10] sm:$0xf]
      %v521 = vld [vmem:[%s3 + $0x14] sm:$0xf]
      %v522 = vld [vmem:[%s3 + $0x18] sm:$0xf]
      %v523 = vld [vmem:[%s3 + $0x1c] sm:$0xf]
      %v524 = vld [vmem:[%s3 + $0x20] sm:$0xf]
      %v525 = vld [vmem:[%s3 + $0x24] sm:$0xf]
      %v526 = vld [vmem:[%s3 + $0x28] sm:$0xf]
      %v527 = vld [vmem:[%s3 + $0x2c] sm:$0xf]
      %v528 = vld [vmem:[%s3 + $0x30] sm:$0xf]
      %v529 = vld [vmem:[%s3 + $0x34] sm:$0xf]
      %v530 = vld [vmem:[%s3 + $0x38] sm:$0xf]
      %v531 = vld [vmem:[%s3 + $0x3c] sm:$0xf]
      %v532 = vld [vmem:[%s3 + $0x40] sm:$0xf]
      %v533 = vld [vmem:[%s3 + $0x44] sm:$0xf]
      %v534 = vld [vmem:[%s3 + $0x48] sm:$0xf]
      %v535 = vld [vmem:[%s3 + $0x4c] sm:$0xf]
      %v536 = vld [vmem:[%s3 + $0x50] sm:$0xf]
      %v537 = vld [vmem:[%s3 + $0x54] sm:$0xf]
      %v538 = vld [vmem:[%s3 + $0x58] sm:$0xf]
      %v539 = vld [vmem:[%s3 + $0x5c] sm:$0xf]
      %v540 = vld [vmem:[%s3 + $0x60] sm:$0xf]
      %v541 = vld [vmem:[%s3 + $0x64] sm:$0xf]
      %v542 = vld [vmem:[%s3 + $0x68] sm:$0xf]
      %v543 = vld [vmem:[%s3 + $0x6c] sm:$0xf]
      %v544 = vld [vmem:[%s3 + $0x70] sm:$0xf]
      %v545 = vld [vmem:[%s3 + $0x74] sm:$0xf]
      %v546 = vld [vmem:[%s3 + $0x78] sm:$0xf]
      %v547 = vld [vmem:[%s3 + $0x7c] sm:$0xf]
      %v580 = vunpack.c.l.b16 %v516
      %v581 = vunpack.c.l.b16 %v517
      %v582 = vunpack.c.l.b16 %v518
      %v583 = vunpack.c.l.b16 %v519
      %v584 = vunpack.c.l.b16 %v520
      %v585 = vunpack.c.l.b16 %v521
      %v586 = vunpack.c.l.b16 %v522
      %v587 = vunpack.c.l.b16 %v523
      %v588 = vunpack.c.l.b16 %v524
      %v589 = vunpack.c.l.b16 %v525
      %v590 = vunpack.c.l.b16 %v526
      %v591 = vunpack.c.l.b16 %v527
      %v592 = vunpack.c.l.b16 %v528
      %v593 = vunpack.c.l.b16 %v529
      %v594 = vunpack.c.l.b16 %v530
      %v595 = vunpack.c.l.b16 %v531
      %v596 = vunpack.c.l.b16 %v532
      %v597 = vunpack.c.l.b16 %v533
      %v598 = vunpack.c.l.b16 %v534
      %v599 = vunpack.c.l.b16 %v535
      %v600 = vunpack.c.l.b16 %v536
      %v601 = vunpack.c.l.b16 %v537
      %v602 = vunpack.c.l.b16 %v538
      %v603 = vunpack.c.l.b16 %v539
      %v604 = vunpack.c.l.b16 %v540
      %v605 = vunpack.c.l.b16 %v541
      %v606 = vunpack.c.l.b16 %v542
      %v607 = vunpack.c.l.b16 %v543
      %v608 = vunpack.c.l.b16 %v544
      %v609 = vunpack.c.l.b16 %v545
      %v610 = vunpack.c.l.b16 %v546
      %v611 = vunpack.c.l.b16 %v547
      %v612 = vpack.c.b16 %v581, %v580
      %v613 = vpack.c.b16 %v583, %v582
      %v614 = vpack.c.b16 %v585, %v584
      %v615 = vpack.c.b16 %v587, %v586
      %v616 = vpack.c.b16 %v589, %v588
      %v617 = vpack.c.b16 %v591, %v590
      %v618 = vpack.c.b16 %v593, %v592
      %v619 = vpack.c.b16 %v595, %v594
      %v620 = vpack.c.b16 %v597, %v596
      %v621 = vpack.c.b16 %v599, %v598
      %v622 = vpack.c.b16 %v601, %v600
      %v623 = vpack.c.b16 %v603, %v602
      %v624 = vpack.c.b16 %v605, %v604
      %v625 = vpack.c.b16 %v607, %v606
      %v626 = vpack.c.b16 %v609, %v608
      %v627 = vpack.c.b16 %v611, %v610
      %644 = vmatprep.subr.bf16.mxu0 0
      %645 = vmatpush1.bf16.msra.mxu0 %v612
      %646 = vmatprep.subr.bf16.mxu0 0
      %647 = vmatpush1.bf16.msra.mxu0 %v613
      %648 = vmatprep.subr.bf16.mxu0 0
      %649 = vmatpush1.bf16.msra.mxu0 %v614
      %650 = vmatprep.subr.bf16.mxu0 0
      %651 = vmatpush1.bf16.msra.mxu0 %v615
      %652 = vmatprep.subr.bf16.mxu0 0
      %653 = vmatpush1.bf16.msra.mxu0 %v616
      %654 = vmatprep.subr.bf16.mxu0 0
      %655 = vmatpush1.bf16.msra.mxu0 %v617
      %656 = vmatprep.subr.bf16.mxu0 0
      %657 = vmatpush1.bf16.msra.mxu0 %v618
      %658 = vmatprep.subr.bf16.mxu0 0
      %659 = vmatpush1.bf16.msra.mxu0 %v619
      %660 = vmatprep.subr.bf16.mxu0 0
      %661 = vmatpush1.bf16.msra.mxu0 %v620
      %662 = vmatprep.subr.bf16.mxu0 0
      %663 = vmatpush1.bf16.msra.mxu0 %v621
      %664 = vmatprep.subr.bf16.mxu0 0
      %665 = vmatpush1.bf16.msra.mxu0 %v622
      %666 = vmatprep.subr.bf16.mxu0 0
      %667 = vmatpush1.bf16.msra.mxu0 %v623
      %668 = vmatprep.subr.bf16.mxu0 0
      %669 = vmatpush1.bf16.msra.mxu0 %v624
      %670 = vmatprep.subr.bf16.mxu0 0
      %671 = vmatpush1.bf16.msra.mxu0 %v625
      %672 = vmatprep.subr.bf16.mxu0 0
      %673 = vmatpush1.bf16.msra.mxu0 %v626
      %674 = vmatprep.subr.bf16.mxu0 0
      %675 = vmatpush1.bf16.msra.mxu0 %v627
      %676 = vmatprep.mubr.bf16.mxu0 %v506
      %677 = vmatmul.mubr.bf16.gmra.mrb[0].mxu0 %v390
      %v678 = vpop.f32.mrb[0].mxu0
      %v679 = vadd.f32 0.0, %v678
      %v680 = vpop.f32.mrb[0].mxu0
      %v681 = vpop.f32.mrb[0].mxu0
      %v682 = vadd.f32 0.0, %v681
      %v683 = vpop.f32.mrb[0].mxu0
      %684 = vmatprep.mubr.bf16.mxu0 %v509
      %685 = vmatmul.mubr.bf16.gmra.mrb[0].mxu0 %v393
      %v686 = vpop.f32.mrb[0].mxu0
      %v687 = vadd.f32 0.0, %v686
      %v688 = vpop.f32.mrb[0].mxu0
      %v689 = vpop.f32.mrb[0].mxu0
      %v690 = vadd.f32 0.0, %v689
      %v691 = vpop.f32.mrb[0].mxu0
      %692 = vmatprep.mubr.bf16.mxu0 %v512
      %693 = vmatmul.mubr.bf16.gmra.mrb[0].mxu0 %v396
      %v694 = vpop.f32.mrb[0].mxu0
      %v695 = vadd.f32 0.0, %v694
      %v696 = vpop.f32.mrb[0].mxu0
      %v697 = vpop.f32.mrb[0].mxu0
      %v698 = vadd.f32 0.0, %v697
      %v699 = vpop.f32.mrb[0].mxu0
      %700 = vmatprep.mubr.bf16.mxu0 %v515
      %701 = vmatmul.mubr.bf16.gmra.mrb[0].mxu0 %v399
      %v702 = vpop.f32.mrb[0].mxu0
      %v703 = vadd.f32 0.0, %v702
      %v704 = vpop.f32.mrb[0].mxu0
      %v705 = vpop.f32.mrb[0].mxu0
      %v706 = vadd.f32 0.0, %v705
      %v707 = vpop.f32.mrb[0].mxu0
      %708 = vdwg.mxu0
      %v709 = vrcp.pop %v679
      %v710 = vrcp.pop %v682
      %v711 = vrcp.pop %v687
      %v712 = vrcp.pop %v690
      %v713 = vrcp.pop %v695
      %v714 = vrcp.pop %v698
      %v715 = vrcp.pop %v703
      %v716 = vrcp.pop %v706
      %718 = vset.pattern.permute.xlu0 16
      %719 = vperm.xlu0 %718, %v709
      %v720 = vpop.permute.xlu0 %719
      %723 = vset.pattern.permute.xlu0 16
      %724 = vperm.xlu0 %723, %v710
      %v725 = vpop.permute.xlu0 %724
      %728 = vset.pattern.permute.xlu0 16
      %729 = vperm.xlu0 %728, %v711
      %v730 = vpop.permute.xlu0 %729
      %733 = vset.pattern.permute.xlu0 16
      %734 = vperm.xlu0 %733, %v712
      %v735 = vpop.permute.xlu0 %734
      %738 = vset.pattern.permute.xlu0 16
      %739 = vperm.xlu0 %738, %v713
      %v740 = vpop.permute.xlu0 %739
      %743 = vset.pattern.permute.xlu0 16
      %744 = vperm.xlu0 %743, %v714
      %v745 = vpop.permute.xlu0 %744
      %748 = vset.pattern.permute.xlu0 16
      %749 = vperm.xlu0 %748, %v715
      %v750 = vpop.permute.xlu0 %749
      %753 = vset.pattern.permute.xlu0 16
      %754 = vperm.xlu0 %753, %v716
      %v755 = vpop.permute.xlu0 %754
      %v757 = vmul.f32 %v679, %v720
      %v758 = vmul.f32 %v682, %v725
      %v759 = vmul.f32 %v687, %v730
      %v760 = vmul.f32 %v690, %v735
      %v761 = vmul.f32 %v695, %v740
      %v762 = vmul.f32 %v698, %v745
      %v763 = vmul.f32 %v703, %v750
      %v764 = vmul.f32 %v706, %v755
      %765 = vset.pattern.permute.xlu0 17
      %766 = vperm.xlu0 %765, %v709
      %v767 = vpop.permute.xlu0 %766
      %769 = vset.pattern.permute.xlu0 17
      %770 = vperm.xlu0 %769, %v710
      %v771 = vpop.permute.xlu0 %770
      %773 = vset.pattern.permute.xlu0 17
      %774 = vperm.xlu0 %773, %v711
      %v775 = vpop.permute.xlu0 %774
      %777 = vset.pattern.permute.xlu0 17
      %778 = vperm.xlu0 %777, %v712
      %v779 = vpop.permute.xlu0 %778
      %781 = vset.pattern.permute.xlu0 17
      %782 = vperm.xlu0 %781, %v713
      %v783 = vpop.permute.xlu0 %782
      %785 = vset.pattern.permute.xlu0 17
      %786 = vperm.xlu0 %785, %v714
      %v787 = vpop.permute.xlu0 %786
      %789 = vset.pattern.permute.xlu0 17
      %790 = vperm.xlu0 %789, %v715
      %v791 = vpop.permute.xlu0 %790
      %793 = vset.pattern.permute.xlu0 17
      %794 = vperm.xlu0 %793, %v716
      %v795 = vpop.permute.xlu0 %794
      %v797 = vmul.f32 %v679, %v767
      %v798 = vmul.f32 %v682, %v771
      %v799 = vmul.f32 %v687, %v775
      %v800 = vmul.f32 %v690, %v779
      %v801 = vmul.f32 %v695, %v783
      %v802 = vmul.f32 %v698, %v787
      %v803 = vmul.f32 %v703, %v791
      %v804 = vmul.f32 %v706, %v795
      %vm805 = vcmask 64512
      %v806 = vsel %vm805, %v757, %v797
      %v807 = vsel %vm805, %v758, %v798
      %v808 = vsel %vm805, %v759, %v799
      %v809 = vsel %vm805, %v760, %v800
      %v810 = vsel %vm805, %v761, %v801
      %v811 = vsel %vm805, %v762, %v802
      %v812 = vsel %vm805, %v763, %v803
      %v813 = vsel %vm805, %v764, %v804
      %v814 = vld [vmem:[%s4] sm:$0x1]
      %v816 = vlaneseq
      %v817 = vshrl.u32 %v816, 7
      %v818 = vsub.s32 0, %v817
      %v819 = vrot.slane %v814, %v818
      %v821 = vadd.f32 %v806, %v819
      %v822 = vadd.f32 %v807, %v819
      %v823 = vadd.f32 %v808, %v819
      %v824 = vadd.f32 %v809, %v819
      %v825 = vadd.f32 %v810, %v819
      %v826 = vadd.f32 %v811, %v819
      %v827 = vadd.f32 %v812, %v819
      %v828 = vadd.f32 %v813, %v819
      %837 = vrot.lane.b32.xlu0 %v821, 120
      %v838 = vpop.permute.xlu0 %837
      %839 = vrot.lane.b32.xlu0 %v822, 120
      %v840 = vpop.permute.xlu0 %839
      %841 = vrot.lane.b32.xlu0 %v823, 120
      %v842 = vpop.permute.xlu0 %841
      %843 = vrot.lane.b32.xlu0 %v824, 120
      %v844 = vpop.permute.xlu0 %843
      %845 = vrot.lane.b32.xlu0 %v825, 120
      %v846 = vpop.permute.xlu0 %845
      %847 = vrot.lane.b32.xlu0 %v826, 120
      %v848 = vpop.permute.xlu0 %847
      %849 = vrot.lane.b32.xlu0 %v827, 120
      %v850 = vpop.permute.xlu0 %849
      %851 = vrot.lane.b32.xlu0 %v828, 120
      %v852 = vpop.permute.xlu0 %851
      %v861 = vadd.f32 %v821, %v838
      %v862 = vadd.f32 %v822, %v840
      %v863 = vadd.f32 %v823, %v842
      %v864 = vadd.f32 %v824, %v844
      %v865 = vadd.f32 %v825, %v846
      %v866 = vadd.f32 %v826, %v848
      %v867 = vadd.f32 %v827, %v850
      %v868 = vadd.f32 %v828, %v852
      %v869 = vmul.f32 %v861, 0.5
      %v870 = vmul.f32 %v862, 0.5
      %v871 = vmul.f32 %v863, 0.5
      %v872 = vmul.f32 %v864, 0.5
      %v873 = vmul.f32 %v865, 0.5
      %v874 = vmul.f32 %v866, 0.5
      %v875 = vmul.f32 %v867, 0.5
      %v876 = vmul.f32 %v868, 0.5
      %877 = vst.msk [vmem:[%s248] sm:$0xff] %vm805, %v869
      %878 = vst.msk [vmem:[%s248 + $0x8] sm:$0xff] %vm805, %v870
      %879 = vst.msk [vmem:[%s248 + $0x10] sm:$0xff] %vm805, %v871
      %880 = vst.msk [vmem:[%s248 + $0x18] sm:$0xff] %vm805, %v872
      %881 = vst.msk [vmem:[%s248 + $0x20] sm:$0xff] %vm805, %v873
      %882 = vst.msk [vmem:[%s248 + $0x28] sm:$0xff] %vm805, %v874
      %883 = vst.msk [vmem:[%s248 + $0x30] sm:$0xff] %vm805, %v875
      %884 = vst.msk [vmem:[%s248 + $0x38] sm:$0xff] %vm805, %v876
      %s885 = smul.u32 8, %s16
      %p886 = scmp.lt.s32.totalorder %s885, 15
      %s887 = scalar_select %p886, %s885, 15
      %s888 = smul.addr %s887, 8
      %s889 = scalar_lea.vmem %s5, %s888
      // Predicated region
      $region41: #{gat_forward.7} parent=39 // pred_check
        %p890 = pneg %p149
      $region42: #{gat_forward.7} parent=39 // pred_check_branch
        %892 = sbr.rel (%p890) target = $region44
      $region43: #{gat_forward.7} parent=39 // pred_region
        %s893 = smul.u32 8, %s16
      $region44: #{gat_forward.7} parent=39 // pred_fallthru
        _
    $region40: #{gat_forward.7} parent=5 // pred_fallthru
      _
    %p894 = scmp.le.s32.totalorder 2, %s11
    // Predicated region
    $region45: #{gat_forward.7} parent=5 // pred_check
      %p895 = pneg %p894
    $region46: #{gat_forward.7} parent=5 // pred_check_branch
      %897 = sbr.rel (%p895) target = $region48
    $region47: #{gat_forward.7} parent=5 // pred_region
      %s898 = ssub.s32 %s11, 2
      // Predicated region
      $region49: #{gat_forward.7} parent=47 // pred_check
        %p899 = pneg %p155
      $region50: #{gat_forward.7} parent=47 // pred_check_branch
        %901 = sbr.rel (%p899) target = $region52
      $region51: #{gat_forward.7} parent=47 // pred_region
        %s902 = smul.u32 8, %s17
        %p903 = scmp.lt.s32.totalorder %s902, 15
        %s904 = scalar_select %p903, %s902, 15
        %s905 = smul.addr %s904, 8
        %s906 = scalar_lea.vmem %s5, %s905
      $region52: #{gat_forward.7} parent=47 // pred_fallthru
        _
    $region48: #{gat_forward.7} parent=5 // pred_fallthru
      _
  $region6: #{gat_forward.7} parent=0 // loop_footer
    %s15 = sadd.s32 1, %s11
  $region7: #{gat_forward.7} parent=0 // loop_footer_branch
    %10 = sbr.rel target = $region3
  $region8: #{gat_forward.7} parent=0 // loop_exit
    _

</llo_original>
